<compile_context>
chip_gen: v6e
topology: v6e:2x2x1
jax: 0.10.0
libtpu: 0.0.40
codegen_flags: <defaults>
</compile_context>

<pallas_src>
import jax
import jax.numpy as jnp
from jax.experimental import pallas as pl
from jax.experimental.pallas import tpu as pltpu


def _split_conv3x3_kernel(x_ref, w_ref, b_ref, o_ref, xp_ref):
    """One (batch, split) tile of the fused Split_Dilation forward.

    x_ref : (1, 1, H, W, Cin)      this split's input channels
    w_ref : (1, 3, 3, Cin, Cout)   this split's HWIO weights
    b_ref : (1, 1, Cout)           this split's bias
    o_ref : (1, 1, H, W, Cout)     this split's output slot
    xp_ref: (H+2, W+16, Cin)       VMEM scratch; image lives at rows [1,H+1),
                                   cols [8, 8+W) so the halo store stays
                                   sublane-aligned.
    """
    H = o_ref.shape[2]
    W = o_ref.shape[3]
    Cin = x_ref.shape[4]
    Cout = o_ref.shape[4]

    # In-kernel zero padding (replaces the wrapper-side jnp.pad HBM pass).
    xp_ref[...] = jnp.zeros_like(xp_ref)
    xp_ref[pl.ds(1, H), pl.ds(8, W), :] = x_ref[0, 0]
    xp = xp_ref[...]                                   # (H+2, W+16, Cin)

    acc = jnp.zeros((H * W, Cout), jnp.float32)
    # Hoist the kw (sublane-axis) shifts: 3 shifted planes instead of 9
    # unaligned slices; the kh shifts below are leading-dim slices (cheap).
    # TODO(synk): fold all 9 taps into one K=9*Cin im2col matmul and emit a
    #             lane-dense (H, W*Cout) output slab once unaligned minor-dim
    #             concat/reshape is verified on the target toolchain.
    for kw in range(3):
        plane = xp[:, 7 + kw:7 + kw + W, :]            # (H+2, W, Cin)
        for kh in range(3):
            patch = plane[kh:kh + H].reshape(H * W, Cin)
            acc += jnp.dot(patch, w_ref[0, kh, kw],
                           preferred_element_type=jnp.float32)

    acc = acc + b_ref[0].astype(jnp.float32)
    o_ref[0, 0] = acc.reshape(H, W, Cout).astype(o_ref.dtype)


def split_dilation_forward(x_nchw, params, in_ch, out_ch, spl=2):
    """Forward pass of Split_Dilation as ONE fused pallas_call.

    Matches: split input channels into [in_ch//spl, out_ch//spl], run an
    independent Conv2d(k=3, s=1, p=1, d=1) on each half, concat on channels.
    (Like the PyTorch module, this only type-checks when in_ch == out_ch.)
    """
    w1, b1, w2, b2 = params
    assert spl == 2 and in_ch == out_ch and in_ch % spl == 0
    cin = in_ch // spl
    cout = out_ch // spl
    B, C, H, W = x_nchw.shape
    assert C == in_ch

    # NCHW -> (B, spl, H, W, Cin): the channel "split" becomes a reshape plus a
    # single transpose; per-split selection happens in the BlockSpec index_map.
    x = x_nchw.reshape(B, spl, cin, H, W).transpose(0, 1, 3, 4, 2)

    w_stack = jnp.stack([w1, w2], axis=0)                       # (spl,3,3,Cin,Cout)
    b_stack = jnp.stack([b1, b2], axis=0).reshape(spl, 1, cout)  # (spl,1,Cout)

    flops = 2 * B * spl * H * W * 9 * cin * cout
    bytes_accessed = (x.size + B * spl * H * W * cout
                      + w_stack.size + b_stack.size) * x.dtype.itemsize

    # TODO(synk): for large H/W add row tiling with a 2-row halo via manual DMA
    #             (v7x has only 64 MiB VMEM) instead of one full image per block.
    out = pl.pallas_call(
        _split_conv3x3_kernel,
        out_shape=jax.ShapeDtypeStruct((B, spl, H, W, cout), x.dtype),
        grid_spec=pltpu.PrefetchScalarGridSpec(
            num_scalar_prefetch=0,
            grid=(B, spl),
            in_specs=[
                pl.BlockSpec((1, 1, H, W, cin), lambda b, s: (b, s, 0, 0, 0)),
                pl.BlockSpec((1, 3, 3, cin, cout), lambda b, s: (s, 0, 0, 0, 0)),
                pl.BlockSpec((1, 1, cout), lambda b, s: (s, 0, 0)),
            ],
            out_specs=pl.BlockSpec((1, 1, H, W, cout),
                                   lambda b, s: (b, s, 0, 0, 0)),
            scratch_shapes=[pltpu.VMEM((H + 2, W + 16, cin), x.dtype)],
        ),
        compiler_params=pltpu.CompilerParams(
            dimension_semantics=("parallel", "parallel")),
        cost_estimate=pl.CostEstimate(flops=flops, transcendentals=0,
                                      bytes_accessed=bytes_accessed),
    )(x, w_stack, b_stack)

    # (B, spl, H, W, Cout) -> (B, spl*Cout, H, W); channel order matches
    # torch.cat((s0, s1), dim=1).
    return out.transpose(0, 1, 4, 2, 3).reshape(B, spl * cout, H, W)


def init_params(key, in_ch, out_ch, spl=2, dtype=jnp.float32):
    cin = in_ch // spl
    cout = out_ch // spl
    k1, k2, k3, k4 = jax.random.split(key, 4)
    scale = 1.0 / (cin * 9) ** 0.5                 # like PyTorch default init range
    w1 = jax.random.uniform(k1, (3, 3, cin, cout), dtype, -scale, scale)
    b1 = jax.random.uniform(k2, (cout,), dtype, -scale, scale)
    w2 = jax.random.uniform(k3, (3, 3, cin, cout), dtype, -scale, scale)
    b2 = jax.random.uniform(k4, (cout,), dtype, -scale, scale)
    return w1, b1, w2, b2


def _reference(x_nchw, params, in_ch, out_ch, spl=2):
    """Pure-JAX reference (lax conv) for a correctness sanity check."""
    w1, b1, w2, b2 = params
    c0 = in_ch // spl
    c1 = out_ch // spl
    x = jnp.transpose(x_nchw, (0, 2, 3, 1))
    dn = jax.lax.conv_dimension_numbers(x.shape, w1.shape,
                                        ("NHWC", "HWIO", "NHWC"))

    def conv(xh, w, b):
        y = jax.lax.conv_general_dilated(xh, w, (1, 1), ((1, 1), (1, 1)),
                                         dimension_numbers=dn)
        return y + b

    s0 = conv(x[..., :c0], w1, b1)
    s1 = conv(x[..., c0:c0 + c1], w2, b2)
    return jnp.transpose(jnp.concatenate([s0, s1], axis=-1), (0, 3, 1, 2))


if __name__ == "__main__":
    B, IN_CH, OUT_CH, H, W, SPL = 2, 32, 32, 16, 16, 2

    key = jax.random.PRNGKey(0)
    kx, kp = jax.random.split(key)
    x = jax.random.normal(kx, (B, IN_CH, H, W), jnp.float32)
    params = init_params(kp, IN_CH, OUT_CH, SPL)

    out = jax.block_until_ready(split_dilation_forward(x, params, IN_CH, OUT_CH, SPL))
    ref = jax.block_until_ready(_reference(x, params, IN_CH, OUT_CH, SPL))

    assert out.shape == (B, OUT_CH, H, W)
    assert jnp.max(jnp.abs(out - ref)) < 1e-4

    print("KERNEL_OK")
</pallas_src>

<mosaic_0001>
module attributes {stable_mosaic.version = 11 : i64} {
  func.func @_split_conv3x3_kernel(%arg0: i32, %arg1: i32, %arg2: memref<1x1x16x16x16xf32, #tpu.memory_space<vmem>>, %arg3: memref<1x3x3x16x16xf32, #tpu.memory_space<vmem>>, %arg4: memref<1x1x16xf32, #tpu.memory_space<vmem>>, %arg5: memref<1x1x16x16x16xf32, #tpu.memory_space<vmem>>, %arg6: memref<18x32x16xf32, #tpu.memory_space<vmem>>) attributes {dimension_semantics = [#tpu.dimension_semantics<parallel>, #tpu.dimension_semantics<parallel>], iteration_bounds = array<i64: 2, 2>, scalar_prefetch = 0 : i64, scratch_operands = 1 : i64, tpu.core_type = #tpu.core_type<tc>, window_params = [{transform_indices = @transform_0, window_bounds = array<i64: 1, 1, 16, 16, 16>}, {transform_indices = @transform_1, window_bounds = array<i64: 1, 3, 3, 16, 16>}, {transform_indices = @transform_2, window_bounds = array<i64: 1, 1, 16>}, {transform_indices = @transform_3, window_bounds = array<i64: 1, 1, 16, 16, 16>}]} {
    %cst = arith.constant 0.000000e+00 : f32
    %0 = vector.broadcast %cst : f32 to vector<18x32x16xf32>
    %c0 = arith.constant 0 : index
    %c0_0 = arith.constant 0 : index
    %c0_1 = arith.constant 0 : index
    %1 = vector.load %arg6[%c0, %c0_0, %c0_1] : memref<18x32x16xf32, #tpu.memory_space<vmem>>, vector<18x32x16xf32>
    tpu.vector_store %arg6[%c0, %c0_0, %c0_1], %0 {strides = array<i32>} : memref<18x32x16xf32, #tpu.memory_space<vmem>>, vector<18x32x16xf32>,
    %c0_2 = arith.constant 0 : index
    %c0_3 = arith.constant 0 : index
    %c0_4 = arith.constant 0 : index
    %c0_5 = arith.constant 0 : index
    %c0_6 = arith.constant 0 : index
    %2 = vector.load %arg2[%c0_2, %c0_3, %c0_4, %c0_5, %c0_6] : memref<1x1x16x16x16xf32, #tpu.memory_space<vmem>>, vector<1x1x16x16x16xf32>
    %3 = vector.shape_cast %2 : vector<1x1x16x16x16xf32> to vector<16x16x16xf32>
    %c1 = arith.constant 1 : index
    %c8 = arith.constant 8 : index
    %c0_7 = arith.constant 0 : index
    %4 = vector.load %arg6[%c1, %c8, %c0_7] : memref<18x32x16xf32, #tpu.memory_space<vmem>>, vector<16x16x16xf32>
    tpu.vector_store %arg6[%c1, %c8, %c0_7], %3 {strides = array<i32>} : memref<18x32x16xf32, #tpu.memory_space<vmem>>, vector<16x16x16xf32>,
    %c0_8 = arith.constant 0 : index
    %c0_9 = arith.constant 0 : index
    %c0_10 = arith.constant 0 : index
    %5 = vector.load %arg6[%c0_8, %c0_9, %c0_10] : memref<18x32x16xf32, #tpu.memory_space<vmem>>, vector<18x32x16xf32>
    %cst_11 = arith.constant 0.000000e+00 : f32
    %6 = vector.broadcast %cst_11 : f32 to vector<256x16xf32>
    %7 = vector.extract_strided_slice %5 {offsets = [0, 7, 0], sizes = [18, 16, 16], strides = [1, 1, 1]} : vector<18x32x16xf32> to vector<18x16x16xf32>
    %8 = vector.extract_strided_slice %7 {offsets = [0, 0, 0], sizes = [16, 16, 16], strides = [1, 1, 1]} : vector<18x16x16xf32> to vector<16x16x16xf32>
    %9 = vector.shape_cast %8 : vector<16x16x16xf32> to vector<256x16xf32>
    %c0_12 = arith.constant 0 : index
    %c0_13 = arith.constant 0 : index
    %c0_14 = arith.constant 0 : index
    %c0_15 = arith.constant 0 : index
    %c0_16 = arith.constant 0 : index
    %10 = vector.load %arg3[%c0_12, %c0_13, %c0_14, %c0_15, %c0_16] : memref<1x3x3x16x16xf32, #tpu.memory_space<vmem>>, vector<1x1x1x16x16xf32>
    %11 = vector.shape_cast %10 : vector<1x1x1x16x16xf32> to vector<16x16xf32>
    %cst_17 = arith.constant dense<0.000000e+00> : vector<256x16xf32>
    %12 = tpu.matmul %9, %11, %cst_17 {dimension_numbers = #tpu.dot_dimension_numbers<[1], [0], [0], [1], [0, 0, 1, 1], [], []>} : vector<256x16xf32>, vector<16x16xf32>, vector<256x16xf32> -> vector<256x16xf32>
    %13 = arith.addf %6, %12 : vector<256x16xf32>
    %14 = vector.extract_strided_slice %7 {offsets = [1, 0, 0], sizes = [16, 16, 16], strides = [1, 1, 1]} : vector<18x16x16xf32> to vector<16x16x16xf32>
    %15 = vector.shape_cast %14 : vector<16x16x16xf32> to vector<256x16xf32>
    %c0_18 = arith.constant 0 : index
    %c1_19 = arith.constant 1 : index
    %c0_20 = arith.constant 0 : index
    %c0_21 = arith.constant 0 : index
    %c0_22 = arith.constant 0 : index
    %16 = vector.load %arg3[%c0_18, %c1_19, %c0_20, %c0_21, %c0_22] : memref<1x3x3x16x16xf32, #tpu.memory_space<vmem>>, vector<1x1x1x16x16xf32>
    %17 = vector.shape_cast %16 : vector<1x1x1x16x16xf32> to vector<16x16xf32>
    %cst_23 = arith.constant dense<0.000000e+00> : vector<256x16xf32>
    %18 = tpu.matmul %15, %17, %cst_23 {dimension_numbers = #tpu.dot_dimension_numbers<[1], [0], [0], [1], [0, 0, 1, 1], [], []>} : vector<256x16xf32>, vector<16x16xf32>, vector<256x16xf32> -> vector<256x16xf32>
    %19 = arith.addf %13, %18 : vector<256x16xf32>
    %20 = vector.extract_strided_slice %7 {offsets = [2, 0, 0], sizes = [16, 16, 16], strides = [1, 1, 1]} : vector<18x16x16xf32> to vector<16x16x16xf32>
    %21 = vector.shape_cast %20 : vector<16x16x16xf32> to vector<256x16xf32>
    %c0_24 = arith.constant 0 : index
    %c2 = arith.constant 2 : index
    %c0_25 = arith.constant 0 : index
    %c0_26 = arith.constant 0 : index
    %c0_27 = arith.constant 0 : index
    %22 = vector.load %arg3[%c0_24, %c2, %c0_25, %c0_26, %c0_27] : memref<1x3x3x16x16xf32, #tpu.memory_space<vmem>>, vector<1x1x1x16x16xf32>
    %23 = vector.shape_cast %22 : vector<1x1x1x16x16xf32> to vector<16x16xf32>
    %cst_28 = arith.constant dense<0.000000e+00> : vector<256x16xf32>
    %24 = tpu.matmul %21, %23, %cst_28 {dimension_numbers = #tpu.dot_dimension_numbers<[1], [0], [0], [1], [0, 0, 1, 1], [], []>} : vector<256x16xf32>, vector<16x16xf32>, vector<256x16xf32> -> vector<256x16xf32>
    %25 = arith.addf %19, %24 : vector<256x16xf32>
    %26 = vector.extract_strided_slice %5 {offsets = [0, 8, 0], sizes = [18, 16, 16], strides = [1, 1, 1]} : vector<18x32x16xf32> to vector<18x16x16xf32>
    %27 = vector.extract_strided_slice %26 {offsets = [0, 0, 0], sizes = [16, 16, 16], strides = [1, 1, 1]} : vector<18x16x16xf32> to vector<16x16x16xf32>
    %28 = vector.shape_cast %27 : vector<16x16x16xf32> to vector<256x16xf32>
    %c0_29 = arith.constant 0 : index
    %c0_30 = arith.constant 0 : index
    %c1_31 = arith.constant 1 : index
    %c0_32 = arith.constant 0 : index
    %c0_33 = arith.constant 0 : index
    %29 = vector.load %arg3[%c0_29, %c0_30, %c1_31, %c0_32, %c0_33] : memref<1x3x3x16x16xf32, #tpu.memory_space<vmem>>, vector<1x1x1x16x16xf32>
    %30 = vector.shape_cast %29 : vector<1x1x1x16x16xf32> to vector<16x16xf32>
    %cst_34 = arith.constant dense<0.000000e+00> : vector<256x16xf32>
    %31 = tpu.matmul %28, %30, %cst_34 {dimension_numbers = #tpu.dot_dimension_numbers<[1], [0], [0], [1], [0, 0, 1, 1], [], []>} : vector<256x16xf32>, vector<16x16xf32>, vector<256x16xf32> -> vector<256x16xf32>
    %32 = arith.addf %25, %31 : vector<256x16xf32>
    %33 = vector.extract_strided_slice %26 {offsets = [1, 0, 0], sizes = [16, 16, 16], strides = [1, 1, 1]} : vector<18x16x16xf32> to vector<16x16x16xf32>
    %34 = vector.shape_cast %33 : vector<16x16x16xf32> to vector<256x16xf32>
    %c0_35 = arith.constant 0 : index
    %c1_36 = arith.constant 1 : index
    %c1_37 = arith.constant 1 : index
    %c0_38 = arith.constant 0 : index
    %c0_39 = arith.constant 0 : index
    %35 = vector.load %arg3[%c0_35, %c1_36, %c1_37, %c0_38, %c0_39] : memref<1x3x3x16x16xf32, #tpu.memory_space<vmem>>, vector<1x1x1x16x16xf32>
    %36 = vector.shape_cast %35 : vector<1x1x1x16x16xf32> to vector<16x16xf32>
    %cst_40 = arith.constant dense<0.000000e+00> : vector<256x16xf32>
    %37 = tpu.matmul %34, %36, %cst_40 {dimension_numbers = #tpu.dot_dimension_numbers<[1], [0], [0], [1], [0, 0, 1, 1], [], []>} : vector<256x16xf32>, vector<16x16xf32>, vector<256x16xf32> -> vector<256x16xf32>
    %38 = arith.addf %32, %37 : vector<256x16xf32>
    %39 = vector.extract_strided_slice %26 {offsets = [2, 0, 0], sizes = [16, 16, 16], strides = [1, 1, 1]} : vector<18x16x16xf32> to vector<16x16x16xf32>
    %40 = vector.shape_cast %39 : vector<16x16x16xf32> to vector<256x16xf32>
    %c0_41 = arith.constant 0 : index
    %c2_42 = arith.constant 2 : index
    %c1_43 = arith.constant 1 : index
    %c0_44 = arith.constant 0 : index
    %c0_45 = arith.constant 0 : index
    %41 = vector.load %arg3[%c0_41, %c2_42, %c1_43, %c0_44, %c0_45] : memref<1x3x3x16x16xf32, #tpu.memory_space<vmem>>, vector<1x1x1x16x16xf32>
    %42 = vector.shape_cast %41 : vector<1x1x1x16x16xf32> to vector<16x16xf32>
    %cst_46 = arith.constant dense<0.000000e+00> : vector<256x16xf32>
    %43 = tpu.matmul %40, %42, %cst_46 {dimension_numbers = #tpu.dot_dimension_numbers<[1], [0], [0], [1], [0, 0, 1, 1], [], []>} : vector<256x16xf32>, vector<16x16xf32>, vector<256x16xf32> -> vector<256x16xf32>
    %44 = arith.addf %38, %43 : vector<256x16xf32>
    %45 = vector.extract_strided_slice %5 {offsets = [0, 9, 0], sizes = [18, 16, 16], strides = [1, 1, 1]} : vector<18x32x16xf32> to vector<18x16x16xf32>
    %46 = vector.extract_strided_slice %45 {offsets = [0, 0, 0], sizes = [16, 16, 16], strides = [1, 1, 1]} : vector<18x16x16xf32> to vector<16x16x16xf32>
    %47 = vector.shape_cast %46 : vector<16x16x16xf32> to vector<256x16xf32>
    %c0_47 = arith.constant 0 : index
    %c0_48 = arith.constant 0 : index
    %c2_49 = arith.constant 2 : index
    %c0_50 = arith.constant 0 : index
    %c0_51 = arith.constant 0 : index
    %48 = vector.load %arg3[%c0_47, %c0_48, %c2_49, %c0_50, %c0_51] : memref<1x3x3x16x16xf32, #tpu.memory_space<vmem>>, vector<1x1x1x16x16xf32>
    %49 = vector.shape_cast %48 : vector<1x1x1x16x16xf32> to vector<16x16xf32>
    %cst_52 = arith.constant dense<0.000000e+00> : vector<256x16xf32>
    %50 = tpu.matmul %47, %49, %cst_52 {dimension_numbers = #tpu.dot_dimension_numbers<[1], [0], [0], [1], [0, 0, 1, 1], [], []>} : vector<256x16xf32>, vector<16x16xf32>, vector<256x16xf32> -> vector<256x16xf32>
    %51 = arith.addf %44, %50 : vector<256x16xf32>
    %52 = vector.extract_strided_slice %45 {offsets = [1, 0, 0], sizes = [16, 16, 16], strides = [1, 1, 1]} : vector<18x16x16xf32> to vector<16x16x16xf32>
    %53 = vector.shape_cast %52 : vector<16x16x16xf32> to vector<256x16xf32>
    %c0_53 = arith.constant 0 : index
    %c1_54 = arith.constant 1 : index
    %c2_55 = arith.constant 2 : index
    %c0_56 = arith.constant 0 : index
    %c0_57 = arith.constant 0 : index
    %54 = vector.load %arg3[%c0_53, %c1_54, %c2_55, %c0_56, %c0_57] : memref<1x3x3x16x16xf32, #tpu.memory_space<vmem>>, vector<1x1x1x16x16xf32>
    %55 = vector.shape_cast %54 : vector<1x1x1x16x16xf32> to vector<16x16xf32>
    %cst_58 = arith.constant dense<0.000000e+00> : vector<256x16xf32>
    %56 = tpu.matmul %53, %55, %cst_58 {dimension_numbers = #tpu.dot_dimension_numbers<[1], [0], [0], [1], [0, 0, 1, 1], [], []>} : vector<256x16xf32>, vector<16x16xf32>, vector<256x16xf32> -> vector<256x16xf32>
    %57 = arith.addf %51, %56 : vector<256x16xf32>
    %58 = vector.extract_strided_slice %45 {offsets = [2, 0, 0], sizes = [16, 16, 16], strides = [1, 1, 1]} : vector<18x16x16xf32> to vector<16x16x16xf32>
    %59 = vector.shape_cast %58 : vector<16x16x16xf32> to vector<256x16xf32>
    %c0_59 = arith.constant 0 : index
    %c2_60 = arith.constant 2 : index
    %c2_61 = arith.constant 2 : index
    %c0_62 = arith.constant 0 : index
    %c0_63 = arith.constant 0 : index
    %60 = vector.load %arg3[%c0_59, %c2_60, %c2_61, %c0_62, %c0_63] : memref<1x3x3x16x16xf32, #tpu.memory_space<vmem>>, vector<1x1x1x16x16xf32>
    %61 = vector.shape_cast %60 : vector<1x1x1x16x16xf32> to vector<16x16xf32>
    %cst_64 = arith.constant dense<0.000000e+00> : vector<256x16xf32>
    %62 = tpu.matmul %59, %61, %cst_64 {dimension_numbers = #tpu.dot_dimension_numbers<[1], [0], [0], [1], [0, 0, 1, 1], [], []>} : vector<256x16xf32>, vector<16x16xf32>, vector<256x16xf32> -> vector<256x16xf32>
    %63 = arith.addf %57, %62 : vector<256x16xf32>
    %c0_65 = arith.constant 0 : index
    %c0_66 = arith.constant 0 : index
    %c0_67 = arith.constant 0 : index
    %64 = vector.load %arg4[%c0_65, %c0_66, %c0_67] : memref<1x1x16xf32, #tpu.memory_space<vmem>>, vector<1x1x16xf32>
    %65 = vector.shape_cast %64 : vector<1x1x16xf32> to vector<1x16xf32>
    %66 = vector.broadcast %65 : vector<1x16xf32> to vector<256x16xf32>
    %67 = arith.addf %63, %66 : vector<256x16xf32>
    %68 = vector.shape_cast %67 : vector<256x16xf32> to vector<16x16x16xf32>
    %c0_68 = arith.constant 0 : index
    %c0_69 = arith.constant 0 : index
    %c0_70 = arith.constant 0 : index
    %c0_71 = arith.constant 0 : index
    %c0_72 = arith.constant 0 : index
    %69 = vector.load %arg5[%c0_68, %c0_69, %c0_70, %c0_71, %c0_72] : memref<1x1x16x16x16xf32, #tpu.memory_space<vmem>>, vector<1x1x16x16x16xf32>
    %70 = vector.shape_cast %69 : vector<1x1x16x16x16xf32> to vector<16x16x16xf32>
    %71 = vector.shape_cast %68 : vector<16x16x16xf32> to vector<1x1x16x16x16xf32>
    tpu.vector_store %arg5[%c0_68, %c0_69, %c0_70, %c0_71, %c0_72], %71 {strides = array<i32>} : memref<1x1x16x16x16xf32, #tpu.memory_space<vmem>>, vector<1x1x16x16x16xf32>,
    return
  }
  func.func @transform_0(%arg0: i32, %arg1: i32) -> (i32, i32, i32, i32, i32) {
    %c0_i32 = arith.constant 0 : i32
    %c0_i32_0 = arith.constant 0 : i32
    %c0_i32_1 = arith.constant 0 : i32
    %c0_i32_2 = arith.constant 0 : i32
    return %arg0, %arg1, %c0_i32, %c0_i32_0, %c0_i32_1 : i32, i32, i32, i32, i32
  }
  func.func @transform_1(%arg0: i32, %arg1: i32) -> (i32, i32, i32, i32, i32) {
    %c0_i32 = arith.constant 0 : i32
    %c0_i32_0 = arith.constant 0 : i32
    %c0_i32_1 = arith.constant 0 : i32
    %c0_i32_2 = arith.constant 0 : i32
    %c0_i32_3 = arith.constant 0 : i32
    return %arg1, %c0_i32, %c0_i32_0, %c0_i32_1, %c0_i32_2 : i32, i32, i32, i32, i32
  }
  func.func @transform_2(%arg0: i32, %arg1: i32) -> (i32, i32, i32) {
    %c0_i32 = arith.constant 0 : i32
    %c0_i32_0 = arith.constant 0 : i32
    %c0_i32_1 = arith.constant 0 : i32
    return %arg1, %c0_i32, %c0_i32_0 : i32, i32, i32
  }
  func.func @transform_3(%arg0: i32, %arg1: i32) -> (i32, i32, i32, i32, i32) {
    %c0_i32 = arith.constant 0 : i32
    %c0_i32_0 = arith.constant 0 : i32
    %c0_i32_1 = arith.constant 0 : i32
    %c0_i32_2 = arith.constant 0 : i32
    return %arg0, %arg1, %c0_i32, %c0_i32_0, %c0_i32_1 : i32, i32, i32, i32, i32
  }
}

</mosaic_0001>

<llo_original>
// kernel: tpu_custom_call.1
$region0: #{tpu_custom_call.1}
  #allocation0 [shape = 'u32[]', space=smem, size = 0x4, offset = 0x4, fixed_abs, tag = 'smem constant byte address 0x4 - core index']
  #allocation1 [shape = 'u32[144,128]{1,0:T(1,128)}', space=vmem, size = 0x12000, scoped, tag = 'internal scratch']
  #allocation2 [shape = 'f32[18,32,16]{2,1,0:T(8,128)}', space=vmem, size = 0x48000, scoped, tag = 'scratch operand']
  %s0 = inlined_call_operand.hbm [shape: f32[2,2,16,16,16], index: 0, kind: input, shape index: {}]
  %s1 = inlined_call_operand.hbm [shape: f32[2,3,3,16,16], index: 1, kind: input, shape index: {}]
  %s2 = inlined_call_operand.vmem [shape: f32[2,1,16], index: 2, kind: input, shape index: {}]
  %s3 = inlined_call_operand.hbm [shape: f32[2,2,16,16,16], index: 3, kind: output, shape index: {}]
  %s4 = sld [smem:[#allocation0]]
  $region53: #{tpu_custom_call.1} parent=0
    _
  %s6 = ssub.s32 1, %s4
  %s7 = scalar_select 0, %s6, %s4
  $region1: #{tpu_custom_call.1} parent=0
    #allocation3 [shape = 'u8[262144]{0}', space=vmem, size = 0x40000, scoped, tag = 'input window, operand 0']
    #allocation4 [shape = 's32[2]{0}', space=sflag, size = 0x8, scoped, tag = 'scoped memory for tpu_custom_call.1']
    #allocation5 [shape = 's32[2]{0}', space=sflag, size = 0x8, scoped, tag = 'scoped memory for tpu_custom_call.1']
    #allocation6 [shape = 'u8[147456]{0}', space=vmem, size = 0x24000, scoped, tag = 'input window, operand 1']
    #allocation7 [shape = 's32[2]{0}', space=sflag, size = 0x8, scoped, tag = 'scoped memory for tpu_custom_call.1']
    #allocation8 [shape = 'u8[262144]{0}', space=vmem, size = 0x40000, scoped, tag = 'output window, operand 0']
    %8 = vsyncpa [#allocation4], 0
    %s9 = scalar_lea.sflag [#allocation4], 1
    %10 = vsyncpa %s9, 0
    %11 = vsyncpa [#allocation7], 0
    %s12 = scalar_lea.sflag [#allocation7], 1
    %13 = vsyncpa %s12, 0
    %14 = vsyncpa [#allocation5], 0
    %s15 = scalar_lea.sflag [#allocation5], 1
    %16 = vsyncpa %s15, 0
    loop: start=0, step=1, limit=6
    $region2: #{tpu_custom_call.1} parent=1 // loop_pre_header
      _
    $region3: #{tpu_custom_call.1} parent=1 // loop_header
      %s18 = sphi 0, %s22
      %p19 = scmp.ge.s32.totalorder %s18, 6
      %s25 = sphi 0, %s37
      %s26 = sphi 0, %s33
      %s27 = sphi 0, %s25
      %s28 = sphi 0, %s26
      %s29 = sphi 0, %s27
      %s30 = sphi 0, %s28
      %s42 = sphi 0, %s44
      %s45 = sphi 0, %s42
      %s46 = sphi 0, %s45
      %s62 = sphi 0, %s46
      %s68 = sphi 0, %s70
      %s71 = sphi 0, %s68
      %s72 = sphi 0, %s71
      %s88 = sphi 0, %s72
      %s94 = sphi 0, %s96
      %s97 = sphi 0, %s94
      %s98 = sphi 0, %s97
      %s114 = sphi 0, %s98
      %s122 = sphi 0, %s124
      %s125 = sphi 0, %s122
      %s126 = sphi 0, %s125
      %s142 = sphi 0, %s126
    $region4: #{tpu_custom_call.1} parent=1 // loop_header_branch
      %21 = sbr.rel (%p19) target = $region8
    $region5: #{tpu_custom_call.1} parent=1 // loop_body
      %s23 = ssub.s32 %s18, 1
      %s24 = ssub.s32 %s18, 2
      %s31 = sadd.s32 1, %s26
      %p32 = scmp.ge.s32.totalorder %s31, 2
      %s33 = scalar_select %p32, 0, %s31
      %s34 = sadd.s32 1, %s25
      %s35 = scalar_select %p32, %s34, %s25
      %p36 = scmp.ge.s32.totalorder %s35, 2
      %s37 = scalar_select %p36, 0, %s35
      %s38 = ssub.s32 %s25, %s37
      %s39 = ssub.s32 %s26, %s33
      %s40 = sor.u32 %s38, %s39
      %p41 = scmp.eq.s32.totalorder %s40, 0
      %s43 = sadd.s32 %s42, 1
      %s44 = scalar_select %p41, %s42, %s43
      %p47 = pneg %p41
      %p48 = scmp.eq.s32.totalorder %s18, 3
      %p49 = por %p47, %p48
      %p50 = scmp.ne.s32.totalorder %s42, %s45
      %p51 = scmp.eq.s32.totalorder %s18, 0
      %p52 = por %p50, %p51
      %p53 = scmp.ne.s32.totalorder %s42, %s45
      %p54 = scmp.eq.s32.totalorder %s23, 3
      %p55 = por %p53, %p54
      %p56 = scmp.ne.s32.totalorder %s45, %s46
      %p57 = scmp.eq.s32.totalorder %s23, 0
      %p58 = por %p56, %p57
      %p59 = scmp.ne.s32.totalorder %s45, %s46
      %p60 = scmp.eq.s32.totalorder %s24, 3
      %p61 = por %p59, %p60
      %p63 = scmp.ne.s32.totalorder %s46, %s62
      %p64 = scmp.eq.s32.totalorder %s24, 0
      %p65 = por %p63, %p64
      %s66 = ssub.s32 %s26, %s33
      %p67 = scmp.eq.s32.totalorder %s66, 0
      %s69 = sadd.s32 %s68, 1
      %s70 = scalar_select %p67, %s68, %s69
      %p73 = pneg %p67
      %p74 = scmp.eq.s32.totalorder %s18, 3
      %p75 = por %p73, %p74
      %p76 = scmp.ne.s32.totalorder %s68, %s71
      %p77 = scmp.eq.s32.totalorder %s18, 0
      %p78 = por %p76, %p77
      %p79 = scmp.ne.s32.totalorder %s68, %s71
      %p80 = scmp.eq.s32.totalorder %s23, 3
      %p81 = por %p79, %p80
      %p82 = scmp.ne.s32.totalorder %s71, %s72
      %p83 = scmp.eq.s32.totalorder %s23, 0
      %p84 = por %p82, %p83
      %p85 = scmp.ne.s32.totalorder %s71, %s72
      %p86 = scmp.eq.s32.totalorder %s24, 3
      %p87 = por %p85, %p86
      %p89 = scmp.ne.s32.totalorder %s72, %s88
      %p90 = scmp.eq.s32.totalorder %s24, 0
      %p91 = por %p89, %p90
      %s92 = ssub.s32 %s26, %s33
      %p93 = scmp.eq.s32.totalorder %s92, 0
      %s95 = sadd.s32 %s94, 1
      %s96 = scalar_select %p93, %s94, %s95
      %p99 = pneg %p93
      %p100 = scmp.eq.s32.totalorder %s18, 3
      %p101 = por %p99, %p100
      %p102 = scmp.ne.s32.totalorder %s94, %s97
      %p103 = scmp.eq.s32.totalorder %s18, 0
      %p104 = por %p102, %p103
      %p105 = scmp.ne.s32.totalorder %s94, %s97
      %p106 = scmp.eq.s32.totalorder %s23, 3
      %p107 = por %p105, %p106
      %p108 = scmp.ne.s32.totalorder %s97, %s98
      %p109 = scmp.eq.s32.totalorder %s23, 0
      %p110 = por %p108, %p109
      %p111 = scmp.ne.s32.totalorder %s97, %s98
      %p112 = scmp.eq.s32.totalorder %s24, 3
      %p113 = por %p111, %p112
      %p115 = scmp.ne.s32.totalorder %s98, %s114
      %p116 = scmp.eq.s32.totalorder %s24, 0
      %p117 = por %p115, %p116
      %s118 = ssub.s32 %s25, %s37
      %s119 = ssub.s32 %s26, %s33
      %s120 = sor.u32 %s118, %s119
      %p121 = scmp.eq.s32.totalorder %s120, 0
      %s123 = sadd.s32 %s122, 1
      %s124 = scalar_select %p121, %s122, %s123
      %p127 = pneg %p121
      %p128 = scmp.eq.s32.totalorder %s18, 3
      %p129 = por %p127, %p128
      %p130 = scmp.ne.s32.totalorder %s122, %s125
      %p131 = scmp.eq.s32.totalorder %s18, 0
      %p132 = por %p130, %p131
      %p133 = scmp.ne.s32.totalorder %s122, %s125
      %p134 = scmp.eq.s32.totalorder %s23, 3
      %p135 = por %p133, %p134
      %p136 = scmp.ne.s32.totalorder %s125, %s126
      %p137 = scmp.eq.s32.totalorder %s23, 0
      %p138 = por %p136, %p137
      %p139 = scmp.ne.s32.totalorder %s125, %s126
      %p140 = scmp.eq.s32.totalorder %s24, 3
      %p141 = por %p139, %p140
      %p143 = scmp.ne.s32.totalorder %s126, %s142
      %p144 = scmp.eq.s32.totalorder %s24, 0
      %p145 = por %p143, %p144
      %p146 = scmp.le.s32.totalorder 1, %s18
      %p147 = scmp.lt.s32.totalorder %s18, 5
      %p148 = pnand %p146, %p147
      %p149 = pneg %p148
      // Predicated region
      $region9: #{tpu_custom_call.1} parent=5 // pred_check
        _
      $region10: #{tpu_custom_call.1} parent=5 // pred_check_branch
        %151 = sbr.rel (%p148) target = $region12
      $region11: #{tpu_custom_call.1} parent=5 // pred_region
        %s152 = ssub.s32 %s18, 1
      $region12: #{tpu_custom_call.1} parent=5 // pred_fallthru
        _
      %p153 = scmp.lt.s32.totalorder %s18, 4
      // Predicated region
      $region13: #{tpu_custom_call.1} parent=5 // pred_check
        %p154 = pneg %p153
      $region14: #{tpu_custom_call.1} parent=5 // pred_check_branch
        %156 = sbr.rel (%p154) target = $region16
      $region15: #{tpu_custom_call.1} parent=5 // pred_region
        // Predicated region
        $region17: #{tpu_custom_call.1} parent=15 // pred_check
          %p157 = pneg %p52
        $region18: #{tpu_custom_call.1} parent=15 // pred_check_branch
          %159 = sbr.rel (%p157) target = $region20
        $region19: #{tpu_custom_call.1} parent=15 // pred_region
          %s160 = sand.u32 %s42, 1
          %s161 = scalar_lea.sflag [#allocation4], %s160
          %s162 = sand.u32 %s42, 1
          %s163 = smul.addr %s162, 256
          %s164 = scalar_lea.vmem [#allocation3], %s163
          %s166 = ssub.s32 4096, 4096
          %167 = vsyncadd %s161, %s166
          %s168 = smul.addr %s26, 32
          %s169 = smul.addr %s25, 64
          %s170 = sadd.s32 %s168, %s169
          %s171 = smul.addr %s170, 128
          %s172 = scalar_lea.hbm %s0, %s171
          %s173 = sshll.u32 %s164, 4
          %s174 = int_to_ptr.vmem [resolvable:$true] %s173
          %179 = dma.hbm_to_vmem [thread:$0]  %s172, 4096, %s174, %s161, 128, 128, 8
        $region20: #{tpu_custom_call.1} parent=15 // pred_fallthru
          _
        // Predicated region
        $region21: #{tpu_custom_call.1} parent=15 // pred_check
          %p180 = pneg %p78
        $region22: #{tpu_custom_call.1} parent=15 // pred_check_branch
          %182 = sbr.rel (%p180) target = $region24
        $region23: #{tpu_custom_call.1} parent=15 // pred_region
          %s183 = sand.u32 %s68, 1
          %s184 = scalar_lea.sflag [#allocation7], %s183
          %s185 = sand.u32 %s68, 1
          %s186 = smul.addr %s185, 144
          %s187 = scalar_lea.vmem [#allocation6], %s186
          %s189 = ssub.s32 2304, 2304
          %190 = vsyncadd %s184, %s189
          %s191 = smul.addr %s26, 18
          %s192 = smul.addr %s191, 128
          %s193 = scalar_lea.hbm %s1, %s192
          %s194 = sshll.u32 %s187, 4
          %s195 = int_to_ptr.vmem [resolvable:$true] %s194
          %200 = dma.hbm_to_vmem [thread:$0]  %s193, 2304, %s195, %s184, 128, 128, 8
        $region24: #{tpu_custom_call.1} parent=15 // pred_fallthru
          _
        // Predicated region
        $region25: #{tpu_custom_call.1} parent=15 // pred_check
          %p201 = pneg %p104
        $region26: #{tpu_custom_call.1} parent=15 // pred_check_branch
          %203 = sbr.rel (%p201) target = $region28
        $region27: #{tpu_custom_call.1} parent=15 // pred_region
          %p204 = scmp.lt.s32.totalorder %s26, 1
          %s205 = scalar_select %p204, %s26, 1
          %s206 = scalar_lea.vmem %s2, %s205
        $region28: #{tpu_custom_call.1} parent=15 // pred_fallthru
          _
      $region16: #{tpu_custom_call.1} parent=5 // pred_fallthru
        _
      %p207 = scmp.le.s32.totalorder 1, %s18
      %p208 = scmp.lt.s32.totalorder %s18, 5
      %p209 = pnand %p207, %p208
      %p210 = pneg %p209
      // Predicated region
      $region29: #{tpu_custom_call.1} parent=5 // pred_check
        _
      $region30: #{tpu_custom_call.1} parent=5 // pred_check_branch
        %212 = sbr.rel (%p209) target = $region32
      $region31: #{tpu_custom_call.1} parent=5 // pred_region
        %s213 = ssub.s32 %s18, 1
        %s214 = sand.u32 %s45, 1
        %s215 = scalar_lea.sflag [#allocation4], %s214
        %s216 = sand.u32 %s45, 1
        %s217 = smul.addr %s216, 256
        %s218 = scalar_lea.vmem [#allocation3], %s217
        // Predicated region
        $region33: #{tpu_custom_call.1} parent=31 // pred_check
          %p219 = pneg %p58
        $region34: #{tpu_custom_call.1} parent=31 // pred_check_branch
          %221 = sbr.rel (%p219) target = $region36
        $region35: #{tpu_custom_call.1} parent=31 // pred_region
          %222 = dma.done %s215, 4096
        $region36: #{tpu_custom_call.1} parent=31 // pred_fallthru
          _
        %s223 = sand.u32 %s71, 1
        %s224 = scalar_lea.sflag [#allocation7], %s223
        %s225 = sand.u32 %s71, 1
        %s226 = smul.addr %s225, 144
        %s227 = scalar_lea.vmem [#allocation6], %s226
        // Predicated region
        $region37: #{tpu_custom_call.1} parent=31 // pred_check
          %p228 = pneg %p84
        $region38: #{tpu_custom_call.1} parent=31 // pred_check_branch
          %230 = sbr.rel (%p228) target = $region40
        $region39: #{tpu_custom_call.1} parent=31 // pred_region
          %231 = dma.done %s224, 2304
        $region40: #{tpu_custom_call.1} parent=31 // pred_fallthru
          _
        %s232 = sand.u32 %s45, 1
        %s233 = scalar_lea.sflag [#allocation4], %s232
        %s234 = sand.u32 %s45, 1
        %s235 = smul.addr %s234, 256
        %s236 = scalar_lea.vmem [#allocation3], %s235
        %p237 = pneg %p58
        %p238 = pneg %p55
        %s239 = sand.u32 %s71, 1
        %s240 = scalar_lea.sflag [#allocation7], %s239
        %s241 = sand.u32 %s71, 1
        %s242 = smul.addr %s241, 144
        %s243 = scalar_lea.vmem [#allocation6], %s242
        %p244 = pneg %p84
        %p245 = pneg %p81
        %p246 = scmp.lt.s32.totalorder %s28, 1
        %s247 = scalar_select %p246, %s28, 1
        %s248 = scalar_lea.vmem %s2, %s247
        %p249 = pneg %p110
        %p250 = pneg %p107
        %p251 = pneg %p138
        %p252 = pneg %p135
        %s253 = sand.u32 %s125, 1
        %s254 = scalar_lea.sflag [#allocation5], %s253
        %s255 = sand.u32 %s125, 1
        %s256 = smul.addr %s255, 256
        %s257 = scalar_lea.vmem [#allocation8], %s256
        %p258 = scmp.lt.s32.totalorder %s28, 1
        %s259 = scalar_select %p258, %s28, 1
        %s260 = scalar_lea.vmem %s2, %s259
        %vm261 = vcmask 130048
        %262 = vst.msk [vmem:[#allocation2] sm:$0xff] %vm261, 0.0
        %263 = vst.msk [vmem:[#allocation2 + $0x8] sm:$0xff] %vm261, 0.0
        %264 = vst.msk [vmem:[#allocation2 + $0x10] sm:$0xff] %vm261, 0.0
        %265 = vst.msk [vmem:[#allocation2 + $0x18] sm:$0xff] %vm261, 0.0
        %266 = vst.msk [vmem:[#allocation2 + $0x20] sm:$0xff] %vm261, 0.0
        %267 = vst.msk [vmem:[#allocation2 + $0x28] sm:$0xff] %vm261, 0.0
        %268 = vst.msk [vmem:[#allocation2 + $0x30] sm:$0xff] %vm261, 0.0
        %269 = vst.msk [vmem:[#allocation2 + $0x38] sm:$0xff] %vm261, 0.0
        %270 = vst.msk [vmem:[#allocation2 + $0x40] sm:$0xff] %vm261, 0.0
        %271 = vst.msk [vmem:[#allocation2 + $0x48] sm:$0xff] %vm261, 0.0
        %272 = vst.msk [vmem:[#allocation2 + $0x50] sm:$0xff] %vm261, 0.0
        %273 = vst.msk [vmem:[#allocation2 + $0x58] sm:$0xff] %vm261, 0.0
        %274 = vst.msk [vmem:[#allocation2 + $0x60] sm:$0xff] %vm261, 0.0
        %275 = vst.msk [vmem:[#allocation2 + $0x68] sm:$0xff] %vm261, 0.0
        %276 = vst.msk [vmem:[#allocation2 + $0x70] sm:$0xff] %vm261, 0.0
        %277 = vst.msk [vmem:[#allocation2 + $0x78] sm:$0xff] %vm261, 0.0
        %278 = vst.msk [vmem:[#allocation2 + $0x80] sm:$0xff] %vm261, 0.0
        %279 = vst.msk [vmem:[#allocation2 + $0x88] sm:$0xff] %vm261, 0.0
        %280 = vst.msk [vmem:[#allocation2 + $0x90] sm:$0xff] %vm261, 0.0
        %281 = vst.msk [vmem:[#allocation2 + $0x98] sm:$0xff] %vm261, 0.0
        %282 = vst.msk [vmem:[#allocation2 + $0xa0] sm:$0xff] %vm261, 0.0
        %283 = vst.msk [vmem:[#allocation2 + $0xa8] sm:$0xff] %vm261, 0.0
        %284 = vst.msk [vmem:[#allocation2 + $0xb0] sm:$0xff] %vm261, 0.0
        %285 = vst.msk [vmem:[#allocation2 + $0xb8] sm:$0xff] %vm261, 0.0
        %286 = vst.msk [vmem:[#allocation2 + $0xc0] sm:$0xff] %vm261, 0.0
        %287 = vst.msk [vmem:[#allocation2 + $0xc8] sm:$0xff] %vm261, 0.0
        %288 = vst.msk [vmem:[#allocation2 + $0xd0] sm:$0xff] %vm261, 0.0
        %289 = vst.msk [vmem:[#allocation2 + $0xd8] sm:$0xff] %vm261, 0.0
        %290 = vst.msk [vmem:[#allocation2 + $0xe0] sm:$0xff] %vm261, 0.0
        %291 = vst.msk [vmem:[#allocation2 + $0xe8] sm:$0xff] %vm261, 0.0
        %292 = vst.msk [vmem:[#allocation2 + $0xf0] sm:$0xff] %vm261, 0.0
        %293 = vst.msk [vmem:[#allocation2 + $0xf8] sm:$0xff] %vm261, 0.0
        %294 = vst.msk [vmem:[#allocation2 + $0x100] sm:$0xff] %vm261, 0.0
        %295 = vst.msk [vmem:[#allocation2 + $0x108] sm:$0xff] %vm261, 0.0
        %296 = vst.msk [vmem:[#allocation2 + $0x110] sm:$0xff] %vm261, 0.0
        %297 = vst.msk [vmem:[#allocation2 + $0x118] sm:$0xff] %vm261, 0.0
        %298 = vst.msk [vmem:[#allocation2 + $0x120] sm:$0xff] %vm261, 0.0
        %299 = vst.msk [vmem:[#allocation2 + $0x128] sm:$0xff] %vm261, 0.0
        %300 = vst.msk [vmem:[#allocation2 + $0x130] sm:$0xff] %vm261, 0.0
        %301 = vst.msk [vmem:[#allocation2 + $0x138] sm:$0xff] %vm261, 0.0
        %302 = vst.msk [vmem:[#allocation2 + $0x140] sm:$0xff] %vm261, 0.0
        %303 = vst.msk [vmem:[#allocation2 + $0x148] sm:$0xff] %vm261, 0.0
        %304 = vst.msk [vmem:[#allocation2 + $0x150] sm:$0xff] %vm261, 0.0
        %305 = vst.msk [vmem:[#allocation2 + $0x158] sm:$0xff] %vm261, 0.0
        %306 = vst.msk [vmem:[#allocation2 + $0x160] sm:$0xff] %vm261, 0.0
        %307 = vst.msk [vmem:[#allocation2 + $0x168] sm:$0xff] %vm261, 0.0
        %308 = vst.msk [vmem:[#allocation2 + $0x170] sm:$0xff] %vm261, 0.0
        %309 = vst.msk [vmem:[#allocation2 + $0x178] sm:$0xff] %vm261, 0.0
        %310 = vst.msk [vmem:[#allocation2 + $0x180] sm:$0xff] %vm261, 0.0
        %311 = vst.msk [vmem:[#allocation2 + $0x188] sm:$0xff] %vm261, 0.0
        %312 = vst.msk [vmem:[#allocation2 + $0x190] sm:$0xff] %vm261, 0.0
        %313 = vst.msk [vmem:[#allocation2 + $0x198] sm:$0xff] %vm261, 0.0
        %314 = vst.msk [vmem:[#allocation2 + $0x1a0] sm:$0xff] %vm261, 0.0
        %315 = vst.msk [vmem:[#allocation2 + $0x1a8] sm:$0xff] %vm261, 0.0
        %316 = vst.msk [vmem:[#allocation2 + $0x1b0] sm:$0xff] %vm261, 0.0
        %317 = vst.msk [vmem:[#allocation2 + $0x1b8] sm:$0xff] %vm261, 0.0
        %318 = vst.msk [vmem:[#allocation2 + $0x1c0] sm:$0xff] %vm261, 0.0
        %319 = vst.msk [vmem:[#allocation2 + $0x1c8] sm:$0xff] %vm261, 0.0
        %320 = vst.msk [vmem:[#allocation2 + $0x1d0] sm:$0xff] %vm261, 0.0
        %321 = vst.msk [vmem:[#allocation2 + $0x1d8] sm:$0xff] %vm261, 0.0
        %322 = vst.msk [vmem:[#allocation2 + $0x1e0] sm:$0xff] %vm261, 0.0
        %323 = vst.msk [vmem:[#allocation2 + $0x1e8] sm:$0xff] %vm261, 0.0
        %324 = vst.msk [vmem:[#allocation2 + $0x1f0] sm:$0xff] %vm261, 0.0
        %325 = vst.msk [vmem:[#allocation2 + $0x1f8] sm:$0xff] %vm261, 0.0
        %326 = vst.msk [vmem:[#allocation2 + $0x200] sm:$0xff] %vm261, 0.0
        %327 = vst.msk [vmem:[#allocation2 + $0x208] sm:$0xff] %vm261, 0.0
        %328 = vst.msk [vmem:[#allocation2 + $0x210] sm:$0xff] %vm261, 0.0
        %329 = vst.msk [vmem:[#allocation2 + $0x218] sm:$0xff] %vm261, 0.0
        %330 = vst.msk [vmem:[#allocation2 + $0x220] sm:$0xff] %vm261, 0.0
        %331 = vst.msk [vmem:[#allocation2 + $0x228] sm:$0xff] %vm261, 0.0
        %332 = vst.msk [vmem:[#allocation2 + $0x230] sm:$0xff] %vm261, 0.0
        %333 = vst.msk [vmem:[#allocation2 + $0x238] sm:$0xff] %vm261, 0.0
        %v334 = vld [vmem:[%s218] sm:$0xff]
        %v335 = vld [vmem:[%s218 + $0x8] sm:$0xff]
        %v336 = vld [vmem:[%s218 + $0x10] sm:$0xff]
        %v337 = vld [vmem:[%s218 + $0x18] sm:$0xff]
        %v338 = vld [vmem:[%s218 + $0x20] sm:$0xff]
        %v339 = vld [vmem:[%s218 + $0x28] sm:$0xff]
        %v340 = vld [vmem:[%s218 + $0x30] sm:$0xff]
        %v341 = vld [vmem:[%s218 + $0x38] sm:$0xff]
        %v342 = vld [vmem:[%s218 + $0x40] sm:$0xff]
        %v343 = vld [vmem:[%s218 + $0x48] sm:$0xff]
        %v344 = vld [vmem:[%s218 + $0x50] sm:$0xff]
        %v345 = vld [vmem:[%s218 + $0x58] sm:$0xff]
        %v346 = vld [vmem:[%s218 + $0x60] sm:$0xff]
        %v347 = vld [vmem:[%s218 + $0x68] sm:$0xff]
        %v348 = vld [vmem:[%s218 + $0x70] sm:$0xff]
        %v349 = vld [vmem:[%s218 + $0x78] sm:$0xff]
        %v350 = vld [vmem:[%s218 + $0x80] sm:$0xff]
        %v351 = vld [vmem:[%s218 + $0x88] sm:$0xff]
        %v352 = vld [vmem:[%s218 + $0x90] sm:$0xff]
        %v353 = vld [vmem:[%s218 + $0x98] sm:$0xff]
        %v354 = vld [vmem:[%s218 + $0xa0] sm:$0xff]
        %v355 = vld [vmem:[%s218 + $0xa8] sm:$0xff]
        %v356 = vld [vmem:[%s218 + $0xb0] sm:$0xff]
        %v357 = vld [vmem:[%s218 + $0xb8] sm:$0xff]
        %v358 = vld [vmem:[%s218 + $0xc0] sm:$0xff]
        %v359 = vld [vmem:[%s218 + $0xc8] sm:$0xff]
        %v360 = vld [vmem:[%s218 + $0xd0] sm:$0xff]
        %v361 = vld [vmem:[%s218 + $0xd8] sm:$0xff]
        %v362 = vld [vmem:[%s218 + $0xe0] sm:$0xff]
        %v363 = vld [vmem:[%s218 + $0xe8] sm:$0xff]
        %v364 = vld [vmem:[%s218 + $0xf0] sm:$0xff]
        %v365 = vld [vmem:[%s218 + $0xf8] sm:$0xff]
        %s366 = scalar_lea.vmem [#allocation2], 32
        %367 = vst.msk [vmem:[%s366 + $0x8] sm:$0xff] %vm261, %v334
        %368 = vst.msk [vmem:[%s366 + $0x10] sm:$0xff] %vm261, %v335
        %369 = vst.msk [vmem:[%s366 + $0x28] sm:$0xff] %vm261, %v336
        %370 = vst.msk [vmem:[%s366 + $0x30] sm:$0xff] %vm261, %v337
        %371 = vst.msk [vmem:[%s366 + $0x48] sm:$0xff] %vm261, %v338
        %372 = vst.msk [vmem:[%s366 + $0x50] sm:$0xff] %vm261, %v339
        %373 = vst.msk [vmem:[%s366 + $0x68] sm:$0xff] %vm261, %v340
        %374 = vst.msk [vmem:[%s366 + $0x70] sm:$0xff] %vm261, %v341
        %375 = vst.msk [vmem:[%s366 + $0x88] sm:$0xff] %vm261, %v342
        %376 = vst.msk [vmem:[%s366 + $0x90] sm:$0xff] %vm261, %v343
        %377 = vst.msk [vmem:[%s366 + $0xa8] sm:$0xff] %vm261, %v344
        %378 = vst.msk [vmem:[%s366 + $0xb0] sm:$0xff] %vm261, %v345
        %379 = vst.msk [vmem:[%s366 + $0xc8] sm:$0xff] %vm261, %v346
        %380 = vst.msk [vmem:[%s366 + $0xd0] sm:$0xff] %vm261, %v347
        %381 = vst.msk [vmem:[%s366 + $0xe8] sm:$0xff] %vm261, %v348
        %382 = vst.msk [vmem:[%s366 + $0xf0] sm:$0xff] %vm261, %v349
        %383 = vst.msk [vmem:[%s366 + $0x108] sm:$0xff] %vm261, %v350
        %384 = vst.msk [vmem:[%s366 + $0x110] sm:$0xff] %vm261, %v351
        %385 = vst.msk [vmem:[%s366 + $0x128] sm:$0xff] %vm261, %v352
        %386 = vst.msk [vmem:[%s366 + $0x130] sm:$0xff] %vm261, %v353
        %387 = vst.msk [vmem:[%s366 + $0x148] sm:$0xff] %vm261, %v354
        %388 = vst.msk [vmem:[%s366 + $0x150] sm:$0xff] %vm261, %v355
        %389 = vst.msk [vmem:[%s366 + $0x168] sm:$0xff] %vm261, %v356
        %390 = vst.msk [vmem:[%s366 + $0x170] sm:$0xff] %vm261, %v357
        %391 = vst.msk [vmem:[%s366 + $0x188] sm:$0xff] %vm261, %v358
        %392 = vst.msk [vmem:[%s366 + $0x190] sm:$0xff] %vm261, %v359
        %393 = vst.msk [vmem:[%s366 + $0x1a8] sm:$0xff] %vm261, %v360
        %394 = vst.msk [vmem:[%s366 + $0x1b0] sm:$0xff] %vm261, %v361
        %395 = vst.msk [vmem:[%s366 + $0x1c8] sm:$0xff] %vm261, %v362
        %396 = vst.msk [vmem:[%s366 + $0x1d0] sm:$0xff] %vm261, %v363
        %397 = vst.msk [vmem:[%s366 + $0x1e8] sm:$0xff] %vm261, %v364
        %398 = vst.msk [vmem:[%s366 + $0x1f0] sm:$0xff] %vm261, %v365
        %v399 = vld [vmem:[#allocation2] sm:$0xff]
        %v400 = vld [vmem:[#allocation2 + $0x8] sm:$0xff]
        %v401 = vld [vmem:[#allocation2 + $0x10] sm:$0xff]
        %v402 = vld [vmem:[#allocation2 + $0x18] sm:$0xff]
        %v403 = vld [vmem:[#allocation2 + $0x20] sm:$0xff]
        %v404 = vld [vmem:[#allocation2 + $0x28] sm:$0xff]
        %v405 = vld [vmem:[#allocation2 + $0x30] sm:$0xff]
        %v406 = vld [vmem:[#allocation2 + $0x38] sm:$0xff]
        %v407 = vld [vmem:[#allocation2 + $0x40] sm:$0xff]
        %v408 = vld [vmem:[#allocation2 + $0x48] sm:$0xff]
        %v409 = vld [vmem:[#allocation2 + $0x50] sm:$0xff]
        %v410 = vld [vmem:[#allocation2 + $0x58] sm:$0xff]
        %v411 = vld [vmem:[#allocation2 + $0x60] sm:$0xff]
        %v412 = vld [vmem:[#allocation2 + $0x68] sm:$0xff]
        %v413 = vld [vmem:[#allocation2 + $0x70] sm:$0xff]
        %v414 = vld [vmem:[#allocation2 + $0x78] sm:$0xff]
        %v415 = vld [vmem:[#allocation2 + $0x80] sm:$0xff]
        %v416 = vld [vmem:[#allocation2 + $0x88] sm:$0xff]
        %v417 = vld [vmem:[#allocation2 + $0x90] sm:$0xff]
        %v418 = vld [vmem:[#allocation2 + $0x98] sm:$0xff]
        %v419 = vld [vmem:[#allocation2 + $0xa0] sm:$0xff]
        %v420 = vld [vmem:[#allocation2 + $0xa8] sm:$0xff]
        %v421 = vld [vmem:[#allocation2 + $0xb0] sm:$0xff]
        %v422 = vld [vmem:[#allocation2 + $0xb8] sm:$0xff]
        %v423 = vld [vmem:[#allocation2 + $0xc0] sm:$0xff]
        %v424 = vld [vmem:[#allocation2 + $0xc8] sm:$0xff]
        %v425 = vld [vmem:[#allocation2 + $0xd0] sm:$0xff]
        %v426 = vld [vmem:[#allocation2 + $0xd8] sm:$0xff]
        %v427 = vld [vmem:[#allocation2 + $0xe0] sm:$0xff]
        %v428 = vld [vmem:[#allocation2 + $0xe8] sm:$0xff]
        %v429 = vld [vmem:[#allocation2 + $0xf0] sm:$0xff]
        %v430 = vld [vmem:[#allocation2 + $0xf8] sm:$0xff]
        %v431 = vld [vmem:[#allocation2 + $0x100] sm:$0xff]
        %v432 = vld [vmem:[#allocation2 + $0x108] sm:$0xff]
        %v433 = vld [vmem:[#allocation2 + $0x110] sm:$0xff]
        %v434 = vld [vmem:[#allocation2 + $0x118] sm:$0xff]
        %v435 = vld [vmem:[#allocation2 + $0x120] sm:$0xff]
        %v436 = vld [vmem:[#allocation2 + $0x128] sm:$0xff]
        %v437 = vld [vmem:[#allocation2 + $0x130] sm:$0xff]
        %v438 = vld [vmem:[#allocation2 + $0x138] sm:$0xff]
        %v439 = vld [vmem:[#allocation2 + $0x140] sm:$0xff]
        %v440 = vld [vmem:[#allocation2 + $0x148] sm:$0xff]
        %v441 = vld [vmem:[#allocation2 + $0x150] sm:$0xff]
        %v442 = vld [vmem:[#allocation2 + $0x158] sm:$0xff]
        %v443 = vld [vmem:[#allocation2 + $0x160] sm:$0xff]
        %v444 = vld [vmem:[#allocation2 + $0x168] sm:$0xff]
        %v445 = vld [vmem:[#allocation2 + $0x170] sm:$0xff]
        %v446 = vld [vmem:[#allocation2 + $0x178] sm:$0xff]
        %v447 = vld [vmem:[#allocation2 + $0x180] sm:$0xff]
        %v448 = vld [vmem:[#allocation2 + $0x188] sm:$0xff]
        %v449 = vld [vmem:[#allocation2 + $0x190] sm:$0xff]
        %v450 = vld [vmem:[#allocation2 + $0x198] sm:$0xff]
        %v451 = vld [vmem:[#allocation2 + $0x1a0] sm:$0xff]
        %v452 = vld [vmem:[#allocation2 + $0x1a8] sm:$0xff]
        %v453 = vld [vmem:[#allocation2 + $0x1b0] sm:$0xff]
        %v454 = vld [vmem:[#allocation2 + $0x1b8] sm:$0xff]
        %v455 = vld [vmem:[#allocation2 + $0x1c0] sm:$0xff]
        %v456 = vld [vmem:[#allocation2 + $0x1c8] sm:$0xff]
        %v457 = vld [vmem:[#allocation2 + $0x1d0] sm:$0xff]
        %v458 = vld [vmem:[#allocation2 + $0x1d8] sm:$0xff]
        %v459 = vld [vmem:[#allocation2 + $0x1e0] sm:$0xff]
        %v460 = vld [vmem:[#allocation2 + $0x1e8] sm:$0xff]
        %v461 = vld [vmem:[#allocation2 + $0x1f0] sm:$0xff]
        %v462 = vld [vmem:[#allocation2 + $0x1f8] sm:$0xff]
        %v463 = vld [vmem:[#allocation2 + $0x200] sm:$0xff]
        %v464 = vld [vmem:[#allocation2 + $0x208] sm:$0xff]
        %v465 = vld [vmem:[#allocation2 + $0x210] sm:$0xff]
        %v466 = vld [vmem:[#allocation2 + $0x218] sm:$0xff]
        %v467 = vld [vmem:[#allocation2 + $0x220] sm:$0xff]
        %v468 = vld [vmem:[#allocation2 + $0x228] sm:$0xff]
        %v469 = vld [vmem:[#allocation2 + $0x230] sm:$0xff]
        %v470 = vld [vmem:[#allocation2 + $0x238] sm:$0xff]
        %vm519 = vcmask 1040384
        %v520 = vrot.slane %v399, 7
        %v521 = vrot.slane %v400, 7
        %v522 = vsel %vm519, %v520, %v521
        %v523 = vrot.slane %v401, 7
        %v524 = vsel %vm519, %v521, %v523
        %v525 = vrot.slane %v403, 7
        %v526 = vrot.slane %v404, 7
        %v527 = vsel %vm519, %v525, %v526
        %v528 = vrot.slane %v405, 7
        %v529 = vsel %vm519, %v526, %v528
        %v530 = vrot.slane %v407, 7
        %v531 = vrot.slane %v408, 7
        %v532 = vsel %vm519, %v530, %v531
        %v533 = vrot.slane %v409, 7
        %v534 = vsel %vm519, %v531, %v533
        %v535 = vrot.slane %v411, 7
        %v536 = vrot.slane %v412, 7
        %v537 = vsel %vm519, %v535, %v536
        %v538 = vrot.slane %v413, 7
        %v539 = vsel %vm519, %v536, %v538
        %v540 = vrot.slane %v415, 7
        %v541 = vrot.slane %v416, 7
        %v542 = vsel %vm519, %v540, %v541
        %v543 = vrot.slane %v417, 7
        %v544 = vsel %vm519, %v541, %v543
        %v545 = vrot.slane %v419, 7
        %v546 = vrot.slane %v420, 7
        %v547 = vsel %vm519, %v545, %v546
        %v548 = vrot.slane %v421, 7
        %v549 = vsel %vm519, %v546, %v548
        %v550 = vrot.slane %v423, 7
        %v551 = vrot.slane %v424, 7
        %v552 = vsel %vm519, %v550, %v551
        %v553 = vrot.slane %v425, 7
        %v554 = vsel %vm519, %v551, %v553
        %v555 = vrot.slane %v427, 7
        %v556 = vrot.slane %v428, 7
        %v557 = vsel %vm519, %v555, %v556
        %v558 = vrot.slane %v429, 7
        %v559 = vsel %vm519, %v556, %v558
        %v560 = vrot.slane %v431, 7
        %v561 = vrot.slane %v432, 7
        %v562 = vsel %vm519, %v560, %v561
        %v563 = vrot.slane %v433, 7
        %v564 = vsel %vm519, %v561, %v563
        %v565 = vrot.slane %v435, 7
        %v566 = vrot.slane %v436, 7
        %v567 = vsel %vm519, %v565, %v566
        %v568 = vrot.slane %v437, 7
        %v569 = vsel %vm519, %v566, %v568
        %v570 = vrot.slane %v439, 7
        %v571 = vrot.slane %v440, 7
        %v572 = vsel %vm519, %v570, %v571
        %v573 = vrot.slane %v441, 7
        %v574 = vsel %vm519, %v571, %v573
        %v575 = vrot.slane %v443, 7
        %v576 = vrot.slane %v444, 7
        %v577 = vsel %vm519, %v575, %v576
        %v578 = vrot.slane %v445, 7
        %v579 = vsel %vm519, %v576, %v578
        %v580 = vrot.slane %v447, 7
        %v581 = vrot.slane %v448, 7
        %v582 = vsel %vm519, %v580, %v581
        %v583 = vrot.slane %v449, 7
        %v584 = vsel %vm519, %v581, %v583
        %v585 = vrot.slane %v451, 7
        %v586 = vrot.slane %v452, 7
        %v587 = vsel %vm519, %v585, %v586
        %v588 = vrot.slane %v453, 7
        %v589 = vsel %vm519, %v586, %v588
        %v590 = vrot.slane %v455, 7
        %v591 = vrot.slane %v456, 7
        %v592 = vsel %vm519, %v590, %v591
        %v593 = vrot.slane %v457, 7
        %v594 = vsel %vm519, %v591, %v593
        %v595 = vrot.slane %v459, 7
        %v596 = vrot.slane %v460, 7
        %v597 = vsel %vm519, %v595, %v596
        %v598 = vrot.slane %v461, 7
        %v599 = vsel %vm519, %v596, %v598
        %v600 = vld [vmem:[%s227] sm:$0xff]
        %v601 = vld [vmem:[%s227 + $0x8] sm:$0xff]
        %v605 = vrot.slane %v463, 7
        %v606 = vrot.slane %v464, 7
        %v607 = vsel %vm519, %v605, %v606
        %v608 = vrot.slane %v465, 7
        %v609 = vsel %vm519, %v606, %v608
        %s610 = scalar_lea.vmem %s227, 48 [#allocation6]
        %v611 = vld [vmem:[%s610] sm:$0xff]
        %v612 = vld [vmem:[%s610 + $0x8] sm:$0xff]
        %v613 = vsel %vm261, %v527, 0
        %v615 = vsel %vm261, %v529, 0
        %v617 = vsel %vm261, %v532, 0
        %v619 = vsel %vm261, %v534, 0
        %v621 = vsel %vm261, %v537, 0
        %v623 = vsel %vm261, %v539, 0
        %v625 = vsel %vm261, %v542, 0
        %v627 = vsel %vm261, %v544, 0
        %v629 = vsel %vm261, %v547, 0
        %v631 = vsel %vm261, %v549, 0
        %v633 = vsel %vm261, %v552, 0
        %v635 = vsel %vm261, %v554, 0
        %v637 = vsel %vm261, %v557, 0
        %v639 = vsel %vm261, %v559, 0
        %v641 = vsel %vm261, %v562, 0
        %v643 = vsel %vm261, %v564, 0
        %v645 = vsel %vm261, %v567, 0
        %v647 = vsel %vm261, %v569, 0
        %v649 = vsel %vm261, %v572, 0
        %v651 = vsel %vm261, %v574, 0
        %v653 = vsel %vm261, %v577, 0
        %v655 = vsel %vm261, %v579, 0
        %v657 = vsel %vm261, %v582, 0
        %v659 = vsel %vm261, %v584, 0
        %v661 = vsel %vm261, %v587, 0
        %v663 = vsel %vm261, %v589, 0
        %v665 = vsel %vm261, %v592, 0
        %v667 = vsel %vm261, %v594, 0
        %v669 = vsel %vm261, %v597, 0
        %v671 = vsel %vm261, %v599, 0
        %v673 = vsel %vm261, %v607, 0
        %v675 = vsel %vm261, %v609, 0
        %677 = vmatprep.subr.mxu0 0.0
        %678 = vmatpush1.msra.mxu0 0.0
        %679 = vmatprep.subr.mxu0 0.0
        %680 = vmatpush1.msra.mxu0 0.0
        %681 = vmatprep.subr.mxu0 0.0
        %682 = vmatpush1.msra.mxu0 0.0
        %683 = vmatprep.subr.mxu0 0.0
        %684 = vmatpush1.msra.mxu0 0.0
        %685 = vmatprep.subr.mxu0 0.0
        %686 = vmatpush1.msra.mxu0 0.0
        %687 = vmatprep.subr.mxu0 0.0
        %688 = vmatpush1.msra.mxu0 0.0
        %689 = vmatprep.subr.mxu0 0.0
        %690 = vmatpush1.msra.mxu0 0.0
        %691 = vmatprep.subr.mxu0 0.0
        %692 = vmatpush1.msra.mxu0 0.0
        %693 = vmatprep.subr.mxu0 0.0
        %694 = vmatpush1.msra.mxu0 0.0
        %695 = vmatprep.subr.mxu0 0.0
        %696 = vmatpush1.msra.mxu0 0.0
        %697 = vmatprep.subr.mxu0 0.0
        %698 = vmatpush1.msra.mxu0 0.0
        %699 = vmatprep.subr.mxu0 0.0
        %700 = vmatpush1.msra.mxu0 0.0
        %701 = vmatprep.subr.mxu0 0.0
        %702 = vmatpush1.msra.mxu0 0.0
        %703 = vmatprep.subr.mxu0 0.0
        %704 = vmatpush1.msra.mxu0 0.0
        %705 = vmatprep.subr.mxu0 0.0
        %706 = vmatpush1.msra.mxu0 %v612
        %707 = vmatprep.subr.mxu0 0.0
        %708 = vmatpush1.msra.mxu0 %v611
        %709 = vmatprep.subr.mxu0 0.0
        %710 = vmatpush2.msra.mxu0 0.0
        %711 = vmatprep.subr.mxu0 0.0
        %712 = vmatpush2.msra.mxu0 0.0
        %713 = vmatprep.subr.mxu0 0.0
        %714 = vmatpush2.msra.mxu0 0.0
        %715 = vmatprep.subr.mxu0 0.0
        %716 = vmatpush2.msra.mxu0 0.0
        %717 = vmatprep.subr.mxu0 0.0
        %718 = vmatpush2.msra.mxu0 0.0
        %719 = vmatprep.subr.mxu0 0.0
        %720 = vmatpush2.msra.mxu0 0.0
        %721 = vmatprep.subr.mxu0 0.0
        %722 = vmatpush2.msra.mxu0 0.0
        %723 = vmatprep.subr.mxu0 0.0
        %724 = vmatpush2.msra.mxu0 0.0
        %725 = vmatprep.subr.mxu0 0.0
        %726 = vmatpush2.msra.mxu0 0.0
        %727 = vmatprep.subr.mxu0 0.0
        %728 = vmatpush2.msra.mxu0 0.0
        %729 = vmatprep.subr.mxu0 0.0
        %730 = vmatpush2.msra.mxu0 0.0
        %731 = vmatprep.subr.mxu0 0.0
        %732 = vmatpush2.msra.mxu0 0.0
        %733 = vmatprep.subr.mxu0 0.0
        %734 = vmatpush2.msra.mxu0 0.0
        %735 = vmatprep.subr.mxu0 0.0
        %736 = vmatpush2.msra.mxu0 0.0
        %737 = vmatprep.subr.mxu0 0.0
        %738 = vmatpush2.msra.mxu0 0.0
        %739 = vmatprep.subr.mxu0 0.0
        %740 = vmatpush2.msra.mxu0 0.0
        %741 = vmatprep.mubr.f32.mxu0 0.0
        %742 = vmatmul.mubr.f32.gmra.mxu0 %v613
        %v743 = vpop.f32.mrf.mxu0
        %v744 = vadd.f32 0.0, %v743
        %v745 = vpop.f32.mrf.mxu0
        %746 = vmatprep.mubr.f32.mxu0 0.0
        %747 = vmatmul.mubr.f32.gmra.mxu0 %v615
        %v748 = vpop.f32.mrf.mxu0
        %v749 = vadd.f32 0.0, %v748
        %v750 = vpop.f32.mrf.mxu0
        %751 = vmatprep.mubr.f32.mxu0 0.0
        %752 = vmatmul.mubr.f32.gmra.mxu0 %v617
        %v753 = vpop.f32.mrf.mxu0
        %v754 = vadd.f32 0.0, %v753
        %v755 = vpop.f32.mrf.mxu0
        %756 = vmatprep.mubr.f32.mxu0 0.0
        %757 = vmatmul.mubr.f32.gmra.mxu0 %v619
        %v758 = vpop.f32.mrf.mxu0
        %v759 = vadd.f32 0.0, %v758
        %v760 = vpop.f32.mrf.mxu0
        %761 = vmatprep.mubr.f32.mxu0 0.0
        %762 = vmatmul.mubr.f32.gmra.mxu0 %v621
        %v763 = vpop.f32.mrf.mxu0
        %v764 = vadd.f32 0.0, %v763
        %v765 = vpop.f32.mrf.mxu0
        %766 = vmatprep.mubr.f32.mxu0 0.0
        %767 = vmatmul.mubr.f32.gmra.mxu0 %v623
        %v768 = vpop.f32.mrf.mxu0
        %v769 = vadd.f32 0.0, %v768
        %v770 = vpop.f32.mrf.mxu0
        %771 = vmatprep.mubr.f32.mxu0 0.0
        %772 = vmatmul.mubr.f32.gmra.mxu0 %v625
        %v773 = vpop.f32.mrf.mxu0
        %v774 = vadd.f32 0.0, %v773
        %v775 = vpop.f32.mrf.mxu0
        %776 = vmatprep.mubr.f32.mxu0 0.0
        %777 = vmatmul.mubr.f32.gmra.mxu0 %v627
        %v778 = vpop.f32.mrf.mxu0
        %v779 = vadd.f32 0.0, %v778
        %v780 = vpop.f32.mrf.mxu0
        %781 = vmatprep.mubr.f32.mxu0 0.0
        %782 = vmatmul.mubr.f32.gmra.mxu0 %v629
        %v783 = vpop.f32.mrf.mxu0
        %v784 = vadd.f32 0.0, %v783
        %v785 = vpop.f32.mrf.mxu0
        %786 = vmatprep.mubr.f32.mxu0 0.0
        %787 = vmatmul.mubr.f32.gmra.mxu0 %v631
        %v788 = vpop.f32.mrf.mxu0
        %v789 = vadd.f32 0.0, %v788
        %v790 = vpop.f32.mrf.mxu0
        %791 = vmatprep.mubr.f32.mxu0 0.0
        %792 = vmatmul.mubr.f32.gmra.mxu0 %v633
        %v793 = vpop.f32.mrf.mxu0
        %v794 = vadd.f32 0.0, %v793
        %v795 = vpop.f32.mrf.mxu0
        %796 = vmatprep.mubr.f32.mxu0 0.0
        %797 = vmatmul.mubr.f32.gmra.mxu0 %v635
        %v798 = vpop.f32.mrf.mxu0
        %v799 = vadd.f32 0.0, %v798
        %v800 = vpop.f32.mrf.mxu0
        %801 = vmatprep.mubr.f32.mxu0 0.0
        %802 = vmatmul.mubr.f32.gmra.mxu0 %v637
        %v803 = vpop.f32.mrf.mxu0
        %v804 = vadd.f32 0.0, %v803
        %v805 = vpop.f32.mrf.mxu0
        %806 = vmatprep.mubr.f32.mxu0 0.0
        %807 = vmatmul.mubr.f32.gmra.mxu0 %v639
        %v808 = vpop.f32.mrf.mxu0
        %v809 = vadd.f32 0.0, %v808
        %v810 = vpop.f32.mrf.mxu0
        %811 = vmatprep.mubr.f32.mxu0 0.0
        %812 = vmatmul.mubr.f32.gmra.mxu0 %v641
        %v813 = vpop.f32.mrf.mxu0
        %v814 = vadd.f32 0.0, %v813
        %v815 = vpop.f32.mrf.mxu0
        %816 = vmatprep.mubr.f32.mxu0 0.0
        %817 = vmatmul.mubr.f32.gmra.mxu0 %v643
        %v818 = vpop.f32.mrf.mxu0
        %v819 = vadd.f32 0.0, %v818
        %v820 = vpop.f32.mrf.mxu0
        %821 = vmatprep.mubr.f32.mxu0 0.0
        %822 = vmatmul.mubr.f32.gmra.mxu0 %v645
        %v823 = vpop.f32.mrf.mxu0
        %v824 = vadd.f32 0.0, %v823
        %v825 = vpop.f32.mrf.mxu0
        %826 = vmatprep.mubr.f32.mxu0 0.0
        %827 = vmatmul.mubr.f32.gmra.mxu0 %v647
        %v828 = vpop.f32.mrf.mxu0
        %v829 = vadd.f32 0.0, %v828
        %v830 = vpop.f32.mrf.mxu0
        %831 = vmatprep.mubr.f32.mxu0 0.0
        %832 = vmatmul.mubr.f32.gmra.mxu0 %v649
        %v833 = vpop.f32.mrf.mxu0
        %v834 = vadd.f32 0.0, %v833
        %v835 = vpop.f32.mrf.mxu0
        %836 = vmatprep.mubr.f32.mxu0 0.0
        %837 = vmatmul.mubr.f32.gmra.mxu0 %v651
        %v838 = vpop.f32.mrf.mxu0
        %v839 = vadd.f32 0.0, %v838
        %v840 = vpop.f32.mrf.mxu0
        %841 = vmatprep.mubr.f32.mxu0 0.0
        %842 = vmatmul.mubr.f32.gmra.mxu0 %v653
        %v843 = vpop.f32.mrf.mxu0
        %v844 = vadd.f32 0.0, %v843
        %v845 = vpop.f32.mrf.mxu0
        %846 = vmatprep.mubr.f32.mxu0 0.0
        %847 = vmatmul.mubr.f32.gmra.mxu0 %v655
        %v848 = vpop.f32.mrf.mxu0
        %v849 = vadd.f32 0.0, %v848
        %v850 = vpop.f32.mrf.mxu0
        %851 = vmatprep.mubr.f32.mxu0 0.0
        %852 = vmatmul.mubr.f32.gmra.mxu0 %v657
        %v853 = vpop.f32.mrf.mxu0
        %v854 = vadd.f32 0.0, %v853
        %v855 = vpop.f32.mrf.mxu0
        %856 = vmatprep.mubr.f32.mxu0 0.0
        %857 = vmatmul.mubr.f32.gmra.mxu0 %v659
        %v858 = vpop.f32.mrf.mxu0
        %v859 = vadd.f32 0.0, %v858
        %v860 = vpop.f32.mrf.mxu0
        %861 = vmatprep.mubr.f32.mxu0 0.0
        %862 = vmatmul.mubr.f32.gmra.mxu0 %v661
        %v863 = vpop.f32.mrf.mxu0
        %v864 = vadd.f32 0.0, %v863
        %v865 = vpop.f32.mrf.mxu0
        %866 = vmatprep.mubr.f32.mxu0 0.0
        %867 = vmatmul.mubr.f32.gmra.mxu0 %v663
        %v868 = vpop.f32.mrf.mxu0
        %v869 = vadd.f32 0.0, %v868
        %v870 = vpop.f32.mrf.mxu0
        %871 = vmatprep.mubr.f32.mxu0 0.0
        %872 = vmatmul.mubr.f32.gmra.mxu0 %v665
        %v873 = vpop.f32.mrf.mxu0
        %v874 = vadd.f32 0.0, %v873
        %v875 = vpop.f32.mrf.mxu0
        %876 = vmatprep.mubr.f32.mxu0 0.0
        %877 = vmatmul.mubr.f32.gmra.mxu0 %v667
        %v878 = vpop.f32.mrf.mxu0
        %v879 = vadd.f32 0.0, %v878
        %v880 = vpop.f32.mrf.mxu0
        %881 = vmatprep.mubr.f32.mxu0 0.0
        %882 = vmatmul.mubr.f32.gmra.mxu0 %v669
        %v883 = vpop.f32.mrf.mxu0
        %v884 = vadd.f32 0.0, %v883
        %v885 = vpop.f32.mrf.mxu0
        %886 = vmatprep.mubr.f32.mxu0 0.0
        %887 = vmatmul.mubr.f32.gmra.mxu0 %v671
        %v888 = vpop.f32.mrf.mxu0
        %v889 = vadd.f32 0.0, %v888
        %v890 = vpop.f32.mrf.mxu0
        %891 = vmatprep.mubr.f32.mxu0 0.0
        %892 = vmatmul.mubr.f32.gmra.mxu0 %v673
        %v893 = vpop.f32.mrf.mxu0
        %v894 = vadd.f32 0.0, %v893
        %v895 = vpop.f32.mrf.mxu0
        %896 = vmatprep.mubr.f32.mxu0 0.0
        %897 = vmatmul.mubr.f32.gmra.mxu0 %v675
        %v898 = vpop.f32.mrf.mxu0
        %v899 = vadd.f32 0.0, %v898
        %v900 = vpop.f32.mrf.mxu0
        %901 = vdwg.mxu0
        %v902 = vsel %vm261, %v522, 0
        %v904 = vsel %vm261, %v524, 0
        %906 = vmatprep.subr.mxu0 0.0
        %907 = vmatpush1.msra.mxu0 0.0
        %908 = vmatprep.subr.mxu0 0.0
        %909 = vmatpush1.msra.mxu0 0.0
        %910 = vmatprep.subr.mxu0 0.0
        %911 = vmatpush1.msra.mxu0 0.0
        %912 = vmatprep.subr.mxu0 0.0
        %913 = vmatpush1.msra.mxu0 0.0
        %914 = vmatprep.subr.mxu0 0.0
        %915 = vmatpush1.msra.mxu0 0.0
        %916 = vmatprep.subr.mxu0 0.0
        %917 = vmatpush1.msra.mxu0 0.0
        %918 = vmatprep.subr.mxu0 0.0
        %919 = vmatpush1.msra.mxu0 0.0
        %920 = vmatprep.subr.mxu0 0.0
        %921 = vmatpush1.msra.mxu0 0.0
        %922 = vmatprep.subr.mxu0 0.0
        %923 = vmatpush1.msra.mxu0 0.0
        %924 = vmatprep.subr.mxu0 0.0
        %925 = vmatpush1.msra.mxu0 0.0
        %926 = vmatprep.subr.mxu0 0.0
        %927 = vmatpush1.msra.mxu0 0.0
        %928 = vmatprep.subr.mxu0 0.0
        %929 = vmatpush1.msra.mxu0 0.0
        %930 = vmatprep.subr.mxu0 0.0
        %931 = vmatpush1.msra.mxu0 0.0
        %932 = vmatprep.subr.mxu0 0.0
        %933 = vmatpush1.msra.mxu0 0.0
        %934 = vmatprep.subr.mxu0 0.0
        %935 = vmatpush1.msra.mxu0 %v601
        %936 = vmatprep.subr.mxu0 0.0
        %937 = vmatpush1.msra.mxu0 %v600
        %938 = vmatprep.subr.mxu0 0.0
        %939 = vmatpush2.msra.mxu0 0.0
        %940 = vmatprep.subr.mxu0 0.0
        %941 = vmatpush2.msra.mxu0 0.0
        %942 = vmatprep.subr.mxu0 0.0
        %943 = vmatpush2.msra.mxu0 0.0
        %944 = vmatprep.subr.mxu0 0.0
        %945 = vmatpush2.msra.mxu0 0.0
        %946 = vmatprep.subr.mxu0 0.0
        %947 = vmatpush2.msra.mxu0 0.0
        %948 = vmatprep.subr.mxu0 0.0
        %949 = vmatpush2.msra.mxu0 0.0
        %950 = vmatprep.subr.mxu0 0.0
        %951 = vmatpush2.msra.mxu0 0.0
        %952 = vmatprep.subr.mxu0 0.0
        %953 = vmatpush2.msra.mxu0 0.0
        %954 = vmatprep.subr.mxu0 0.0
        %955 = vmatpush2.msra.mxu0 0.0
        %956 = vmatprep.subr.mxu0 0.0
        %957 = vmatpush2.msra.mxu0 0.0
        %958 = vmatprep.subr.mxu0 0.0
        %959 = vmatpush2.msra.mxu0 0.0
        %960 = vmatprep.subr.mxu0 0.0
        %961 = vmatpush2.msra.mxu0 0.0
        %962 = vmatprep.subr.mxu0 0.0
        %963 = vmatpush2.msra.mxu0 0.0
        %964 = vmatprep.subr.mxu0 0.0
        %965 = vmatpush2.msra.mxu0 0.0
        %966 = vmatprep.subr.mxu0 0.0
        %967 = vmatpush2.msra.mxu0 0.0
        %968 = vmatprep.subr.mxu0 0.0
        %969 = vmatpush2.msra.mxu0 0.0
        %970 = vmatprep.mubr.f32.mxu0 0.0
        %971 = vmatmul.mubr.f32.gmra.mxu0 %v902
        %v972 = vpop.f32.mrf.mxu0
        %v973 = vadd.f32 %v744, %v972
        %v974 = vpop.f32.mrf.mxu0
        %975 = vmatprep.mubr.f32.mxu0 0.0
        %976 = vmatmul.mubr.f32.gmra.mxu0 %v904
        %v977 = vpop.f32.mrf.mxu0
        %v978 = vadd.f32 %v749, %v977
        %v979 = vpop.f32.mrf.mxu0
        %980 = vmatprep.mubr.f32.mxu0 0.0
        %981 = vmatmul.mubr.f32.gmra.mxu0 %v613
        %v982 = vpop.f32.mrf.mxu0
        %v983 = vadd.f32 %v754, %v982
        %v984 = vpop.f32.mrf.mxu0
        %985 = vmatprep.mubr.f32.mxu0 0.0
        %986 = vmatmul.mubr.f32.gmra.mxu0 %v615
        %v987 = vpop.f32.mrf.mxu0
        %v988 = vadd.f32 %v759, %v987
        %v989 = vpop.f32.mrf.mxu0
        %990 = vmatprep.mubr.f32.mxu0 0.0
        %991 = vmatmul.mubr.f32.gmra.mxu0 %v617
        %v992 = vpop.f32.mrf.mxu0
        %v993 = vadd.f32 %v764, %v992
        %v994 = vpop.f32.mrf.mxu0
        %995 = vmatprep.mubr.f32.mxu0 0.0
        %996 = vmatmul.mubr.f32.gmra.mxu0 %v619
        %v997 = vpop.f32.mrf.mxu0
        %v998 = vadd.f32 %v769, %v997
        %v999 = vpop.f32.mrf.mxu0
        %1000 = vmatprep.mubr.f32.mxu0 0.0
        %1001 = vmatmul.mubr.f32.gmra.mxu0 %v621
        %v1002 = vpop.f32.mrf.mxu0
        %v1003 = vadd.f32 %v774, %v1002
        %v1004 = vpop.f32.mrf.mxu0
        %1005 = vmatprep.mubr.f32.mxu0 0.0
        %1006 = vmatmul.mubr.f32.gmra.mxu0 %v623
        %v1007 = vpop.f32.mrf.mxu0
        %v1008 = vadd.f32 %v779, %v1007
        %v1009 = vpop.f32.mrf.mxu0
        %1010 = vmatprep.mubr.f32.mxu0 0.0
        %1011 = vmatmul.mubr.f32.gmra.mxu0 %v625
        %v1012 = vpop.f32.mrf.mxu0
        %v1013 = vadd.f32 %v784, %v1012
        %v1014 = vpop.f32.mrf.mxu0
        %1015 = vmatprep.mubr.f32.mxu0 0.0
        %1016 = vmatmul.mubr.f32.gmra.mxu0 %v627
        %v1017 = vpop.f32.mrf.mxu0
        %v1018 = vadd.f32 %v789, %v1017
        %v1019 = vpop.f32.mrf.mxu0
        %1020 = vmatprep.mubr.f32.mxu0 0.0
        %1021 = vmatmul.mubr.f32.gmra.mxu0 %v629
        %v1022 = vpop.f32.mrf.mxu0
        %v1023 = vadd.f32 %v794, %v1022
        %v1024 = vpop.f32.mrf.mxu0
        %1025 = vmatprep.mubr.f32.mxu0 0.0
        %1026 = vmatmul.mubr.f32.gmra.mxu0 %v631
        %v1027 = vpop.f32.mrf.mxu0
        %v1028 = vadd.f32 %v799, %v1027
        %v1029 = vpop.f32.mrf.mxu0
        %1030 = vmatprep.mubr.f32.mxu0 0.0
        %1031 = vmatmul.mubr.f32.gmra.mxu0 %v633
        %v1032 = vpop.f32.mrf.mxu0
        %v1033 = vadd.f32 %v804, %v1032
        %v1034 = vpop.f32.mrf.mxu0
        %1035 = vmatprep.mubr.f32.mxu0 0.0
        %1036 = vmatmul.mubr.f32.gmra.mxu0 %v635
        %v1037 = vpop.f32.mrf.mxu0
        %v1038 = vadd.f32 %v809, %v1037
        %v1039 = vpop.f32.mrf.mxu0
        %1040 = vmatprep.mubr.f32.mxu0 0.0
        %1041 = vmatmul.mubr.f32.gmra.mxu0 %v637
        %v1042 = vpop.f32.mrf.mxu0
        %v1043 = vadd.f32 %v814, %v1042
        %v1044 = vpop.f32.mrf.mxu0
        %1045 = vmatprep.mubr.f32.mxu0 0.0
        %1046 = vmatmul.mubr.f32.gmra.mxu0 %v639
        %v1047 = vpop.f32.mrf.mxu0
        %v1048 = vadd.f32 %v819, %v1047
        %v1049 = vpop.f32.mrf.mxu0
        %1050 = vmatprep.mubr.f32.mxu0 0.0
        %1051 = vmatmul.mubr.f32.gmra.mxu0 %v641
        %v1052 = vpop.f32.mrf.mxu0
        %v1053 = vadd.f32 %v824, %v1052
        %v1054 = vpop.f32.mrf.mxu0
        %1055 = vmatprep.mubr.f32.mxu0 0.0
        %1056 = vmatmul.mubr.f32.gmra.mxu0 %v643
        %v1057 = vpop.f32.mrf.mxu0
        %v1058 = vadd.f32 %v829, %v1057
        %v1059 = vpop.f32.mrf.mxu0
        %1060 = vmatprep.mubr.f32.mxu0 0.0
        %1061 = vmatmul.mubr.f32.gmra.mxu0 %v645
        %v1062 = vpop.f32.mrf.mxu0
        %v1063 = vadd.f32 %v834, %v1062
        %v1064 = vpop.f32.mrf.mxu0
        %1065 = vmatprep.mubr.f32.mxu0 0.0
        %1066 = vmatmul.mubr.f32.gmra.mxu0 %v647
        %v1067 = vpop.f32.mrf.mxu0
        %v1068 = vadd.f32 %v839, %v1067
        %v1069 = vpop.f32.mrf.mxu0
        %1070 = vmatprep.mubr.f32.mxu0 0.0
        %1071 = vmatmul.mubr.f32.gmra.mxu0 %v649
        %v1072 = vpop.f32.mrf.mxu0
        %v1073 = vadd.f32 %v844, %v1072
        %v1074 = vpop.f32.mrf.mxu0
        %1075 = vmatprep.mubr.f32.mxu0 0.0
        %1076 = vmatmul.mubr.f32.gmra.mxu0 %v651
        %v1077 = vpop.f32.mrf.mxu0
        %v1078 = vadd.f32 %v849, %v1077
        %v1079 = vpop.f32.mrf.mxu0
        %1080 = vmatprep.mubr.f32.mxu0 0.0
        %1081 = vmatmul.mubr.f32.gmra.mxu0 %v653
        %v1082 = vpop.f32.mrf.mxu0
        %v1083 = vadd.f32 %v854, %v1082
        %v1084 = vpop.f32.mrf.mxu0
        %1085 = vmatprep.mubr.f32.mxu0 0.0
        %1086 = vmatmul.mubr.f32.gmra.mxu0 %v655
        %v1087 = vpop.f32.mrf.mxu0
        %v1088 = vadd.f32 %v859, %v1087
        %v1089 = vpop.f32.mrf.mxu0
        %1090 = vmatprep.mubr.f32.mxu0 0.0
        %1091 = vmatmul.mubr.f32.gmra.mxu0 %v657
        %v1092 = vpop.f32.mrf.mxu0
        %v1093 = vadd.f32 %v864, %v1092
        %v1094 = vpop.f32.mrf.mxu0
        %1095 = vmatprep.mubr.f32.mxu0 0.0
        %1096 = vmatmul.mubr.f32.gmra.mxu0 %v659
        %v1097 = vpop.f32.mrf.mxu0
        %v1098 = vadd.f32 %v869, %v1097
        %v1099 = vpop.f32.mrf.mxu0
        %1100 = vmatprep.mubr.f32.mxu0 0.0
        %1101 = vmatmul.mubr.f32.gmra.mxu0 %v661
        %v1102 = vpop.f32.mrf.mxu0
        %v1103 = vadd.f32 %v874, %v1102
        %v1104 = vpop.f32.mrf.mxu0
        %1105 = vmatprep.mubr.f32.mxu0 0.0
        %1106 = vmatmul.mubr.f32.gmra.mxu0 %v663
        %v1107 = vpop.f32.mrf.mxu0
        %v1108 = vadd.f32 %v879, %v1107
        %v1109 = vpop.f32.mrf.mxu0
        %1110 = vmatprep.mubr.f32.mxu0 0.0
        %1111 = vmatmul.mubr.f32.gmra.mxu0 %v665
        %v1112 = vpop.f32.mrf.mxu0
        %v1113 = vadd.f32 %v884, %v1112
        %v1114 = vpop.f32.mrf.mxu0
        %1115 = vmatprep.mubr.f32.mxu0 0.0
        %1116 = vmatmul.mubr.f32.gmra.mxu0 %v667
        %v1117 = vpop.f32.mrf.mxu0
        %v1118 = vadd.f32 %v889, %v1117
        %v1119 = vpop.f32.mrf.mxu0
        %1120 = vmatprep.mubr.f32.mxu0 0.0
        %1121 = vmatmul.mubr.f32.gmra.mxu0 %v669
        %v1122 = vpop.f32.mrf.mxu0
        %v1123 = vadd.f32 %v894, %v1122
        %v1124 = vpop.f32.mrf.mxu0
        %1125 = vmatprep.mubr.f32.mxu0 0.0
        %1126 = vmatmul.mubr.f32.gmra.mxu0 %v671
        %v1127 = vpop.f32.mrf.mxu0
        %v1128 = vadd.f32 %v899, %v1127
        %v1129 = vpop.f32.mrf.mxu0
        %1130 = vdwg.mxu0
        %v1134 = vrot.slane %v467, 7
        %v1135 = vrot.slane %v468, 7
        %v1136 = vsel %vm519, %v1134, %v1135
        %v1137 = vrot.slane %v469, 7
        %v1138 = vsel %vm519, %v1135, %v1137
        %s1139 = scalar_lea.vmem %s227, 96 [#allocation6]
        %v1140 = vld [vmem:[%s1139] sm:$0xff]
        %v1141 = vld [vmem:[%s1139 + $0x8] sm:$0xff]
        %v1142 = vsel %vm261, %v1136, 0
        %v1144 = vsel %vm261, %v1138, 0
        %1146 = vmatprep.subr.mxu0 0.0
        %1147 = vmatpush1.msra.mxu0 0.0
        %1148 = vmatprep.subr.mxu0 0.0
        %1149 = vmatpush1.msra.mxu0 0.0
        %1150 = vmatprep.subr.mxu0 0.0
        %1151 = vmatpush1.msra.mxu0 0.0
        %1152 = vmatprep.subr.mxu0 0.0
        %1153 = vmatpush1.msra.mxu0 0.0
        %1154 = vmatprep.subr.mxu0 0.0
        %1155 = vmatpush1.msra.mxu0 0.0
        %1156 = vmatprep.subr.mxu0 0.0
        %1157 = vmatpush1.msra.mxu0 0.0
        %1158 = vmatprep.subr.mxu0 0.0
        %1159 = vmatpush1.msra.mxu0 0.0
        %1160 = vmatprep.subr.mxu0 0.0
        %1161 = vmatpush1.msra.mxu0 0.0
        %1162 = vmatprep.subr.mxu0 0.0
        %1163 = vmatpush1.msra.mxu0 0.0
        %1164 = vmatprep.subr.mxu0 0.0
        %1165 = vmatpush1.msra.mxu0 0.0
        %1166 = vmatprep.subr.mxu0 0.0
        %1167 = vmatpush1.msra.mxu0 0.0
        %1168 = vmatprep.subr.mxu0 0.0
        %1169 = vmatpush1.msra.mxu0 0.0
        %1170 = vmatprep.subr.mxu0 0.0
        %1171 = vmatpush1.msra.mxu0 0.0
        %1172 = vmatprep.subr.mxu0 0.0
        %1173 = vmatpush1.msra.mxu0 0.0
        %1174 = vmatprep.subr.mxu0 0.0
        %1175 = vmatpush1.msra.mxu0 %v1141
        %1176 = vmatprep.subr.mxu0 0.0
        %1177 = vmatpush1.msra.mxu0 %v1140
        %1178 = vmatprep.subr.mxu0 0.0
        %1179 = vmatpush2.msra.mxu0 0.0
        %1180 = vmatprep.subr.mxu0 0.0
        %1181 = vmatpush2.msra.mxu0 0.0
        %1182 = vmatprep.subr.mxu0 0.0
        %1183 = vmatpush2.msra.mxu0 0.0
        %1184 = vmatprep.subr.mxu0 0.0
        %1185 = vmatpush2.msra.mxu0 0.0
        %1186 = vmatprep.subr.mxu0 0.0
        %1187 = vmatpush2.msra.mxu0 0.0
        %1188 = vmatprep.subr.mxu0 0.0
        %1189 = vmatpush2.msra.mxu0 0.0
        %1190 = vmatprep.subr.mxu0 0.0
        %1191 = vmatpush2.msra.mxu0 0.0
        %1192 = vmatprep.subr.mxu0 0.0
        %1193 = vmatpush2.msra.mxu0 0.0
        %1194 = vmatprep.subr.mxu0 0.0
        %1195 = vmatpush2.msra.mxu0 0.0
        %1196 = vmatprep.subr.mxu0 0.0
        %1197 = vmatpush2.msra.mxu0 0.0
        %1198 = vmatprep.subr.mxu0 0.0
        %1199 = vmatpush2.msra.mxu0 0.0
        %1200 = vmatprep.subr.mxu0 0.0
        %1201 = vmatpush2.msra.mxu0 0.0
        %1202 = vmatprep.subr.mxu0 0.0
        %1203 = vmatpush2.msra.mxu0 0.0
        %1204 = vmatprep.subr.mxu0 0.0
        %1205 = vmatpush2.msra.mxu0 0.0
        %1206 = vmatprep.subr.mxu0 0.0
        %1207 = vmatpush2.msra.mxu0 0.0
        %1208 = vmatprep.subr.mxu0 0.0
        %1209 = vmatpush2.msra.mxu0 0.0
        %1210 = vmatprep.mubr.f32.mxu0 0.0
        %1211 = vmatmul.mubr.f32.gmra.mxu0 %v617
        %v1212 = vpop.f32.mrf.mxu0
        %v1213 = vadd.f32 0.0, %v1212
        %v1214 = vpop.f32.mrf.mxu0
        %1215 = vmatprep.mubr.f32.mxu0 0.0
        %1216 = vmatmul.mubr.f32.gmra.mxu0 %v619
        %v1217 = vpop.f32.mrf.mxu0
        %v1218 = vadd.f32 0.0, %v1217
        %v1219 = vpop.f32.mrf.mxu0
        %1220 = vmatprep.mubr.f32.mxu0 0.0
        %1221 = vmatmul.mubr.f32.gmra.mxu0 %v621
        %v1222 = vpop.f32.mrf.mxu0
        %v1223 = vadd.f32 0.0, %v1222
        %v1224 = vpop.f32.mrf.mxu0
        %1225 = vmatprep.mubr.f32.mxu0 0.0
        %1226 = vmatmul.mubr.f32.gmra.mxu0 %v623
        %v1227 = vpop.f32.mrf.mxu0
        %v1228 = vadd.f32 0.0, %v1227
        %v1229 = vpop.f32.mrf.mxu0
        %1230 = vmatprep.mubr.f32.mxu0 0.0
        %1231 = vmatmul.mubr.f32.gmra.mxu0 %v625
        %v1232 = vpop.f32.mrf.mxu0
        %v1233 = vadd.f32 0.0, %v1232
        %v1234 = vpop.f32.mrf.mxu0
        %1235 = vmatprep.mubr.f32.mxu0 0.0
        %1236 = vmatmul.mubr.f32.gmra.mxu0 %v627
        %v1237 = vpop.f32.mrf.mxu0
        %v1238 = vadd.f32 0.0, %v1237
        %v1239 = vpop.f32.mrf.mxu0
        %1240 = vmatprep.mubr.f32.mxu0 0.0
        %1241 = vmatmul.mubr.f32.gmra.mxu0 %v629
        %v1242 = vpop.f32.mrf.mxu0
        %v1243 = vadd.f32 0.0, %v1242
        %v1244 = vpop.f32.mrf.mxu0
        %1245 = vmatprep.mubr.f32.mxu0 0.0
        %1246 = vmatmul.mubr.f32.gmra.mxu0 %v631
        %v1247 = vpop.f32.mrf.mxu0
        %v1248 = vadd.f32 0.0, %v1247
        %v1249 = vpop.f32.mrf.mxu0
        %1250 = vmatprep.mubr.f32.mxu0 0.0
        %1251 = vmatmul.mubr.f32.gmra.mxu0 %v633
        %v1252 = vpop.f32.mrf.mxu0
        %v1253 = vadd.f32 0.0, %v1252
        %v1254 = vpop.f32.mrf.mxu0
        %1255 = vmatprep.mubr.f32.mxu0 0.0
        %1256 = vmatmul.mubr.f32.gmra.mxu0 %v635
        %v1257 = vpop.f32.mrf.mxu0
        %v1258 = vadd.f32 0.0, %v1257
        %v1259 = vpop.f32.mrf.mxu0
        %1260 = vmatprep.mubr.f32.mxu0 0.0
        %1261 = vmatmul.mubr.f32.gmra.mxu0 %v637
        %v1262 = vpop.f32.mrf.mxu0
        %v1263 = vadd.f32 0.0, %v1262
        %v1264 = vpop.f32.mrf.mxu0
        %1265 = vmatprep.mubr.f32.mxu0 0.0
        %1266 = vmatmul.mubr.f32.gmra.mxu0 %v639
        %v1267 = vpop.f32.mrf.mxu0
        %v1268 = vadd.f32 0.0, %v1267
        %v1269 = vpop.f32.mrf.mxu0
        %1270 = vmatprep.mubr.f32.mxu0 0.0
        %1271 = vmatmul.mubr.f32.gmra.mxu0 %v641
        %v1272 = vpop.f32.mrf.mxu0
        %v1273 = vadd.f32 0.0, %v1272
        %v1274 = vpop.f32.mrf.mxu0
        %1275 = vmatprep.mubr.f32.mxu0 0.0
        %1276 = vmatmul.mubr.f32.gmra.mxu0 %v643
        %v1277 = vpop.f32.mrf.mxu0
        %v1278 = vadd.f32 0.0, %v1277
        %v1279 = vpop.f32.mrf.mxu0
        %1280 = vmatprep.mubr.f32.mxu0 0.0
        %1281 = vmatmul.mubr.f32.gmra.mxu0 %v645
        %v1282 = vpop.f32.mrf.mxu0
        %v1283 = vadd.f32 0.0, %v1282
        %v1284 = vpop.f32.mrf.mxu0
        %1285 = vmatprep.mubr.f32.mxu0 0.0
        %1286 = vmatmul.mubr.f32.gmra.mxu0 %v647
        %v1287 = vpop.f32.mrf.mxu0
        %v1288 = vadd.f32 0.0, %v1287
        %v1289 = vpop.f32.mrf.mxu0
        %1290 = vmatprep.mubr.f32.mxu0 0.0
        %1291 = vmatmul.mubr.f32.gmra.mxu0 %v649
        %v1292 = vpop.f32.mrf.mxu0
        %v1293 = vadd.f32 0.0, %v1292
        %v1294 = vpop.f32.mrf.mxu0
        %1295 = vmatprep.mubr.f32.mxu0 0.0
        %1296 = vmatmul.mubr.f32.gmra.mxu0 %v651
        %v1297 = vpop.f32.mrf.mxu0
        %v1298 = vadd.f32 0.0, %v1297
        %v1299 = vpop.f32.mrf.mxu0
        %1300 = vmatprep.mubr.f32.mxu0 0.0
        %1301 = vmatmul.mubr.f32.gmra.mxu0 %v653
        %v1302 = vpop.f32.mrf.mxu0
        %v1303 = vadd.f32 0.0, %v1302
        %v1304 = vpop.f32.mrf.mxu0
        %1305 = vmatprep.mubr.f32.mxu0 0.0
        %1306 = vmatmul.mubr.f32.gmra.mxu0 %v655
        %v1307 = vpop.f32.mrf.mxu0
        %v1308 = vadd.f32 0.0, %v1307
        %v1309 = vpop.f32.mrf.mxu0
        %1310 = vmatprep.mubr.f32.mxu0 0.0
        %1311 = vmatmul.mubr.f32.gmra.mxu0 %v657
        %v1312 = vpop.f32.mrf.mxu0
        %v1313 = vadd.f32 0.0, %v1312
        %v1314 = vpop.f32.mrf.mxu0
        %1315 = vmatprep.mubr.f32.mxu0 0.0
        %1316 = vmatmul.mubr.f32.gmra.mxu0 %v659
        %v1317 = vpop.f32.mrf.mxu0
        %v1318 = vadd.f32 0.0, %v1317
        %v1319 = vpop.f32.mrf.mxu0
        %1320 = vmatprep.mubr.f32.mxu0 0.0
        %1321 = vmatmul.mubr.f32.gmra.mxu0 %v661
        %v1322 = vpop.f32.mrf.mxu0
        %v1323 = vadd.f32 0.0, %v1322
        %v1324 = vpop.f32.mrf.mxu0
        %1325 = vmatprep.mubr.f32.mxu0 0.0
        %1326 = vmatmul.mubr.f32.gmra.mxu0 %v663
        %v1327 = vpop.f32.mrf.mxu0
        %v1328 = vadd.f32 0.0, %v1327
        %v1329 = vpop.f32.mrf.mxu0
        %1330 = vmatprep.mubr.f32.mxu0 0.0
        %1331 = vmatmul.mubr.f32.gmra.mxu0 %v665
        %v1332 = vpop.f32.mrf.mxu0
        %v1333 = vadd.f32 0.0, %v1332
        %v1334 = vpop.f32.mrf.mxu0
        %1335 = vmatprep.mubr.f32.mxu0 0.0
        %1336 = vmatmul.mubr.f32.gmra.mxu0 %v667
        %v1337 = vpop.f32.mrf.mxu0
        %v1338 = vadd.f32 0.0, %v1337
        %v1339 = vpop.f32.mrf.mxu0
        %1340 = vmatprep.mubr.f32.mxu0 0.0
        %1341 = vmatmul.mubr.f32.gmra.mxu0 %v669
        %v1342 = vpop.f32.mrf.mxu0
        %v1343 = vadd.f32 0.0, %v1342
        %v1344 = vpop.f32.mrf.mxu0
        %1345 = vmatprep.mubr.f32.mxu0 0.0
        %1346 = vmatmul.mubr.f32.gmra.mxu0 %v671
        %v1347 = vpop.f32.mrf.mxu0
        %v1348 = vadd.f32 0.0, %v1347
        %v1349 = vpop.f32.mrf.mxu0
        %1350 = vmatprep.mubr.f32.mxu0 0.0
        %1351 = vmatmul.mubr.f32.gmra.mxu0 %v673
        %v1352 = vpop.f32.mrf.mxu0
        %v1353 = vadd.f32 0.0, %v1352
        %v1354 = vpop.f32.mrf.mxu0
        %1355 = vmatprep.mubr.f32.mxu0 0.0
        %1356 = vmatmul.mubr.f32.gmra.mxu0 %v675
        %v1357 = vpop.f32.mrf.mxu0
        %v1358 = vadd.f32 0.0, %v1357
        %v1359 = vpop.f32.mrf.mxu0
        %1360 = vmatprep.mubr.f32.mxu0 0.0
        %1361 = vmatmul.mubr.f32.gmra.mxu0 %v1142
        %v1362 = vpop.f32.mrf.mxu0
        %v1363 = vadd.f32 0.0, %v1362
        %v1364 = vpop.f32.mrf.mxu0
        %1365 = vmatprep.mubr.f32.mxu0 0.0
        %1366 = vmatmul.mubr.f32.gmra.mxu0 %v1144
        %v1367 = vpop.f32.mrf.mxu0
        %v1368 = vadd.f32 0.0, %v1367
        %v1369 = vpop.f32.mrf.mxu0
        %1370 = vdwg.mxu0
        %v1371 = vadd.f32 %v973, %v1213
        %v1372 = vadd.f32 %v978, %v1218
        %v1373 = vadd.f32 %v983, %v1223
        %v1374 = vadd.f32 %v988, %v1228
        %v1375 = vadd.f32 %v993, %v1233
        %v1376 = vadd.f32 %v998, %v1238
        %v1377 = vadd.f32 %v1003, %v1243
        %v1378 = vadd.f32 %v1008, %v1248
        %v1379 = vadd.f32 %v1013, %v1253
        %v1380 = vadd.f32 %v1018, %v1258
        %v1381 = vadd.f32 %v1023, %v1263
        %v1382 = vadd.f32 %v1028, %v1268
        %v1383 = vadd.f32 %v1033, %v1273
        %v1384 = vadd.f32 %v1038, %v1278
        %v1385 = vadd.f32 %v1043, %v1283
        %v1386 = vadd.f32 %v1048, %v1288
        %v1387 = vadd.f32 %v1053, %v1293
        %v1388 = vadd.f32 %v1058, %v1298
        %v1389 = vadd.f32 %v1063, %v1303
        %v1390 = vadd.f32 %v1068, %v1308
        %v1391 = vadd.f32 %v1073, %v1313
        %v1392 = vadd.f32 %v1078, %v1318
        %v1393 = vadd.f32 %v1083, %v1323
        %v1394 = vadd.f32 %v1088, %v1328
        %v1395 = vadd.f32 %v1093, %v1333
        %v1396 = vadd.f32 %v1098, %v1338
        %v1397 = vadd.f32 %v1103, %v1343
        %v1398 = vadd.f32 %v1108, %v1348
        %v1399 = vadd.f32 %v1113, %v1353
        %v1400 = vadd.f32 %v1118, %v1358
        %v1401 = vadd.f32 %v1123, %v1363
        %v1402 = vadd.f32 %v1128, %v1368
        %s1403 = scalar_lea.vmem %s227, 16 [#allocation6]
        %v1404 = vld [vmem:[%s1403] sm:$0xff]
        %v1405 = vld [vmem:[%s1403 + $0x8] sm:$0xff]
        %v1406 = vsel %vm261, %v400, 0
        %v1408 = vsel %vm261, %v401, 0
        %v1410 = vsel %vm261, %v404, 0
        %v1412 = vsel %vm261, %v405, 0
        %v1414 = vsel %vm261, %v408, 0
        %v1416 = vsel %vm261, %v409, 0
        %v1418 = vsel %vm261, %v412, 0
        %v1420 = vsel %vm261, %v413, 0
        %v1422 = vsel %vm261, %v416, 0
        %v1424 = vsel %vm261, %v417, 0
        %v1426 = vsel %vm261, %v420, 0
        %v1428 = vsel %vm261, %v421, 0
        %v1430 = vsel %vm261, %v424, 0
        %v1432 = vsel %vm261, %v425, 0
        %v1434 = vsel %vm261, %v428, 0
        %v1436 = vsel %vm261, %v429, 0
        %v1438 = vsel %vm261, %v432, 0
        %v1440 = vsel %vm261, %v433, 0
        %v1442 = vsel %vm261, %v436, 0
        %v1444 = vsel %vm261, %v437, 0
        %v1446 = vsel %vm261, %v440, 0
        %v1448 = vsel %vm261, %v441, 0
        %v1450 = vsel %vm261, %v444, 0
        %v1452 = vsel %vm261, %v445, 0
        %v1454 = vsel %vm261, %v448, 0
        %v1456 = vsel %vm261, %v449, 0
        %v1458 = vsel %vm261, %v452, 0
        %v1460 = vsel %vm261, %v453, 0
        %v1462 = vsel %vm261, %v456, 0
        %v1464 = vsel %vm261, %v457, 0
        %v1466 = vsel %vm261, %v460, 0
        %v1468 = vsel %vm261, %v461, 0
        %1470 = vmatprep.subr.mxu0 0.0
        %1471 = vmatpush1.msra.mxu0 0.0
        %1472 = vmatprep.subr.mxu0 0.0
        %1473 = vmatpush1.msra.mxu0 0.0
        %1474 = vmatprep.subr.mxu0 0.0
        %1475 = vmatpush1.msra.mxu0 0.0
        %1476 = vmatprep.subr.mxu0 0.0
        %1477 = vmatpush1.msra.mxu0 0.0
        %1478 = vmatprep.subr.mxu0 0.0
        %1479 = vmatpush1.msra.mxu0 0.0
        %1480 = vmatprep.subr.mxu0 0.0
        %1481 = vmatpush1.msra.mxu0 0.0
        %1482 = vmatprep.subr.mxu0 0.0
        %1483 = vmatpush1.msra.mxu0 0.0
        %1484 = vmatprep.subr.mxu0 0.0
        %1485 = vmatpush1.msra.mxu0 0.0
        %1486 = vmatprep.subr.mxu0 0.0
        %1487 = vmatpush1.msra.mxu0 0.0
        %1488 = vmatprep.subr.mxu0 0.0
        %1489 = vmatpush1.msra.mxu0 0.0
        %1490 = vmatprep.subr.mxu0 0.0
        %1491 = vmatpush1.msra.mxu0 0.0
        %1492 = vmatprep.subr.mxu0 0.0
        %1493 = vmatpush1.msra.mxu0 0.0
        %1494 = vmatprep.subr.mxu0 0.0
        %1495 = vmatpush1.msra.mxu0 0.0
        %1496 = vmatprep.subr.mxu0 0.0
        %1497 = vmatpush1.msra.mxu0 0.0
        %1498 = vmatprep.subr.mxu0 0.0
        %1499 = vmatpush1.msra.mxu0 %v1405
        %1500 = vmatprep.subr.mxu0 0.0
        %1501 = vmatpush1.msra.mxu0 %v1404
        %1502 = vmatprep.subr.mxu0 0.0
        %1503 = vmatpush2.msra.mxu0 0.0
        %1504 = vmatprep.subr.mxu0 0.0
        %1505 = vmatpush2.msra.mxu0 0.0
        %1506 = vmatprep.subr.mxu0 0.0
        %1507 = vmatpush2.msra.mxu0 0.0
        %1508 = vmatprep.subr.mxu0 0.0
        %1509 = vmatpush2.msra.mxu0 0.0
        %1510 = vmatprep.subr.mxu0 0.0
        %1511 = vmatpush2.msra.mxu0 0.0
        %1512 = vmatprep.subr.mxu0 0.0
        %1513 = vmatpush2.msra.mxu0 0.0
        %1514 = vmatprep.subr.mxu0 0.0
        %1515 = vmatpush2.msra.mxu0 0.0
        %1516 = vmatprep.subr.mxu0 0.0
        %1517 = vmatpush2.msra.mxu0 0.0
        %1518 = vmatprep.subr.mxu0 0.0
        %1519 = vmatpush2.msra.mxu0 0.0
        %1520 = vmatprep.subr.mxu0 0.0
        %1521 = vmatpush2.msra.mxu0 0.0
        %1522 = vmatprep.subr.mxu0 0.0
        %1523 = vmatpush2.msra.mxu0 0.0
        %1524 = vmatprep.subr.mxu0 0.0
        %1525 = vmatpush2.msra.mxu0 0.0
        %1526 = vmatprep.subr.mxu0 0.0
        %1527 = vmatpush2.msra.mxu0 0.0
        %1528 = vmatprep.subr.mxu0 0.0
        %1529 = vmatpush2.msra.mxu0 0.0
        %1530 = vmatprep.subr.mxu0 0.0
        %1531 = vmatpush2.msra.mxu0 0.0
        %1532 = vmatprep.subr.mxu0 0.0
        %1533 = vmatpush2.msra.mxu0 0.0
        %1534 = vmatprep.mubr.f32.mxu0 0.0
        %1535 = vmatmul.mubr.f32.gmra.mxu0 %v1406
        %v1536 = vpop.f32.mrf.mxu0
        %v1537 = vadd.f32 0.0, %v1536
        %v1538 = vpop.f32.mrf.mxu0
        %1539 = vmatprep.mubr.f32.mxu0 0.0
        %1540 = vmatmul.mubr.f32.gmra.mxu0 %v1408
        %v1541 = vpop.f32.mrf.mxu0
        %v1542 = vadd.f32 0.0, %v1541
        %v1543 = vpop.f32.mrf.mxu0
        %1544 = vmatprep.mubr.f32.mxu0 0.0
        %1545 = vmatmul.mubr.f32.gmra.mxu0 %v1410
        %v1546 = vpop.f32.mrf.mxu0
        %v1547 = vadd.f32 0.0, %v1546
        %v1548 = vpop.f32.mrf.mxu0
        %1549 = vmatprep.mubr.f32.mxu0 0.0
        %1550 = vmatmul.mubr.f32.gmra.mxu0 %v1412
        %v1551 = vpop.f32.mrf.mxu0
        %v1552 = vadd.f32 0.0, %v1551
        %v1553 = vpop.f32.mrf.mxu0
        %1554 = vmatprep.mubr.f32.mxu0 0.0
        %1555 = vmatmul.mubr.f32.gmra.mxu0 %v1414
        %v1556 = vpop.f32.mrf.mxu0
        %v1557 = vadd.f32 0.0, %v1556
        %v1558 = vpop.f32.mrf.mxu0
        %1559 = vmatprep.mubr.f32.mxu0 0.0
        %1560 = vmatmul.mubr.f32.gmra.mxu0 %v1416
        %v1561 = vpop.f32.mrf.mxu0
        %v1562 = vadd.f32 0.0, %v1561
        %v1563 = vpop.f32.mrf.mxu0
        %1564 = vmatprep.mubr.f32.mxu0 0.0
        %1565 = vmatmul.mubr.f32.gmra.mxu0 %v1418
        %v1566 = vpop.f32.mrf.mxu0
        %v1567 = vadd.f32 0.0, %v1566
        %v1568 = vpop.f32.mrf.mxu0
        %1569 = vmatprep.mubr.f32.mxu0 0.0
        %1570 = vmatmul.mubr.f32.gmra.mxu0 %v1420
        %v1571 = vpop.f32.mrf.mxu0
        %v1572 = vadd.f32 0.0, %v1571
        %v1573 = vpop.f32.mrf.mxu0
        %1574 = vmatprep.mubr.f32.mxu0 0.0
        %1575 = vmatmul.mubr.f32.gmra.mxu0 %v1422
        %v1576 = vpop.f32.mrf.mxu0
        %v1577 = vadd.f32 0.0, %v1576
        %v1578 = vpop.f32.mrf.mxu0
        %1579 = vmatprep.mubr.f32.mxu0 0.0
        %1580 = vmatmul.mubr.f32.gmra.mxu0 %v1424
        %v1581 = vpop.f32.mrf.mxu0
        %v1582 = vadd.f32 0.0, %v1581
        %v1583 = vpop.f32.mrf.mxu0
        %1584 = vmatprep.mubr.f32.mxu0 0.0
        %1585 = vmatmul.mubr.f32.gmra.mxu0 %v1426
        %v1586 = vpop.f32.mrf.mxu0
        %v1587 = vadd.f32 0.0, %v1586
        %v1588 = vpop.f32.mrf.mxu0
        %1589 = vmatprep.mubr.f32.mxu0 0.0
        %1590 = vmatmul.mubr.f32.gmra.mxu0 %v1428
        %v1591 = vpop.f32.mrf.mxu0
        %v1592 = vadd.f32 0.0, %v1591
        %v1593 = vpop.f32.mrf.mxu0
        %1594 = vmatprep.mubr.f32.mxu0 0.0
        %1595 = vmatmul.mubr.f32.gmra.mxu0 %v1430
        %v1596 = vpop.f32.mrf.mxu0
        %v1597 = vadd.f32 0.0, %v1596
        %v1598 = vpop.f32.mrf.mxu0
        %1599 = vmatprep.mubr.f32.mxu0 0.0
        %1600 = vmatmul.mubr.f32.gmra.mxu0 %v1432
        %v1601 = vpop.f32.mrf.mxu0
        %v1602 = vadd.f32 0.0, %v1601
        %v1603 = vpop.f32.mrf.mxu0
        %1604 = vmatprep.mubr.f32.mxu0 0.0
        %1605 = vmatmul.mubr.f32.gmra.mxu0 %v1434
        %v1606 = vpop.f32.mrf.mxu0
        %v1607 = vadd.f32 0.0, %v1606
        %v1608 = vpop.f32.mrf.mxu0
        %1609 = vmatprep.mubr.f32.mxu0 0.0
        %1610 = vmatmul.mubr.f32.gmra.mxu0 %v1436
        %v1611 = vpop.f32.mrf.mxu0
        %v1612 = vadd.f32 0.0, %v1611
        %v1613 = vpop.f32.mrf.mxu0
        %1614 = vmatprep.mubr.f32.mxu0 0.0
        %1615 = vmatmul.mubr.f32.gmra.mxu0 %v1438
        %v1616 = vpop.f32.mrf.mxu0
        %v1617 = vadd.f32 0.0, %v1616
        %v1618 = vpop.f32.mrf.mxu0
        %1619 = vmatprep.mubr.f32.mxu0 0.0
        %1620 = vmatmul.mubr.f32.gmra.mxu0 %v1440
        %v1621 = vpop.f32.mrf.mxu0
        %v1622 = vadd.f32 0.0, %v1621
        %v1623 = vpop.f32.mrf.mxu0
        %1624 = vmatprep.mubr.f32.mxu0 0.0
        %1625 = vmatmul.mubr.f32.gmra.mxu0 %v1442
        %v1626 = vpop.f32.mrf.mxu0
        %v1627 = vadd.f32 0.0, %v1626
        %v1628 = vpop.f32.mrf.mxu0
        %1629 = vmatprep.mubr.f32.mxu0 0.0
        %1630 = vmatmul.mubr.f32.gmra.mxu0 %v1444
        %v1631 = vpop.f32.mrf.mxu0
        %v1632 = vadd.f32 0.0, %v1631
        %v1633 = vpop.f32.mrf.mxu0
        %1634 = vmatprep.mubr.f32.mxu0 0.0
        %1635 = vmatmul.mubr.f32.gmra.mxu0 %v1446
        %v1636 = vpop.f32.mrf.mxu0
        %v1637 = vadd.f32 0.0, %v1636
        %v1638 = vpop.f32.mrf.mxu0
        %1639 = vmatprep.mubr.f32.mxu0 0.0
        %1640 = vmatmul.mubr.f32.gmra.mxu0 %v1448
        %v1641 = vpop.f32.mrf.mxu0
        %v1642 = vadd.f32 0.0, %v1641
        %v1643 = vpop.f32.mrf.mxu0
        %1644 = vmatprep.mubr.f32.mxu0 0.0
        %1645 = vmatmul.mubr.f32.gmra.mxu0 %v1450
        %v1646 = vpop.f32.mrf.mxu0
        %v1647 = vadd.f32 0.0, %v1646
        %v1648 = vpop.f32.mrf.mxu0
        %1649 = vmatprep.mubr.f32.mxu0 0.0
        %1650 = vmatmul.mubr.f32.gmra.mxu0 %v1452
        %v1651 = vpop.f32.mrf.mxu0
        %v1652 = vadd.f32 0.0, %v1651
        %v1653 = vpop.f32.mrf.mxu0
        %1654 = vmatprep.mubr.f32.mxu0 0.0
        %1655 = vmatmul.mubr.f32.gmra.mxu0 %v1454
        %v1656 = vpop.f32.mrf.mxu0
        %v1657 = vadd.f32 0.0, %v1656
        %v1658 = vpop.f32.mrf.mxu0
        %1659 = vmatprep.mubr.f32.mxu0 0.0
        %1660 = vmatmul.mubr.f32.gmra.mxu0 %v1456
        %v1661 = vpop.f32.mrf.mxu0
        %v1662 = vadd.f32 0.0, %v1661
        %v1663 = vpop.f32.mrf.mxu0
        %1664 = vmatprep.mubr.f32.mxu0 0.0
        %1665 = vmatmul.mubr.f32.gmra.mxu0 %v1458
        %v1666 = vpop.f32.mrf.mxu0
        %v1667 = vadd.f32 0.0, %v1666
        %v1668 = vpop.f32.mrf.mxu0
        %1669 = vmatprep.mubr.f32.mxu0 0.0
        %1670 = vmatmul.mubr.f32.gmra.mxu0 %v1460
        %v1671 = vpop.f32.mrf.mxu0
        %v1672 = vadd.f32 0.0, %v1671
        %v1673 = vpop.f32.mrf.mxu0
        %1674 = vmatprep.mubr.f32.mxu0 0.0
        %1675 = vmatmul.mubr.f32.gmra.mxu0 %v1462
        %v1676 = vpop.f32.mrf.mxu0
        %v1677 = vadd.f32 0.0, %v1676
        %v1678 = vpop.f32.mrf.mxu0
        %1679 = vmatprep.mubr.f32.mxu0 0.0
        %1680 = vmatmul.mubr.f32.gmra.mxu0 %v1464
        %v1681 = vpop.f32.mrf.mxu0
        %v1682 = vadd.f32 0.0, %v1681
        %v1683 = vpop.f32.mrf.mxu0
        %1684 = vmatprep.mubr.f32.mxu0 0.0
        %1685 = vmatmul.mubr.f32.gmra.mxu0 %v1466
        %v1686 = vpop.f32.mrf.mxu0
        %v1687 = vadd.f32 0.0, %v1686
        %v1688 = vpop.f32.mrf.mxu0
        %1689 = vmatprep.mubr.f32.mxu0 0.0
        %1690 = vmatmul.mubr.f32.gmra.mxu0 %v1468
        %v1691 = vpop.f32.mrf.mxu0
        %v1692 = vadd.f32 0.0, %v1691
        %v1693 = vpop.f32.mrf.mxu0
        %1694 = vdwg.mxu0
        %v1695 = vadd.f32 %v1371, %v1537
        %v1696 = vadd.f32 %v1372, %v1542
        %v1697 = vadd.f32 %v1373, %v1547
        %v1698 = vadd.f32 %v1374, %v1552
        %v1699 = vadd.f32 %v1375, %v1557
        %v1700 = vadd.f32 %v1376, %v1562
        %v1701 = vadd.f32 %v1377, %v1567
        %v1702 = vadd.f32 %v1378, %v1572
        %v1703 = vadd.f32 %v1379, %v1577
        %v1704 = vadd.f32 %v1380, %v1582
        %v1705 = vadd.f32 %v1381, %v1587
        %v1706 = vadd.f32 %v1382, %v1592
        %v1707 = vadd.f32 %v1383, %v1597
        %v1708 = vadd.f32 %v1384, %v1602
        %v1709 = vadd.f32 %v1385, %v1607
        %v1710 = vadd.f32 %v1386, %v1612
        %v1711 = vadd.f32 %v1387, %v1617
        %v1712 = vadd.f32 %v1388, %v1622
        %v1713 = vadd.f32 %v1389, %v1627
        %v1714 = vadd.f32 %v1390, %v1632
        %v1715 = vadd.f32 %v1391, %v1637
        %v1716 = vadd.f32 %v1392, %v1642
        %v1717 = vadd.f32 %v1393, %v1647
        %v1718 = vadd.f32 %v1394, %v1652
        %v1719 = vadd.f32 %v1395, %v1657
        %v1720 = vadd.f32 %v1396, %v1662
        %v1721 = vadd.f32 %v1397, %v1667
        %v1722 = vadd.f32 %v1398, %v1672
        %v1723 = vadd.f32 %v1399, %v1677
        %v1724 = vadd.f32 %v1400, %v1682
        %v1725 = vadd.f32 %v1401, %v1687
        %v1726 = vadd.f32 %v1402, %v1692
        %s1727 = scalar_lea.vmem %s227, 64 [#allocation6]
        %v1728 = vld [vmem:[%s1727] sm:$0xff]
        %v1729 = vld [vmem:[%s1727 + $0x8] sm:$0xff]
        %v1730 = vsel %vm261, %v464, 0
        %v1732 = vsel %vm261, %v465, 0
        %1734 = vmatprep.subr.mxu0 0.0
        %1735 = vmatpush1.msra.mxu0 0.0
        %1736 = vmatprep.subr.mxu0 0.0
        %1737 = vmatpush1.msra.mxu0 0.0
        %1738 = vmatprep.subr.mxu0 0.0
        %1739 = vmatpush1.msra.mxu0 0.0
        %1740 = vmatprep.subr.mxu0 0.0
        %1741 = vmatpush1.msra.mxu0 0.0
        %1742 = vmatprep.subr.mxu0 0.0
        %1743 = vmatpush1.msra.mxu0 0.0
        %1744 = vmatprep.subr.mxu0 0.0
        %1745 = vmatpush1.msra.mxu0 0.0
        %1746 = vmatprep.subr.mxu0 0.0
        %1747 = vmatpush1.msra.mxu0 0.0
        %1748 = vmatprep.subr.mxu0 0.0
        %1749 = vmatpush1.msra.mxu0 0.0
        %1750 = vmatprep.subr.mxu0 0.0
        %1751 = vmatpush1.msra.mxu0 0.0
        %1752 = vmatprep.subr.mxu0 0.0
        %1753 = vmatpush1.msra.mxu0 0.0
        %1754 = vmatprep.subr.mxu0 0.0
        %1755 = vmatpush1.msra.mxu0 0.0
        %1756 = vmatprep.subr.mxu0 0.0
        %1757 = vmatpush1.msra.mxu0 0.0
        %1758 = vmatprep.subr.mxu0 0.0
        %1759 = vmatpush1.msra.mxu0 0.0
        %1760 = vmatprep.subr.mxu0 0.0
        %1761 = vmatpush1.msra.mxu0 0.0
        %1762 = vmatprep.subr.mxu0 0.0
        %1763 = vmatpush1.msra.mxu0 %v1729
        %1764 = vmatprep.subr.mxu0 0.0
        %1765 = vmatpush1.msra.mxu0 %v1728
        %1766 = vmatprep.subr.mxu0 0.0
        %1767 = vmatpush2.msra.mxu0 0.0
        %1768 = vmatprep.subr.mxu0 0.0
        %1769 = vmatpush2.msra.mxu0 0.0
        %1770 = vmatprep.subr.mxu0 0.0
        %1771 = vmatpush2.msra.mxu0 0.0
        %1772 = vmatprep.subr.mxu0 0.0
        %1773 = vmatpush2.msra.mxu0 0.0
        %1774 = vmatprep.subr.mxu0 0.0
        %1775 = vmatpush2.msra.mxu0 0.0
        %1776 = vmatprep.subr.mxu0 0.0
        %1777 = vmatpush2.msra.mxu0 0.0
        %1778 = vmatprep.subr.mxu0 0.0
        %1779 = vmatpush2.msra.mxu0 0.0
        %1780 = vmatprep.subr.mxu0 0.0
        %1781 = vmatpush2.msra.mxu0 0.0
        %1782 = vmatprep.subr.mxu0 0.0
        %1783 = vmatpush2.msra.mxu0 0.0
        %1784 = vmatprep.subr.mxu0 0.0
        %1785 = vmatpush2.msra.mxu0 0.0
        %1786 = vmatprep.subr.mxu0 0.0
        %1787 = vmatpush2.msra.mxu0 0.0
        %1788 = vmatprep.subr.mxu0 0.0
        %1789 = vmatpush2.msra.mxu0 0.0
        %1790 = vmatprep.subr.mxu0 0.0
        %1791 = vmatpush2.msra.mxu0 0.0
        %1792 = vmatprep.subr.mxu0 0.0
        %1793 = vmatpush2.msra.mxu0 0.0
        %1794 = vmatprep.subr.mxu0 0.0
        %1795 = vmatpush2.msra.mxu0 0.0
        %1796 = vmatprep.subr.mxu0 0.0
        %1797 = vmatpush2.msra.mxu0 0.0
        %1798 = vmatprep.mubr.f32.mxu0 0.0
        %1799 = vmatmul.mubr.f32.gmra.mxu0 %v1410
        %v1800 = vpop.f32.mrf.mxu0
        %v1801 = vadd.f32 0.0, %v1800
        %v1802 = vpop.f32.mrf.mxu0
        %1803 = vmatprep.mubr.f32.mxu0 0.0
        %1804 = vmatmul.mubr.f32.gmra.mxu0 %v1412
        %v1805 = vpop.f32.mrf.mxu0
        %v1806 = vadd.f32 0.0, %v1805
        %v1807 = vpop.f32.mrf.mxu0
        %1808 = vmatprep.mubr.f32.mxu0 0.0
        %1809 = vmatmul.mubr.f32.gmra.mxu0 %v1414
        %v1810 = vpop.f32.mrf.mxu0
        %v1811 = vadd.f32 0.0, %v1810
        %v1812 = vpop.f32.mrf.mxu0
        %1813 = vmatprep.mubr.f32.mxu0 0.0
        %1814 = vmatmul.mubr.f32.gmra.mxu0 %v1416
        %v1815 = vpop.f32.mrf.mxu0
        %v1816 = vadd.f32 0.0, %v1815
        %v1817 = vpop.f32.mrf.mxu0
        %1818 = vmatprep.mubr.f32.mxu0 0.0
        %1819 = vmatmul.mubr.f32.gmra.mxu0 %v1418
        %v1820 = vpop.f32.mrf.mxu0
        %v1821 = vadd.f32 0.0, %v1820
        %v1822 = vpop.f32.mrf.mxu0
        %1823 = vmatprep.mubr.f32.mxu0 0.0
        %1824 = vmatmul.mubr.f32.gmra.mxu0 %v1420
        %v1825 = vpop.f32.mrf.mxu0
        %v1826 = vadd.f32 0.0, %v1825
        %v1827 = vpop.f32.mrf.mxu0
        %1828 = vmatprep.mubr.f32.mxu0 0.0
        %1829 = vmatmul.mubr.f32.gmra.mxu0 %v1422
        %v1830 = vpop.f32.mrf.mxu0
        %v1831 = vadd.f32 0.0, %v1830
        %v1832 = vpop.f32.mrf.mxu0
        %1833 = vmatprep.mubr.f32.mxu0 0.0
        %1834 = vmatmul.mubr.f32.gmra.mxu0 %v1424
        %v1835 = vpop.f32.mrf.mxu0
        %v1836 = vadd.f32 0.0, %v1835
        %v1837 = vpop.f32.mrf.mxu0
        %1838 = vmatprep.mubr.f32.mxu0 0.0
        %1839 = vmatmul.mubr.f32.gmra.mxu0 %v1426
        %v1840 = vpop.f32.mrf.mxu0
        %v1841 = vadd.f32 0.0, %v1840
        %v1842 = vpop.f32.mrf.mxu0
        %1843 = vmatprep.mubr.f32.mxu0 0.0
        %1844 = vmatmul.mubr.f32.gmra.mxu0 %v1428
        %v1845 = vpop.f32.mrf.mxu0
        %v1846 = vadd.f32 0.0, %v1845
        %v1847 = vpop.f32.mrf.mxu0
        %1848 = vmatprep.mubr.f32.mxu0 0.0
        %1849 = vmatmul.mubr.f32.gmra.mxu0 %v1430
        %v1850 = vpop.f32.mrf.mxu0
        %v1851 = vadd.f32 0.0, %v1850
        %v1852 = vpop.f32.mrf.mxu0
        %1853 = vmatprep.mubr.f32.mxu0 0.0
        %1854 = vmatmul.mubr.f32.gmra.mxu0 %v1432
        %v1855 = vpop.f32.mrf.mxu0
        %v1856 = vadd.f32 0.0, %v1855
        %v1857 = vpop.f32.mrf.mxu0
        %1858 = vmatprep.mubr.f32.mxu0 0.0
        %1859 = vmatmul.mubr.f32.gmra.mxu0 %v1434
        %v1860 = vpop.f32.mrf.mxu0
        %v1861 = vadd.f32 0.0, %v1860
        %v1862 = vpop.f32.mrf.mxu0
        %1863 = vmatprep.mubr.f32.mxu0 0.0
        %1864 = vmatmul.mubr.f32.gmra.mxu0 %v1436
        %v1865 = vpop.f32.mrf.mxu0
        %v1866 = vadd.f32 0.0, %v1865
        %v1867 = vpop.f32.mrf.mxu0
        %1868 = vmatprep.mubr.f32.mxu0 0.0
        %1869 = vmatmul.mubr.f32.gmra.mxu0 %v1438
        %v1870 = vpop.f32.mrf.mxu0
        %v1871 = vadd.f32 0.0, %v1870
        %v1872 = vpop.f32.mrf.mxu0
        %1873 = vmatprep.mubr.f32.mxu0 0.0
        %1874 = vmatmul.mubr.f32.gmra.mxu0 %v1440
        %v1875 = vpop.f32.mrf.mxu0
        %v1876 = vadd.f32 0.0, %v1875
        %v1877 = vpop.f32.mrf.mxu0
        %1878 = vmatprep.mubr.f32.mxu0 0.0
        %1879 = vmatmul.mubr.f32.gmra.mxu0 %v1442
        %v1880 = vpop.f32.mrf.mxu0
        %v1881 = vadd.f32 0.0, %v1880
        %v1882 = vpop.f32.mrf.mxu0
        %1883 = vmatprep.mubr.f32.mxu0 0.0
        %1884 = vmatmul.mubr.f32.gmra.mxu0 %v1444
        %v1885 = vpop.f32.mrf.mxu0
        %v1886 = vadd.f32 0.0, %v1885
        %v1887 = vpop.f32.mrf.mxu0
        %1888 = vmatprep.mubr.f32.mxu0 0.0
        %1889 = vmatmul.mubr.f32.gmra.mxu0 %v1446
        %v1890 = vpop.f32.mrf.mxu0
        %v1891 = vadd.f32 0.0, %v1890
        %v1892 = vpop.f32.mrf.mxu0
        %1893 = vmatprep.mubr.f32.mxu0 0.0
        %1894 = vmatmul.mubr.f32.gmra.mxu0 %v1448
        %v1895 = vpop.f32.mrf.mxu0
        %v1896 = vadd.f32 0.0, %v1895
        %v1897 = vpop.f32.mrf.mxu0
        %1898 = vmatprep.mubr.f32.mxu0 0.0
        %1899 = vmatmul.mubr.f32.gmra.mxu0 %v1450
        %v1900 = vpop.f32.mrf.mxu0
        %v1901 = vadd.f32 0.0, %v1900
        %v1902 = vpop.f32.mrf.mxu0
        %1903 = vmatprep.mubr.f32.mxu0 0.0
        %1904 = vmatmul.mubr.f32.gmra.mxu0 %v1452
        %v1905 = vpop.f32.mrf.mxu0
        %v1906 = vadd.f32 0.0, %v1905
        %v1907 = vpop.f32.mrf.mxu0
        %1908 = vmatprep.mubr.f32.mxu0 0.0
        %1909 = vmatmul.mubr.f32.gmra.mxu0 %v1454
        %v1910 = vpop.f32.mrf.mxu0
        %v1911 = vadd.f32 0.0, %v1910
        %v1912 = vpop.f32.mrf.mxu0
        %1913 = vmatprep.mubr.f32.mxu0 0.0
        %1914 = vmatmul.mubr.f32.gmra.mxu0 %v1456
        %v1915 = vpop.f32.mrf.mxu0
        %v1916 = vadd.f32 0.0, %v1915
        %v1917 = vpop.f32.mrf.mxu0
        %1918 = vmatprep.mubr.f32.mxu0 0.0
        %1919 = vmatmul.mubr.f32.gmra.mxu0 %v1458
        %v1920 = vpop.f32.mrf.mxu0
        %v1921 = vadd.f32 0.0, %v1920
        %v1922 = vpop.f32.mrf.mxu0
        %1923 = vmatprep.mubr.f32.mxu0 0.0
        %1924 = vmatmul.mubr.f32.gmra.mxu0 %v1460
        %v1925 = vpop.f32.mrf.mxu0
        %v1926 = vadd.f32 0.0, %v1925
        %v1927 = vpop.f32.mrf.mxu0
        %1928 = vmatprep.mubr.f32.mxu0 0.0
        %1929 = vmatmul.mubr.f32.gmra.mxu0 %v1462
        %v1930 = vpop.f32.mrf.mxu0
        %v1931 = vadd.f32 0.0, %v1930
        %v1932 = vpop.f32.mrf.mxu0
        %1933 = vmatprep.mubr.f32.mxu0 0.0
        %1934 = vmatmul.mubr.f32.gmra.mxu0 %v1464
        %v1935 = vpop.f32.mrf.mxu0
        %v1936 = vadd.f32 0.0, %v1935
        %v1937 = vpop.f32.mrf.mxu0
        %1938 = vmatprep.mubr.f32.mxu0 0.0
        %1939 = vmatmul.mubr.f32.gmra.mxu0 %v1466
        %v1940 = vpop.f32.mrf.mxu0
        %v1941 = vadd.f32 0.0, %v1940
        %v1942 = vpop.f32.mrf.mxu0
        %1943 = vmatprep.mubr.f32.mxu0 0.0
        %1944 = vmatmul.mubr.f32.gmra.mxu0 %v1468
        %v1945 = vpop.f32.mrf.mxu0
        %v1946 = vadd.f32 0.0, %v1945
        %v1947 = vpop.f32.mrf.mxu0
        %1948 = vmatprep.mubr.f32.mxu0 0.0
        %1949 = vmatmul.mubr.f32.gmra.mxu0 %v1730
        %v1950 = vpop.f32.mrf.mxu0
        %v1951 = vadd.f32 0.0, %v1950
        %v1952 = vpop.f32.mrf.mxu0
        %1953 = vmatprep.mubr.f32.mxu0 0.0
        %1954 = vmatmul.mubr.f32.gmra.mxu0 %v1732
        %v1955 = vpop.f32.mrf.mxu0
        %v1956 = vadd.f32 0.0, %v1955
        %v1957 = vpop.f32.mrf.mxu0
        %1958 = vdwg.mxu0
        %v1959 = vadd.f32 %v1695, %v1801
        %v1960 = vadd.f32 %v1696, %v1806
        %v1961 = vadd.f32 %v1697, %v1811
        %v1962 = vadd.f32 %v1698, %v1816
        %v1963 = vadd.f32 %v1699, %v1821
        %v1964 = vadd.f32 %v1700, %v1826
        %v1965 = vadd.f32 %v1701, %v1831
        %v1966 = vadd.f32 %v1702, %v1836
        %v1967 = vadd.f32 %v1703, %v1841
        %v1968 = vadd.f32 %v1704, %v1846
        %v1969 = vadd.f32 %v1705, %v1851
        %v1970 = vadd.f32 %v1706, %v1856
        %v1971 = vadd.f32 %v1707, %v1861
        %v1972 = vadd.f32 %v1708, %v1866
        %v1973 = vadd.f32 %v1709, %v1871
        %v1974 = vadd.f32 %v1710, %v1876
        %v1975 = vadd.f32 %v1711, %v1881
        %v1976 = vadd.f32 %v1712, %v1886
        %v1977 = vadd.f32 %v1713, %v1891
        %v1978 = vadd.f32 %v1714, %v1896
        %v1979 = vadd.f32 %v1715, %v1901
        %v1980 = vadd.f32 %v1716, %v1906
        %v1981 = vadd.f32 %v1717, %v1911
        %v1982 = vadd.f32 %v1718, %v1916
        %v1983 = vadd.f32 %v1719, %v1921
        %v1984 = vadd.f32 %v1720, %v1926
        %v1985 = vadd.f32 %v1721, %v1931
        %v1986 = vadd.f32 %v1722, %v1936
        %v1987 = vadd.f32 %v1723, %v1941
        %v1988 = vadd.f32 %v1724, %v1946
        %v1989 = vadd.f32 %v1725, %v1951
        %v1990 = vadd.f32 %v1726, %v1956
        %s1991 = scalar_lea.vmem %s227, 112 [#allocation6]
        %v1992 = vld [vmem:[%s1991] sm:$0xff]
        %v1993 = vld [vmem:[%s1991 + $0x8] sm:$0xff]
        %v1994 = vsel %vm261, %v468, 0
        %v1996 = vsel %vm261, %v469, 0
        %1998 = vmatprep.subr.mxu0 0.0
        %1999 = vmatpush1.msra.mxu0 0.0
        %2000 = vmatprep.subr.mxu0 0.0
        %2001 = vmatpush1.msra.mxu0 0.0
        %2002 = vmatprep.subr.mxu0 0.0
        %2003 = vmatpush1.msra.mxu0 0.0
        %2004 = vmatprep.subr.mxu0 0.0
        %2005 = vmatpush1.msra.mxu0 0.0
        %2006 = vmatprep.subr.mxu0 0.0
        %2007 = vmatpush1.msra.mxu0 0.0
        %2008 = vmatprep.subr.mxu0 0.0
        %2009 = vmatpush1.msra.mxu0 0.0
        %2010 = vmatprep.subr.mxu0 0.0
        %2011 = vmatpush1.msra.mxu0 0.0
        %2012 = vmatprep.subr.mxu0 0.0
        %2013 = vmatpush1.msra.mxu0 0.0
        %2014 = vmatprep.subr.mxu0 0.0
        %2015 = vmatpush1.msra.mxu0 0.0
        %2016 = vmatprep.subr.mxu0 0.0
        %2017 = vmatpush1.msra.mxu0 0.0
        %2018 = vmatprep.subr.mxu0 0.0
        %2019 = vmatpush1.msra.mxu0 0.0
        %2020 = vmatprep.subr.mxu0 0.0
        %2021 = vmatpush1.msra.mxu0 0.0
        %2022 = vmatprep.subr.mxu0 0.0
        %2023 = vmatpush1.msra.mxu0 0.0
        %2024 = vmatprep.subr.mxu0 0.0
        %2025 = vmatpush1.msra.mxu0 0.0
        %2026 = vmatprep.subr.mxu0 0.0
        %2027 = vmatpush1.msra.mxu0 %v1993
        %2028 = vmatprep.subr.mxu0 0.0
        %2029 = vmatpush1.msra.mxu0 %v1992
        %2030 = vmatprep.subr.mxu0 0.0
        %2031 = vmatpush2.msra.mxu0 0.0
        %2032 = vmatprep.subr.mxu0 0.0
        %2033 = vmatpush2.msra.mxu0 0.0
        %2034 = vmatprep.subr.mxu0 0.0
        %2035 = vmatpush2.msra.mxu0 0.0
        %2036 = vmatprep.subr.mxu0 0.0
        %2037 = vmatpush2.msra.mxu0 0.0
        %2038 = vmatprep.subr.mxu0 0.0
        %2039 = vmatpush2.msra.mxu0 0.0
        %2040 = vmatprep.subr.mxu0 0.0
        %2041 = vmatpush2.msra.mxu0 0.0
        %2042 = vmatprep.subr.mxu0 0.0
        %2043 = vmatpush2.msra.mxu0 0.0
        %2044 = vmatprep.subr.mxu0 0.0
        %2045 = vmatpush2.msra.mxu0 0.0
        %2046 = vmatprep.subr.mxu0 0.0
        %2047 = vmatpush2.msra.mxu0 0.0
        %2048 = vmatprep.subr.mxu0 0.0
        %2049 = vmatpush2.msra.mxu0 0.0
        %2050 = vmatprep.subr.mxu0 0.0
        %2051 = vmatpush2.msra.mxu0 0.0
        %2052 = vmatprep.subr.mxu0 0.0
        %2053 = vmatpush2.msra.mxu0 0.0
        %2054 = vmatprep.subr.mxu0 0.0
        %2055 = vmatpush2.msra.mxu0 0.0
        %2056 = vmatprep.subr.mxu0 0.0
        %2057 = vmatpush2.msra.mxu0 0.0
        %2058 = vmatprep.subr.mxu0 0.0
        %2059 = vmatpush2.msra.mxu0 0.0
        %2060 = vmatprep.subr.mxu0 0.0
        %2061 = vmatpush2.msra.mxu0 0.0
        %2062 = vmatprep.mubr.f32.mxu0 0.0
        %2063 = vmatmul.mubr.f32.gmra.mxu0 %v1414
        %v2064 = vpop.f32.mrf.mxu0
        %v2065 = vadd.f32 0.0, %v2064
        %v2066 = vpop.f32.mrf.mxu0
        %2067 = vmatprep.mubr.f32.mxu0 0.0
        %2068 = vmatmul.mubr.f32.gmra.mxu0 %v1416
        %v2069 = vpop.f32.mrf.mxu0
        %v2070 = vadd.f32 0.0, %v2069
        %v2071 = vpop.f32.mrf.mxu0
        %2072 = vmatprep.mubr.f32.mxu0 0.0
        %2073 = vmatmul.mubr.f32.gmra.mxu0 %v1418
        %v2074 = vpop.f32.mrf.mxu0
        %v2075 = vadd.f32 0.0, %v2074
        %v2076 = vpop.f32.mrf.mxu0
        %2077 = vmatprep.mubr.f32.mxu0 0.0
        %2078 = vmatmul.mubr.f32.gmra.mxu0 %v1420
        %v2079 = vpop.f32.mrf.mxu0
        %v2080 = vadd.f32 0.0, %v2079
        %v2081 = vpop.f32.mrf.mxu0
        %2082 = vmatprep.mubr.f32.mxu0 0.0
        %2083 = vmatmul.mubr.f32.gmra.mxu0 %v1422
        %v2084 = vpop.f32.mrf.mxu0
        %v2085 = vadd.f32 0.0, %v2084
        %v2086 = vpop.f32.mrf.mxu0
        %2087 = vmatprep.mubr.f32.mxu0 0.0
        %2088 = vmatmul.mubr.f32.gmra.mxu0 %v1424
        %v2089 = vpop.f32.mrf.mxu0
        %v2090 = vadd.f32 0.0, %v2089
        %v2091 = vpop.f32.mrf.mxu0
        %2092 = vmatprep.mubr.f32.mxu0 0.0
        %2093 = vmatmul.mubr.f32.gmra.mxu0 %v1426
        %v2094 = vpop.f32.mrf.mxu0
        %v2095 = vadd.f32 0.0, %v2094
        %v2096 = vpop.f32.mrf.mxu0
        %2097 = vmatprep.mubr.f32.mxu0 0.0
        %2098 = vmatmul.mubr.f32.gmra.mxu0 %v1428
        %v2099 = vpop.f32.mrf.mxu0
        %v2100 = vadd.f32 0.0, %v2099
        %v2101 = vpop.f32.mrf.mxu0
        %2102 = vmatprep.mubr.f32.mxu0 0.0
        %2103 = vmatmul.mubr.f32.gmra.mxu0 %v1430
        %v2104 = vpop.f32.mrf.mxu0
        %v2105 = vadd.f32 0.0, %v2104
        %v2106 = vpop.f32.mrf.mxu0
        %2107 = vmatprep.mubr.f32.mxu0 0.0
        %2108 = vmatmul.mubr.f32.gmra.mxu0 %v1432
        %v2109 = vpop.f32.mrf.mxu0
        %v2110 = vadd.f32 0.0, %v2109
        %v2111 = vpop.f32.mrf.mxu0
        %2112 = vmatprep.mubr.f32.mxu0 0.0
        %2113 = vmatmul.mubr.f32.gmra.mxu0 %v1434
        %v2114 = vpop.f32.mrf.mxu0
        %v2115 = vadd.f32 0.0, %v2114
        %v2116 = vpop.f32.mrf.mxu0
        %2117 = vmatprep.mubr.f32.mxu0 0.0
        %2118 = vmatmul.mubr.f32.gmra.mxu0 %v1436
        %v2119 = vpop.f32.mrf.mxu0
        %v2120 = vadd.f32 0.0, %v2119
        %v2121 = vpop.f32.mrf.mxu0
        %2122 = vmatprep.mubr.f32.mxu0 0.0
        %2123 = vmatmul.mubr.f32.gmra.mxu0 %v1438
        %v2124 = vpop.f32.mrf.mxu0
        %v2125 = vadd.f32 0.0, %v2124
        %v2126 = vpop.f32.mrf.mxu0
        %2127 = vmatprep.mubr.f32.mxu0 0.0
        %2128 = vmatmul.mubr.f32.gmra.mxu0 %v1440
        %v2129 = vpop.f32.mrf.mxu0
        %v2130 = vadd.f32 0.0, %v2129
        %v2131 = vpop.f32.mrf.mxu0
        %2132 = vmatprep.mubr.f32.mxu0 0.0
        %2133 = vmatmul.mubr.f32.gmra.mxu0 %v1442
        %v2134 = vpop.f32.mrf.mxu0
        %v2135 = vadd.f32 0.0, %v2134
        %v2136 = vpop.f32.mrf.mxu0
        %2137 = vmatprep.mubr.f32.mxu0 0.0
        %2138 = vmatmul.mubr.f32.gmra.mxu0 %v1444
        %v2139 = vpop.f32.mrf.mxu0
        %v2140 = vadd.f32 0.0, %v2139
        %v2141 = vpop.f32.mrf.mxu0
        %2142 = vmatprep.mubr.f32.mxu0 0.0
        %2143 = vmatmul.mubr.f32.gmra.mxu0 %v1446
        %v2144 = vpop.f32.mrf.mxu0
        %v2145 = vadd.f32 0.0, %v2144
        %v2146 = vpop.f32.mrf.mxu0
        %2147 = vmatprep.mubr.f32.mxu0 0.0
        %2148 = vmatmul.mubr.f32.gmra.mxu0 %v1448
        %v2149 = vpop.f32.mrf.mxu0
        %v2150 = vadd.f32 0.0, %v2149
        %v2151 = vpop.f32.mrf.mxu0
        %2152 = vmatprep.mubr.f32.mxu0 0.0
        %2153 = vmatmul.mubr.f32.gmra.mxu0 %v1450
        %v2154 = vpop.f32.mrf.mxu0
        %v2155 = vadd.f32 0.0, %v2154
        %v2156 = vpop.f32.mrf.mxu0
        %2157 = vmatprep.mubr.f32.mxu0 0.0
        %2158 = vmatmul.mubr.f32.gmra.mxu0 %v1452
        %v2159 = vpop.f32.mrf.mxu0
        %v2160 = vadd.f32 0.0, %v2159
        %v2161 = vpop.f32.mrf.mxu0
        %2162 = vmatprep.mubr.f32.mxu0 0.0
        %2163 = vmatmul.mubr.f32.gmra.mxu0 %v1454
        %v2164 = vpop.f32.mrf.mxu0
        %v2165 = vadd.f32 0.0, %v2164
        %v2166 = vpop.f32.mrf.mxu0
        %2167 = vmatprep.mubr.f32.mxu0 0.0
        %2168 = vmatmul.mubr.f32.gmra.mxu0 %v1456
        %v2169 = vpop.f32.mrf.mxu0
        %v2170 = vadd.f32 0.0, %v2169
        %v2171 = vpop.f32.mrf.mxu0
        %2172 = vmatprep.mubr.f32.mxu0 0.0
        %2173 = vmatmul.mubr.f32.gmra.mxu0 %v1458
        %v2174 = vpop.f32.mrf.mxu0
        %v2175 = vadd.f32 0.0, %v2174
        %v2176 = vpop.f32.mrf.mxu0
        %2177 = vmatprep.mubr.f32.mxu0 0.0
        %2178 = vmatmul.mubr.f32.gmra.mxu0 %v1460
        %v2179 = vpop.f32.mrf.mxu0
        %v2180 = vadd.f32 0.0, %v2179
        %v2181 = vpop.f32.mrf.mxu0
        %2182 = vmatprep.mubr.f32.mxu0 0.0
        %2183 = vmatmul.mubr.f32.gmra.mxu0 %v1462
        %v2184 = vpop.f32.mrf.mxu0
        %v2185 = vadd.f32 0.0, %v2184
        %v2186 = vpop.f32.mrf.mxu0
        %2187 = vmatprep.mubr.f32.mxu0 0.0
        %2188 = vmatmul.mubr.f32.gmra.mxu0 %v1464
        %v2189 = vpop.f32.mrf.mxu0
        %v2190 = vadd.f32 0.0, %v2189
        %v2191 = vpop.f32.mrf.mxu0
        %2192 = vmatprep.mubr.f32.mxu0 0.0
        %2193 = vmatmul.mubr.f32.gmra.mxu0 %v1466
        %v2194 = vpop.f32.mrf.mxu0
        %v2195 = vadd.f32 0.0, %v2194
        %v2196 = vpop.f32.mrf.mxu0
        %2197 = vmatprep.mubr.f32.mxu0 0.0
        %2198 = vmatmul.mubr.f32.gmra.mxu0 %v1468
        %v2199 = vpop.f32.mrf.mxu0
        %v2200 = vadd.f32 0.0, %v2199
        %v2201 = vpop.f32.mrf.mxu0
        %2202 = vmatprep.mubr.f32.mxu0 0.0
        %2203 = vmatmul.mubr.f32.gmra.mxu0 %v1730
        %v2204 = vpop.f32.mrf.mxu0
        %v2205 = vadd.f32 0.0, %v2204
        %v2206 = vpop.f32.mrf.mxu0
        %2207 = vmatprep.mubr.f32.mxu0 0.0
        %2208 = vmatmul.mubr.f32.gmra.mxu0 %v1732
        %v2209 = vpop.f32.mrf.mxu0
        %v2210 = vadd.f32 0.0, %v2209
        %v2211 = vpop.f32.mrf.mxu0
        %2212 = vmatprep.mubr.f32.mxu0 0.0
        %2213 = vmatmul.mubr.f32.gmra.mxu0 %v1994
        %v2214 = vpop.f32.mrf.mxu0
        %v2215 = vadd.f32 0.0, %v2214
        %v2216 = vpop.f32.mrf.mxu0
        %2217 = vmatprep.mubr.f32.mxu0 0.0
        %2218 = vmatmul.mubr.f32.gmra.mxu0 %v1996
        %v2219 = vpop.f32.mrf.mxu0
        %v2220 = vadd.f32 0.0, %v2219
        %v2221 = vpop.f32.mrf.mxu0
        %2222 = vdwg.mxu0
        %v2223 = vadd.f32 %v1959, %v2065
        %v2224 = vadd.f32 %v1960, %v2070
        %v2225 = vadd.f32 %v1961, %v2075
        %v2226 = vadd.f32 %v1962, %v2080
        %v2227 = vadd.f32 %v1963, %v2085
        %v2228 = vadd.f32 %v1964, %v2090
        %v2229 = vadd.f32 %v1965, %v2095
        %v2230 = vadd.f32 %v1966, %v2100
        %v2231 = vadd.f32 %v1967, %v2105
        %v2232 = vadd.f32 %v1968, %v2110
        %v2233 = vadd.f32 %v1969, %v2115
        %v2234 = vadd.f32 %v1970, %v2120
        %v2235 = vadd.f32 %v1971, %v2125
        %v2236 = vadd.f32 %v1972, %v2130
        %v2237 = vadd.f32 %v1973, %v2135
        %v2238 = vadd.f32 %v1974, %v2140
        %v2239 = vadd.f32 %v1975, %v2145
        %v2240 = vadd.f32 %v1976, %v2150
        %v2241 = vadd.f32 %v1977, %v2155
        %v2242 = vadd.f32 %v1978, %v2160
        %v2243 = vadd.f32 %v1979, %v2165
        %v2244 = vadd.f32 %v1980, %v2170
        %v2245 = vadd.f32 %v1981, %v2175
        %v2246 = vadd.f32 %v1982, %v2180
        %v2247 = vadd.f32 %v1983, %v2185
        %v2248 = vadd.f32 %v1984, %v2190
        %v2249 = vadd.f32 %v1985, %v2195
        %v2250 = vadd.f32 %v1986, %v2200
        %v2251 = vadd.f32 %v1987, %v2205
        %v2252 = vadd.f32 %v1988, %v2210
        %v2253 = vadd.f32 %v1989, %v2215
        %v2254 = vadd.f32 %v1990, %v2220
        %vm2271 = vcmask 1046528
        %v2272 = vrot.slane %v400, 1
        %v2273 = vrot.slane %v401, 1
        %v2274 = vsel %vm2271, %v2272, %v2273
        %v2275 = vrot.slane %v402, 1
        %v2276 = vsel %vm2271, %v2273, %v2275
        %v2277 = vrot.slane %v404, 1
        %v2278 = vrot.slane %v405, 1
        %v2279 = vsel %vm2271, %v2277, %v2278
        %v2280 = vrot.slane %v406, 1
        %v2281 = vsel %vm2271, %v2278, %v2280
        %v2282 = vrot.slane %v408, 1
        %v2283 = vrot.slane %v409, 1
        %v2284 = vsel %vm2271, %v2282, %v2283
        %v2285 = vrot.slane %v410, 1
        %v2286 = vsel %vm2271, %v2283, %v2285
        %v2287 = vrot.slane %v412, 1
        %v2288 = vrot.slane %v413, 1
        %v2289 = vsel %vm2271, %v2287, %v2288
        %v2290 = vrot.slane %v414, 1
        %v2291 = vsel %vm2271, %v2288, %v2290
        %v2292 = vrot.slane %v416, 1
        %v2293 = vrot.slane %v417, 1
        %v2294 = vsel %vm2271, %v2292, %v2293
        %v2295 = vrot.slane %v418, 1
        %v2296 = vsel %vm2271, %v2293, %v2295
        %v2297 = vrot.slane %v420, 1
        %v2298 = vrot.slane %v421, 1
        %v2299 = vsel %vm2271, %v2297, %v2298
        %v2300 = vrot.slane %v422, 1
        %v2301 = vsel %vm2271, %v2298, %v2300
        %v2302 = vrot.slane %v424, 1
        %v2303 = vrot.slane %v425, 1
        %v2304 = vsel %vm2271, %v2302, %v2303
        %v2305 = vrot.slane %v426, 1
        %v2306 = vsel %vm2271, %v2303, %v2305
        %v2307 = vrot.slane %v428, 1
        %v2308 = vrot.slane %v429, 1
        %v2309 = vsel %vm2271, %v2307, %v2308
        %v2310 = vrot.slane %v430, 1
        %v2311 = vsel %vm2271, %v2308, %v2310
        %v2312 = vrot.slane %v432, 1
        %v2313 = vrot.slane %v433, 1
        %v2314 = vsel %vm2271, %v2312, %v2313
        %v2315 = vrot.slane %v434, 1
        %v2316 = vsel %vm2271, %v2313, %v2315
        %v2317 = vrot.slane %v436, 1
        %v2318 = vrot.slane %v437, 1
        %v2319 = vsel %vm2271, %v2317, %v2318
        %v2320 = vrot.slane %v438, 1
        %v2321 = vsel %vm2271, %v2318, %v2320
        %v2322 = vrot.slane %v440, 1
        %v2323 = vrot.slane %v441, 1
        %v2324 = vsel %vm2271, %v2322, %v2323
        %v2325 = vrot.slane %v442, 1
        %v2326 = vsel %vm2271, %v2323, %v2325
        %v2327 = vrot.slane %v444, 1
        %v2328 = vrot.slane %v445, 1
        %v2329 = vsel %vm2271, %v2327, %v2328
        %v2330 = vrot.slane %v446, 1
        %v2331 = vsel %vm2271, %v2328, %v2330
        %v2332 = vrot.slane %v448, 1
        %v2333 = vrot.slane %v449, 1
        %v2334 = vsel %vm2271, %v2332, %v2333
        %v2335 = vrot.slane %v450, 1
        %v2336 = vsel %vm2271, %v2333, %v2335
        %v2337 = vrot.slane %v452, 1
        %v2338 = vrot.slane %v453, 1
        %v2339 = vsel %vm2271, %v2337, %v2338
        %v2340 = vrot.slane %v454, 1
        %v2341 = vsel %vm2271, %v2338, %v2340
        %v2342 = vrot.slane %v456, 1
        %v2343 = vrot.slane %v457, 1
        %v2344 = vsel %vm2271, %v2342, %v2343
        %v2345 = vrot.slane %v458, 1
        %v2346 = vsel %vm2271, %v2343, %v2345
        %v2347 = vrot.slane %v460, 1
        %v2348 = vrot.slane %v461, 1
        %v2349 = vsel %vm2271, %v2347, %v2348
        %v2350 = vrot.slane %v462, 1
        %v2351 = vsel %vm2271, %v2348, %v2350
        %s2352 = scalar_lea.vmem %s227, 32 [#allocation6]
        %v2353 = vld [vmem:[%s2352] sm:$0xff]
        %v2354 = vld [vmem:[%s2352 + $0x8] sm:$0xff]
        %v2355 = vsel %vm261, %v2274, 0
        %v2357 = vsel %vm261, %v2276, 0
        %v2359 = vsel %vm261, %v2279, 0
        %v2361 = vsel %vm261, %v2281, 0
        %v2363 = vsel %vm261, %v2284, 0
        %v2365 = vsel %vm261, %v2286, 0
        %v2367 = vsel %vm261, %v2289, 0
        %v2369 = vsel %vm261, %v2291, 0
        %v2371 = vsel %vm261, %v2294, 0
        %v2373 = vsel %vm261, %v2296, 0
        %v2375 = vsel %vm261, %v2299, 0
        %v2377 = vsel %vm261, %v2301, 0
        %v2379 = vsel %vm261, %v2304, 0
        %v2381 = vsel %vm261, %v2306, 0
        %v2383 = vsel %vm261, %v2309, 0
        %v2385 = vsel %vm261, %v2311, 0
        %v2387 = vsel %vm261, %v2314, 0
        %v2389 = vsel %vm261, %v2316, 0
        %v2391 = vsel %vm261, %v2319, 0
        %v2393 = vsel %vm261, %v2321, 0
        %v2395 = vsel %vm261, %v2324, 0
        %v2397 = vsel %vm261, %v2326, 0
        %v2399 = vsel %vm261, %v2329, 0
        %v2401 = vsel %vm261, %v2331, 0
        %v2403 = vsel %vm261, %v2334, 0
        %v2405 = vsel %vm261, %v2336, 0
        %v2407 = vsel %vm261, %v2339, 0
        %v2409 = vsel %vm261, %v2341, 0
        %v2411 = vsel %vm261, %v2344, 0
        %v2413 = vsel %vm261, %v2346, 0
        %v2415 = vsel %vm261, %v2349, 0
        %v2417 = vsel %vm261, %v2351, 0
        %2419 = vmatprep.subr.mxu0 0.0
        %2420 = vmatpush1.msra.mxu0 0.0
        %2421 = vmatprep.subr.mxu0 0.0
        %2422 = vmatpush1.msra.mxu0 0.0
        %2423 = vmatprep.subr.mxu0 0.0
        %2424 = vmatpush1.msra.mxu0 0.0
        %2425 = vmatprep.subr.mxu0 0.0
        %2426 = vmatpush1.msra.mxu0 0.0
        %2427 = vmatprep.subr.mxu0 0.0
        %2428 = vmatpush1.msra.mxu0 0.0
        %2429 = vmatprep.subr.mxu0 0.0
        %2430 = vmatpush1.msra.mxu0 0.0
        %2431 = vmatprep.subr.mxu0 0.0
        %2432 = vmatpush1.msra.mxu0 0.0
        %2433 = vmatprep.subr.mxu0 0.0
        %2434 = vmatpush1.msra.mxu0 0.0
        %2435 = vmatprep.subr.mxu0 0.0
        %2436 = vmatpush1.msra.mxu0 0.0
        %2437 = vmatprep.subr.mxu0 0.0
        %2438 = vmatpush1.msra.mxu0 0.0
        %2439 = vmatprep.subr.mxu0 0.0
        %2440 = vmatpush1.msra.mxu0 0.0
        %2441 = vmatprep.subr.mxu0 0.0
        %2442 = vmatpush1.msra.mxu0 0.0
        %2443 = vmatprep.subr.mxu0 0.0
        %2444 = vmatpush1.msra.mxu0 0.0
        %2445 = vmatprep.subr.mxu0 0.0
        %2446 = vmatpush1.msra.mxu0 0.0
        %2447 = vmatprep.subr.mxu0 0.0
        %2448 = vmatpush1.msra.mxu0 %v2354
        %2449 = vmatprep.subr.mxu0 0.0
        %2450 = vmatpush1.msra.mxu0 %v2353
        %2451 = vmatprep.subr.mxu0 0.0
        %2452 = vmatpush2.msra.mxu0 0.0
        %2453 = vmatprep.subr.mxu0 0.0
        %2454 = vmatpush2.msra.mxu0 0.0
        %2455 = vmatprep.subr.mxu0 0.0
        %2456 = vmatpush2.msra.mxu0 0.0
        %2457 = vmatprep.subr.mxu0 0.0
        %2458 = vmatpush2.msra.mxu0 0.0
        %2459 = vmatprep.subr.mxu0 0.0
        %2460 = vmatpush2.msra.mxu0 0.0
        %2461 = vmatprep.subr.mxu0 0.0
        %2462 = vmatpush2.msra.mxu0 0.0
        %2463 = vmatprep.subr.mxu0 0.0
        %2464 = vmatpush2.msra.mxu0 0.0
        %2465 = vmatprep.subr.mxu0 0.0
        %2466 = vmatpush2.msra.mxu0 0.0
        %2467 = vmatprep.subr.mxu0 0.0
        %2468 = vmatpush2.msra.mxu0 0.0
        %2469 = vmatprep.subr.mxu0 0.0
        %2470 = vmatpush2.msra.mxu0 0.0
        %2471 = vmatprep.subr.mxu0 0.0
        %2472 = vmatpush2.msra.mxu0 0.0
        %2473 = vmatprep.subr.mxu0 0.0
        %2474 = vmatpush2.msra.mxu0 0.0
        %2475 = vmatprep.subr.mxu0 0.0
        %2476 = vmatpush2.msra.mxu0 0.0
        %2477 = vmatprep.subr.mxu0 0.0
        %2478 = vmatpush2.msra.mxu0 0.0
        %2479 = vmatprep.subr.mxu0 0.0
        %2480 = vmatpush2.msra.mxu0 0.0
        %2481 = vmatprep.subr.mxu0 0.0
        %2482 = vmatpush2.msra.mxu0 0.0
        %2483 = vmatprep.mubr.f32.mxu0 0.0
        %2484 = vmatmul.mubr.f32.gmra.mxu0 %v2355
        %v2485 = vpop.f32.mrf.mxu0
        %v2486 = vadd.f32 0.0, %v2485
        %v2487 = vpop.f32.mrf.mxu0
        %2488 = vmatprep.mubr.f32.mxu0 0.0
        %2489 = vmatmul.mubr.f32.gmra.mxu0 %v2357
        %v2490 = vpop.f32.mrf.mxu0
        %v2491 = vadd.f32 0.0, %v2490
        %v2492 = vpop.f32.mrf.mxu0
        %2493 = vmatprep.mubr.f32.mxu0 0.0
        %2494 = vmatmul.mubr.f32.gmra.mxu0 %v2359
        %v2495 = vpop.f32.mrf.mxu0
        %v2496 = vadd.f32 0.0, %v2495
        %v2497 = vpop.f32.mrf.mxu0
        %2498 = vmatprep.mubr.f32.mxu0 0.0
        %2499 = vmatmul.mubr.f32.gmra.mxu0 %v2361
        %v2500 = vpop.f32.mrf.mxu0
        %v2501 = vadd.f32 0.0, %v2500
        %v2502 = vpop.f32.mrf.mxu0
        %2503 = vmatprep.mubr.f32.mxu0 0.0
        %2504 = vmatmul.mubr.f32.gmra.mxu0 %v2363
        %v2505 = vpop.f32.mrf.mxu0
        %v2506 = vadd.f32 0.0, %v2505
        %v2507 = vpop.f32.mrf.mxu0
        %2508 = vmatprep.mubr.f32.mxu0 0.0
        %2509 = vmatmul.mubr.f32.gmra.mxu0 %v2365
        %v2510 = vpop.f32.mrf.mxu0
        %v2511 = vadd.f32 0.0, %v2510
        %v2512 = vpop.f32.mrf.mxu0
        %2513 = vmatprep.mubr.f32.mxu0 0.0
        %2514 = vmatmul.mubr.f32.gmra.mxu0 %v2367
        %v2515 = vpop.f32.mrf.mxu0
        %v2516 = vadd.f32 0.0, %v2515
        %v2517 = vpop.f32.mrf.mxu0
        %2518 = vmatprep.mubr.f32.mxu0 0.0
        %2519 = vmatmul.mubr.f32.gmra.mxu0 %v2369
        %v2520 = vpop.f32.mrf.mxu0
        %v2521 = vadd.f32 0.0, %v2520
        %v2522 = vpop.f32.mrf.mxu0
        %2523 = vmatprep.mubr.f32.mxu0 0.0
        %2524 = vmatmul.mubr.f32.gmra.mxu0 %v2371
        %v2525 = vpop.f32.mrf.mxu0
        %v2526 = vadd.f32 0.0, %v2525
        %v2527 = vpop.f32.mrf.mxu0
        %2528 = vmatprep.mubr.f32.mxu0 0.0
        %2529 = vmatmul.mubr.f32.gmra.mxu0 %v2373
        %v2530 = vpop.f32.mrf.mxu0
        %v2531 = vadd.f32 0.0, %v2530
        %v2532 = vpop.f32.mrf.mxu0
        %2533 = vmatprep.mubr.f32.mxu0 0.0
        %2534 = vmatmul.mubr.f32.gmra.mxu0 %v2375
        %v2535 = vpop.f32.mrf.mxu0
        %v2536 = vadd.f32 0.0, %v2535
        %v2537 = vpop.f32.mrf.mxu0
        %2538 = vmatprep.mubr.f32.mxu0 0.0
        %2539 = vmatmul.mubr.f32.gmra.mxu0 %v2377
        %v2540 = vpop.f32.mrf.mxu0
        %v2541 = vadd.f32 0.0, %v2540
        %v2542 = vpop.f32.mrf.mxu0
        %2543 = vmatprep.mubr.f32.mxu0 0.0
        %2544 = vmatmul.mubr.f32.gmra.mxu0 %v2379
        %v2545 = vpop.f32.mrf.mxu0
        %v2546 = vadd.f32 0.0, %v2545
        %v2547 = vpop.f32.mrf.mxu0
        %2548 = vmatprep.mubr.f32.mxu0 0.0
        %2549 = vmatmul.mubr.f32.gmra.mxu0 %v2381
        %v2550 = vpop.f32.mrf.mxu0
        %v2551 = vadd.f32 0.0, %v2550
        %v2552 = vpop.f32.mrf.mxu0
        %2553 = vmatprep.mubr.f32.mxu0 0.0
        %2554 = vmatmul.mubr.f32.gmra.mxu0 %v2383
        %v2555 = vpop.f32.mrf.mxu0
        %v2556 = vadd.f32 0.0, %v2555
        %v2557 = vpop.f32.mrf.mxu0
        %2558 = vmatprep.mubr.f32.mxu0 0.0
        %2559 = vmatmul.mubr.f32.gmra.mxu0 %v2385
        %v2560 = vpop.f32.mrf.mxu0
        %v2561 = vadd.f32 0.0, %v2560
        %v2562 = vpop.f32.mrf.mxu0
        %2563 = vmatprep.mubr.f32.mxu0 0.0
        %2564 = vmatmul.mubr.f32.gmra.mxu0 %v2387
        %v2565 = vpop.f32.mrf.mxu0
        %v2566 = vadd.f32 0.0, %v2565
        %v2567 = vpop.f32.mrf.mxu0
        %2568 = vmatprep.mubr.f32.mxu0 0.0
        %2569 = vmatmul.mubr.f32.gmra.mxu0 %v2389
        %v2570 = vpop.f32.mrf.mxu0
        %v2571 = vadd.f32 0.0, %v2570
        %v2572 = vpop.f32.mrf.mxu0
        %2573 = vmatprep.mubr.f32.mxu0 0.0
        %2574 = vmatmul.mubr.f32.gmra.mxu0 %v2391
        %v2575 = vpop.f32.mrf.mxu0
        %v2576 = vadd.f32 0.0, %v2575
        %v2577 = vpop.f32.mrf.mxu0
        %2578 = vmatprep.mubr.f32.mxu0 0.0
        %2579 = vmatmul.mubr.f32.gmra.mxu0 %v2393
        %v2580 = vpop.f32.mrf.mxu0
        %v2581 = vadd.f32 0.0, %v2580
        %v2582 = vpop.f32.mrf.mxu0
        %2583 = vmatprep.mubr.f32.mxu0 0.0
        %2584 = vmatmul.mubr.f32.gmra.mxu0 %v2395
        %v2585 = vpop.f32.mrf.mxu0
        %v2586 = vadd.f32 0.0, %v2585
        %v2587 = vpop.f32.mrf.mxu0
        %2588 = vmatprep.mubr.f32.mxu0 0.0
        %2589 = vmatmul.mubr.f32.gmra.mxu0 %v2397
        %v2590 = vpop.f32.mrf.mxu0
        %v2591 = vadd.f32 0.0, %v2590
        %v2592 = vpop.f32.mrf.mxu0
        %2593 = vmatprep.mubr.f32.mxu0 0.0
        %2594 = vmatmul.mubr.f32.gmra.mxu0 %v2399
        %v2595 = vpop.f32.mrf.mxu0
        %v2596 = vadd.f32 0.0, %v2595
        %v2597 = vpop.f32.mrf.mxu0
        %2598 = vmatprep.mubr.f32.mxu0 0.0
        %2599 = vmatmul.mubr.f32.gmra.mxu0 %v2401
        %v2600 = vpop.f32.mrf.mxu0
        %v2601 = vadd.f32 0.0, %v2600
        %v2602 = vpop.f32.mrf.mxu0
        %2603 = vmatprep.mubr.f32.mxu0 0.0
        %2604 = vmatmul.mubr.f32.gmra.mxu0 %v2403
        %v2605 = vpop.f32.mrf.mxu0
        %v2606 = vadd.f32 0.0, %v2605
        %v2607 = vpop.f32.mrf.mxu0
        %2608 = vmatprep.mubr.f32.mxu0 0.0
        %2609 = vmatmul.mubr.f32.gmra.mxu0 %v2405
        %v2610 = vpop.f32.mrf.mxu0
        %v2611 = vadd.f32 0.0, %v2610
        %v2612 = vpop.f32.mrf.mxu0
        %2613 = vmatprep.mubr.f32.mxu0 0.0
        %2614 = vmatmul.mubr.f32.gmra.mxu0 %v2407
        %v2615 = vpop.f32.mrf.mxu0
        %v2616 = vadd.f32 0.0, %v2615
        %v2617 = vpop.f32.mrf.mxu0
        %2618 = vmatprep.mubr.f32.mxu0 0.0
        %2619 = vmatmul.mubr.f32.gmra.mxu0 %v2409
        %v2620 = vpop.f32.mrf.mxu0
        %v2621 = vadd.f32 0.0, %v2620
        %v2622 = vpop.f32.mrf.mxu0
        %2623 = vmatprep.mubr.f32.mxu0 0.0
        %2624 = vmatmul.mubr.f32.gmra.mxu0 %v2411
        %v2625 = vpop.f32.mrf.mxu0
        %v2626 = vadd.f32 0.0, %v2625
        %v2627 = vpop.f32.mrf.mxu0
        %2628 = vmatprep.mubr.f32.mxu0 0.0
        %2629 = vmatmul.mubr.f32.gmra.mxu0 %v2413
        %v2630 = vpop.f32.mrf.mxu0
        %v2631 = vadd.f32 0.0, %v2630
        %v2632 = vpop.f32.mrf.mxu0
        %2633 = vmatprep.mubr.f32.mxu0 0.0
        %2634 = vmatmul.mubr.f32.gmra.mxu0 %v2415
        %v2635 = vpop.f32.mrf.mxu0
        %v2636 = vadd.f32 0.0, %v2635
        %v2637 = vpop.f32.mrf.mxu0
        %2638 = vmatprep.mubr.f32.mxu0 0.0
        %2639 = vmatmul.mubr.f32.gmra.mxu0 %v2417
        %v2640 = vpop.f32.mrf.mxu0
        %v2641 = vadd.f32 0.0, %v2640
        %v2642 = vpop.f32.mrf.mxu0
        %2643 = vdwg.mxu0
        %v2644 = vadd.f32 %v2223, %v2486
        %v2645 = vadd.f32 %v2224, %v2491
        %v2646 = vadd.f32 %v2225, %v2496
        %v2647 = vadd.f32 %v2226, %v2501
        %v2648 = vadd.f32 %v2227, %v2506
        %v2649 = vadd.f32 %v2228, %v2511
        %v2650 = vadd.f32 %v2229, %v2516
        %v2651 = vadd.f32 %v2230, %v2521
        %v2652 = vadd.f32 %v2231, %v2526
        %v2653 = vadd.f32 %v2232, %v2531
        %v2654 = vadd.f32 %v2233, %v2536
        %v2655 = vadd.f32 %v2234, %v2541
        %v2656 = vadd.f32 %v2235, %v2546
        %v2657 = vadd.f32 %v2236, %v2551
        %v2658 = vadd.f32 %v2237, %v2556
        %v2659 = vadd.f32 %v2238, %v2561
        %v2660 = vadd.f32 %v2239, %v2566
        %v2661 = vadd.f32 %v2240, %v2571
        %v2662 = vadd.f32 %v2241, %v2576
        %v2663 = vadd.f32 %v2242, %v2581
        %v2664 = vadd.f32 %v2243, %v2586
        %v2665 = vadd.f32 %v2244, %v2591
        %v2666 = vadd.f32 %v2245, %v2596
        %v2667 = vadd.f32 %v2246, %v2601
        %v2668 = vadd.f32 %v2247, %v2606
        %v2669 = vadd.f32 %v2248, %v2611
        %v2670 = vadd.f32 %v2249, %v2616
        %v2671 = vadd.f32 %v2250, %v2621
        %v2672 = vadd.f32 %v2251, %v2626
        %v2673 = vadd.f32 %v2252, %v2631
        %v2674 = vadd.f32 %v2253, %v2636
        %v2675 = vadd.f32 %v2254, %v2641
        %v2677 = vrot.slane %v464, 1
        %v2678 = vrot.slane %v465, 1
        %v2679 = vsel %vm2271, %v2677, %v2678
        %v2680 = vrot.slane %v466, 1
        %v2681 = vsel %vm2271, %v2678, %v2680
        %s2682 = scalar_lea.vmem %s227, 80 [#allocation6]
        %v2683 = vld [vmem:[%s2682] sm:$0xff]
        %v2684 = vld [vmem:[%s2682 + $0x8] sm:$0xff]
        %v2685 = vsel %vm261, %v2679, 0
        %v2687 = vsel %vm261, %v2681, 0
        %2689 = vmatprep.subr.mxu0 0.0
        %2690 = vmatpush1.msra.mxu0 0.0
        %2691 = vmatprep.subr.mxu0 0.0
        %2692 = vmatpush1.msra.mxu0 0.0
        %2693 = vmatprep.subr.mxu0 0.0
        %2694 = vmatpush1.msra.mxu0 0.0
        %2695 = vmatprep.subr.mxu0 0.0
        %2696 = vmatpush1.msra.mxu0 0.0
        %2697 = vmatprep.subr.mxu0 0.0
        %2698 = vmatpush1.msra.mxu0 0.0
        %2699 = vmatprep.subr.mxu0 0.0
        %2700 = vmatpush1.msra.mxu0 0.0
        %2701 = vmatprep.subr.mxu0 0.0
        %2702 = vmatpush1.msra.mxu0 0.0
        %2703 = vmatprep.subr.mxu0 0.0
        %2704 = vmatpush1.msra.mxu0 0.0
        %2705 = vmatprep.subr.mxu0 0.0
        %2706 = vmatpush1.msra.mxu0 0.0
        %2707 = vmatprep.subr.mxu0 0.0
        %2708 = vmatpush1.msra.mxu0 0.0
        %2709 = vmatprep.subr.mxu0 0.0
        %2710 = vmatpush1.msra.mxu0 0.0
        %2711 = vmatprep.subr.mxu0 0.0
        %2712 = vmatpush1.msra.mxu0 0.0
        %2713 = vmatprep.subr.mxu0 0.0
        %2714 = vmatpush1.msra.mxu0 0.0
        %2715 = vmatprep.subr.mxu0 0.0
        %2716 = vmatpush1.msra.mxu0 0.0
        %2717 = vmatprep.subr.mxu0 0.0
        %2718 = vmatpush1.msra.mxu0 %v2684
        %2719 = vmatprep.subr.mxu0 0.0
        %2720 = vmatpush1.msra.mxu0 %v2683
        %2721 = vmatprep.subr.mxu0 0.0
        %2722 = vmatpush2.msra.mxu0 0.0
        %2723 = vmatprep.subr.mxu0 0.0
        %2724 = vmatpush2.msra.mxu0 0.0
        %2725 = vmatprep.subr.mxu0 0.0
        %2726 = vmatpush2.msra.mxu0 0.0
        %2727 = vmatprep.subr.mxu0 0.0
        %2728 = vmatpush2.msra.mxu0 0.0
        %2729 = vmatprep.subr.mxu0 0.0
        %2730 = vmatpush2.msra.mxu0 0.0
        %2731 = vmatprep.subr.mxu0 0.0
        %2732 = vmatpush2.msra.mxu0 0.0
        %2733 = vmatprep.subr.mxu0 0.0
        %2734 = vmatpush2.msra.mxu0 0.0
        %2735 = vmatprep.subr.mxu0 0.0
        %2736 = vmatpush2.msra.mxu0 0.0
        %2737 = vmatprep.subr.mxu0 0.0
        %2738 = vmatpush2.msra.mxu0 0.0
        %2739 = vmatprep.subr.mxu0 0.0
        %2740 = vmatpush2.msra.mxu0 0.0
        %2741 = vmatprep.subr.mxu0 0.0
        %2742 = vmatpush2.msra.mxu0 0.0
        %2743 = vmatprep.subr.mxu0 0.0
        %2744 = vmatpush2.msra.mxu0 0.0
        %2745 = vmatprep.subr.mxu0 0.0
        %2746 = vmatpush2.msra.mxu0 0.0
        %2747 = vmatprep.subr.mxu0 0.0
        %2748 = vmatpush2.msra.mxu0 0.0
        %2749 = vmatprep.subr.mxu0 0.0
        %2750 = vmatpush2.msra.mxu0 0.0
        %2751 = vmatprep.subr.mxu0 0.0
        %2752 = vmatpush2.msra.mxu0 0.0
        %2753 = vmatprep.mubr.f32.mxu0 0.0
        %2754 = vmatmul.mubr.f32.gmra.mxu0 %v2359
        %v2755 = vpop.f32.mrf.mxu0
        %v2756 = vadd.f32 0.0, %v2755
        %v2757 = vpop.f32.mrf.mxu0
        %2758 = vmatprep.mubr.f32.mxu0 0.0
        %2759 = vmatmul.mubr.f32.gmra.mxu0 %v2361
        %v2760 = vpop.f32.mrf.mxu0
        %v2761 = vadd.f32 0.0, %v2760
        %v2762 = vpop.f32.mrf.mxu0
        %2763 = vmatprep.mubr.f32.mxu0 0.0
        %2764 = vmatmul.mubr.f32.gmra.mxu0 %v2363
        %v2765 = vpop.f32.mrf.mxu0
        %v2766 = vadd.f32 0.0, %v2765
        %v2767 = vpop.f32.mrf.mxu0
        %2768 = vmatprep.mubr.f32.mxu0 0.0
        %2769 = vmatmul.mubr.f32.gmra.mxu0 %v2365
        %v2770 = vpop.f32.mrf.mxu0
        %v2771 = vadd.f32 0.0, %v2770
        %v2772 = vpop.f32.mrf.mxu0
        %2773 = vmatprep.mubr.f32.mxu0 0.0
        %2774 = vmatmul.mubr.f32.gmra.mxu0 %v2367
        %v2775 = vpop.f32.mrf.mxu0
        %v2776 = vadd.f32 0.0, %v2775
        %v2777 = vpop.f32.mrf.mxu0
        %2778 = vmatprep.mubr.f32.mxu0 0.0
        %2779 = vmatmul.mubr.f32.gmra.mxu0 %v2369
        %v2780 = vpop.f32.mrf.mxu0
        %v2781 = vadd.f32 0.0, %v2780
        %v2782 = vpop.f32.mrf.mxu0
        %2783 = vmatprep.mubr.f32.mxu0 0.0
        %2784 = vmatmul.mubr.f32.gmra.mxu0 %v2371
        %v2785 = vpop.f32.mrf.mxu0
        %v2786 = vadd.f32 0.0, %v2785
        %v2787 = vpop.f32.mrf.mxu0
        %2788 = vmatprep.mubr.f32.mxu0 0.0
        %2789 = vmatmul.mubr.f32.gmra.mxu0 %v2373
        %v2790 = vpop.f32.mrf.mxu0
        %v2791 = vadd.f32 0.0, %v2790
        %v2792 = vpop.f32.mrf.mxu0
        %2793 = vmatprep.mubr.f32.mxu0 0.0
        %2794 = vmatmul.mubr.f32.gmra.mxu0 %v2375
        %v2795 = vpop.f32.mrf.mxu0
        %v2796 = vadd.f32 0.0, %v2795
        %v2797 = vpop.f32.mrf.mxu0
        %2798 = vmatprep.mubr.f32.mxu0 0.0
        %2799 = vmatmul.mubr.f32.gmra.mxu0 %v2377
        %v2800 = vpop.f32.mrf.mxu0
        %v2801 = vadd.f32 0.0, %v2800
        %v2802 = vpop.f32.mrf.mxu0
        %2803 = vmatprep.mubr.f32.mxu0 0.0
        %2804 = vmatmul.mubr.f32.gmra.mxu0 %v2379
        %v2805 = vpop.f32.mrf.mxu0
        %v2806 = vadd.f32 0.0, %v2805
        %v2807 = vpop.f32.mrf.mxu0
        %2808 = vmatprep.mubr.f32.mxu0 0.0
        %2809 = vmatmul.mubr.f32.gmra.mxu0 %v2381
        %v2810 = vpop.f32.mrf.mxu0
        %v2811 = vadd.f32 0.0, %v2810
        %v2812 = vpop.f32.mrf.mxu0
        %2813 = vmatprep.mubr.f32.mxu0 0.0
        %2814 = vmatmul.mubr.f32.gmra.mxu0 %v2383
        %v2815 = vpop.f32.mrf.mxu0
        %v2816 = vadd.f32 0.0, %v2815
        %v2817 = vpop.f32.mrf.mxu0
        %2818 = vmatprep.mubr.f32.mxu0 0.0
        %2819 = vmatmul.mubr.f32.gmra.mxu0 %v2385
        %v2820 = vpop.f32.mrf.mxu0
        %v2821 = vadd.f32 0.0, %v2820
        %v2822 = vpop.f32.mrf.mxu0
        %2823 = vmatprep.mubr.f32.mxu0 0.0
        %2824 = vmatmul.mubr.f32.gmra.mxu0 %v2387
        %v2825 = vpop.f32.mrf.mxu0
        %v2826 = vadd.f32 0.0, %v2825
        %v2827 = vpop.f32.mrf.mxu0
        %2828 = vmatprep.mubr.f32.mxu0 0.0
        %2829 = vmatmul.mubr.f32.gmra.mxu0 %v2389
        %v2830 = vpop.f32.mrf.mxu0
        %v2831 = vadd.f32 0.0, %v2830
        %v2832 = vpop.f32.mrf.mxu0
        %2833 = vmatprep.mubr.f32.mxu0 0.0
        %2834 = vmatmul.mubr.f32.gmra.mxu0 %v2391
        %v2835 = vpop.f32.mrf.mxu0
        %v2836 = vadd.f32 0.0, %v2835
        %v2837 = vpop.f32.mrf.mxu0
        %2838 = vmatprep.mubr.f32.mxu0 0.0
        %2839 = vmatmul.mubr.f32.gmra.mxu0 %v2393
        %v2840 = vpop.f32.mrf.mxu0
        %v2841 = vadd.f32 0.0, %v2840
        %v2842 = vpop.f32.mrf.mxu0
        %2843 = vmatprep.mubr.f32.mxu0 0.0
        %2844 = vmatmul.mubr.f32.gmra.mxu0 %v2395
        %v2845 = vpop.f32.mrf.mxu0
        %v2846 = vadd.f32 0.0, %v2845
        %v2847 = vpop.f32.mrf.mxu0
        %2848 = vmatprep.mubr.f32.mxu0 0.0
        %2849 = vmatmul.mubr.f32.gmra.mxu0 %v2397
        %v2850 = vpop.f32.mrf.mxu0
        %v2851 = vadd.f32 0.0, %v2850
        %v2852 = vpop.f32.mrf.mxu0
        %2853 = vmatprep.mubr.f32.mxu0 0.0
        %2854 = vmatmul.mubr.f32.gmra.mxu0 %v2399
        %v2855 = vpop.f32.mrf.mxu0
        %v2856 = vadd.f32 0.0, %v2855
        %v2857 = vpop.f32.mrf.mxu0
        %2858 = vmatprep.mubr.f32.mxu0 0.0
        %2859 = vmatmul.mubr.f32.gmra.mxu0 %v2401
        %v2860 = vpop.f32.mrf.mxu0
        %v2861 = vadd.f32 0.0, %v2860
        %v2862 = vpop.f32.mrf.mxu0
        %2863 = vmatprep.mubr.f32.mxu0 0.0
        %2864 = vmatmul.mubr.f32.gmra.mxu0 %v2403
        %v2865 = vpop.f32.mrf.mxu0
        %v2866 = vadd.f32 0.0, %v2865
        %v2867 = vpop.f32.mrf.mxu0
        %2868 = vmatprep.mubr.f32.mxu0 0.0
        %2869 = vmatmul.mubr.f32.gmra.mxu0 %v2405
        %v2870 = vpop.f32.mrf.mxu0
        %v2871 = vadd.f32 0.0, %v2870
        %v2872 = vpop.f32.mrf.mxu0
        %2873 = vmatprep.mubr.f32.mxu0 0.0
        %2874 = vmatmul.mubr.f32.gmra.mxu0 %v2407
        %v2875 = vpop.f32.mrf.mxu0
        %v2876 = vadd.f32 0.0, %v2875
        %v2877 = vpop.f32.mrf.mxu0
        %2878 = vmatprep.mubr.f32.mxu0 0.0
        %2879 = vmatmul.mubr.f32.gmra.mxu0 %v2409
        %v2880 = vpop.f32.mrf.mxu0
        %v2881 = vadd.f32 0.0, %v2880
        %v2882 = vpop.f32.mrf.mxu0
        %2883 = vmatprep.mubr.f32.mxu0 0.0
        %2884 = vmatmul.mubr.f32.gmra.mxu0 %v2411
        %v2885 = vpop.f32.mrf.mxu0
        %v2886 = vadd.f32 0.0, %v2885
        %v2887 = vpop.f32.mrf.mxu0
        %2888 = vmatprep.mubr.f32.mxu0 0.0
        %2889 = vmatmul.mubr.f32.gmra.mxu0 %v2413
        %v2890 = vpop.f32.mrf.mxu0
        %v2891 = vadd.f32 0.0, %v2890
        %v2892 = vpop.f32.mrf.mxu0
        %2893 = vmatprep.mubr.f32.mxu0 0.0
        %2894 = vmatmul.mubr.f32.gmra.mxu0 %v2415
        %v2895 = vpop.f32.mrf.mxu0
        %v2896 = vadd.f32 0.0, %v2895
        %v2897 = vpop.f32.mrf.mxu0
        %2898 = vmatprep.mubr.f32.mxu0 0.0
        %2899 = vmatmul.mubr.f32.gmra.mxu0 %v2417
        %v2900 = vpop.f32.mrf.mxu0
        %v2901 = vadd.f32 0.0, %v2900
        %v2902 = vpop.f32.mrf.mxu0
        %2903 = vmatprep.mubr.f32.mxu0 0.0
        %2904 = vmatmul.mubr.f32.gmra.mxu0 %v2685
        %v2905 = vpop.f32.mrf.mxu0
        %v2906 = vadd.f32 0.0, %v2905
        %v2907 = vpop.f32.mrf.mxu0
        %2908 = vmatprep.mubr.f32.mxu0 0.0
        %2909 = vmatmul.mubr.f32.gmra.mxu0 %v2687
        %v2910 = vpop.f32.mrf.mxu0
        %v2911 = vadd.f32 0.0, %v2910
        %v2912 = vpop.f32.mrf.mxu0
        %2913 = vdwg.mxu0
        %v2914 = vadd.f32 %v2644, %v2756
        %v2915 = vadd.f32 %v2645, %v2761
        %v2916 = vadd.f32 %v2646, %v2766
        %v2917 = vadd.f32 %v2647, %v2771
        %v2918 = vadd.f32 %v2648, %v2776
        %v2919 = vadd.f32 %v2649, %v2781
        %v2920 = vadd.f32 %v2650, %v2786
        %v2921 = vadd.f32 %v2651, %v2791
        %v2922 = vadd.f32 %v2652, %v2796
        %v2923 = vadd.f32 %v2653, %v2801
        %v2924 = vadd.f32 %v2654, %v2806
        %v2925 = vadd.f32 %v2655, %v2811
        %v2926 = vadd.f32 %v2656, %v2816
        %v2927 = vadd.f32 %v2657, %v2821
        %v2928 = vadd.f32 %v2658, %v2826
        %v2929 = vadd.f32 %v2659, %v2831
        %v2930 = vadd.f32 %v2660, %v2836
        %v2931 = vadd.f32 %v2661, %v2841
        %v2932 = vadd.f32 %v2662, %v2846
        %v2933 = vadd.f32 %v2663, %v2851
        %v2934 = vadd.f32 %v2664, %v2856
        %v2935 = vadd.f32 %v2665, %v2861
        %v2936 = vadd.f32 %v2666, %v2866
        %v2937 = vadd.f32 %v2667, %v2871
        %v2938 = vadd.f32 %v2668, %v2876
        %v2939 = vadd.f32 %v2669, %v2881
        %v2940 = vadd.f32 %v2670, %v2886
        %v2941 = vadd.f32 %v2671, %v2891
        %v2942 = vadd.f32 %v2672, %v2896
        %v2943 = vadd.f32 %v2673, %v2901
        %v2944 = vadd.f32 %v2674, %v2906
        %v2945 = vadd.f32 %v2675, %v2911
        %v2947 = vrot.slane %v468, 1
        %v2948 = vrot.slane %v469, 1
        %v2949 = vsel %vm2271, %v2947, %v2948
        %v2950 = vrot.slane %v470, 1
        %v2951 = vsel %vm2271, %v2948, %v2950
        %s2952 = scalar_lea.vmem %s227, 128 [#allocation6]
        %v2953 = vld [vmem:[%s2952] sm:$0xff]
        %v2954 = vld [vmem:[%s2952 + $0x8] sm:$0xff]
        %v2955 = vsel %vm261, %v2949, 0
        %v2957 = vsel %vm261, %v2951, 0
        %2959 = vmatprep.subr.mxu0 0.0
        %2960 = vmatpush1.msra.mxu0 0.0
        %2961 = vmatprep.subr.mxu0 0.0
        %2962 = vmatpush1.msra.mxu0 0.0
        %2963 = vmatprep.subr.mxu0 0.0
        %2964 = vmatpush1.msra.mxu0 0.0
        %2965 = vmatprep.subr.mxu0 0.0
        %2966 = vmatpush1.msra.mxu0 0.0
        %2967 = vmatprep.subr.mxu0 0.0
        %2968 = vmatpush1.msra.mxu0 0.0
        %2969 = vmatprep.subr.mxu0 0.0
        %2970 = vmatpush1.msra.mxu0 0.0
        %2971 = vmatprep.subr.mxu0 0.0
        %2972 = vmatpush1.msra.mxu0 0.0
        %2973 = vmatprep.subr.mxu0 0.0
        %2974 = vmatpush1.msra.mxu0 0.0
        %2975 = vmatprep.subr.mxu0 0.0
        %2976 = vmatpush1.msra.mxu0 0.0
        %2977 = vmatprep.subr.mxu0 0.0
        %2978 = vmatpush1.msra.mxu0 0.0
        %2979 = vmatprep.subr.mxu0 0.0
        %2980 = vmatpush1.msra.mxu0 0.0
        %2981 = vmatprep.subr.mxu0 0.0
        %2982 = vmatpush1.msra.mxu0 0.0
        %2983 = vmatprep.subr.mxu0 0.0
        %2984 = vmatpush1.msra.mxu0 0.0
        %2985 = vmatprep.subr.mxu0 0.0
        %2986 = vmatpush1.msra.mxu0 0.0
        %2987 = vmatprep.subr.mxu0 0.0
        %2988 = vmatpush1.msra.mxu0 %v2954
        %2989 = vmatprep.subr.mxu0 0.0
        %2990 = vmatpush1.msra.mxu0 %v2953
        %2991 = vmatprep.subr.mxu0 0.0
        %2992 = vmatpush2.msra.mxu0 0.0
        %2993 = vmatprep.subr.mxu0 0.0
        %2994 = vmatpush2.msra.mxu0 0.0
        %2995 = vmatprep.subr.mxu0 0.0
        %2996 = vmatpush2.msra.mxu0 0.0
        %2997 = vmatprep.subr.mxu0 0.0
        %2998 = vmatpush2.msra.mxu0 0.0
        %2999 = vmatprep.subr.mxu0 0.0
        %3000 = vmatpush2.msra.mxu0 0.0
        %3001 = vmatprep.subr.mxu0 0.0
        %3002 = vmatpush2.msra.mxu0 0.0
        %3003 = vmatprep.subr.mxu0 0.0
        %3004 = vmatpush2.msra.mxu0 0.0
        %3005 = vmatprep.subr.mxu0 0.0
        %3006 = vmatpush2.msra.mxu0 0.0
        %3007 = vmatprep.subr.mxu0 0.0
        %3008 = vmatpush2.msra.mxu0 0.0
        %3009 = vmatprep.subr.mxu0 0.0
        %3010 = vmatpush2.msra.mxu0 0.0
        %3011 = vmatprep.subr.mxu0 0.0
        %3012 = vmatpush2.msra.mxu0 0.0
        %3013 = vmatprep.subr.mxu0 0.0
        %3014 = vmatpush2.msra.mxu0 0.0
        %3015 = vmatprep.subr.mxu0 0.0
        %3016 = vmatpush2.msra.mxu0 0.0
        %3017 = vmatprep.subr.mxu0 0.0
        %3018 = vmatpush2.msra.mxu0 0.0
        %3019 = vmatprep.subr.mxu0 0.0
        %3020 = vmatpush2.msra.mxu0 0.0
        %3021 = vmatprep.subr.mxu0 0.0
        %3022 = vmatpush2.msra.mxu0 0.0
        %3023 = vmatprep.mubr.f32.mxu0 0.0
        %3024 = vmatmul.mubr.f32.gmra.mxu0 %v2363
        %v3025 = vpop.f32.mrf.mxu0
        %v3026 = vadd.f32 0.0, %v3025
        %v3027 = vpop.f32.mrf.mxu0
        %3028 = vmatprep.mubr.f32.mxu0 0.0
        %3029 = vmatmul.mubr.f32.gmra.mxu0 %v2365
        %v3030 = vpop.f32.mrf.mxu0
        %v3031 = vadd.f32 0.0, %v3030
        %v3032 = vpop.f32.mrf.mxu0
        %3033 = vmatprep.mubr.f32.mxu0 0.0
        %3034 = vmatmul.mubr.f32.gmra.mxu0 %v2367
        %v3035 = vpop.f32.mrf.mxu0
        %v3036 = vadd.f32 0.0, %v3035
        %v3037 = vpop.f32.mrf.mxu0
        %3038 = vmatprep.mubr.f32.mxu0 0.0
        %3039 = vmatmul.mubr.f32.gmra.mxu0 %v2369
        %v3040 = vpop.f32.mrf.mxu0
        %v3041 = vadd.f32 0.0, %v3040
        %v3042 = vpop.f32.mrf.mxu0
        %3043 = vmatprep.mubr.f32.mxu0 0.0
        %3044 = vmatmul.mubr.f32.gmra.mxu0 %v2371
        %v3045 = vpop.f32.mrf.mxu0
        %v3046 = vadd.f32 0.0, %v3045
        %v3047 = vpop.f32.mrf.mxu0
        %3048 = vmatprep.mubr.f32.mxu0 0.0
        %3049 = vmatmul.mubr.f32.gmra.mxu0 %v2373
        %v3050 = vpop.f32.mrf.mxu0
        %v3051 = vadd.f32 0.0, %v3050
        %v3052 = vpop.f32.mrf.mxu0
        %3053 = vmatprep.mubr.f32.mxu0 0.0
        %3054 = vmatmul.mubr.f32.gmra.mxu0 %v2375
        %v3055 = vpop.f32.mrf.mxu0
        %v3056 = vadd.f32 0.0, %v3055
        %v3057 = vpop.f32.mrf.mxu0
        %3058 = vmatprep.mubr.f32.mxu0 0.0
        %3059 = vmatmul.mubr.f32.gmra.mxu0 %v2377
        %v3060 = vpop.f32.mrf.mxu0
        %v3061 = vadd.f32 0.0, %v3060
        %v3062 = vpop.f32.mrf.mxu0
        %3063 = vmatprep.mubr.f32.mxu0 0.0
        %3064 = vmatmul.mubr.f32.gmra.mxu0 %v2379
        %v3065 = vpop.f32.mrf.mxu0
        %v3066 = vadd.f32 0.0, %v3065
        %v3067 = vpop.f32.mrf.mxu0
        %3068 = vmatprep.mubr.f32.mxu0 0.0
        %3069 = vmatmul.mubr.f32.gmra.mxu0 %v2381
        %v3070 = vpop.f32.mrf.mxu0
        %v3071 = vadd.f32 0.0, %v3070
        %v3072 = vpop.f32.mrf.mxu0
        %3073 = vmatprep.mubr.f32.mxu0 0.0
        %3074 = vmatmul.mubr.f32.gmra.mxu0 %v2383
        %v3075 = vpop.f32.mrf.mxu0
        %v3076 = vadd.f32 0.0, %v3075
        %v3077 = vpop.f32.mrf.mxu0
        %3078 = vmatprep.mubr.f32.mxu0 0.0
        %3079 = vmatmul.mubr.f32.gmra.mxu0 %v2385
        %v3080 = vpop.f32.mrf.mxu0
        %v3081 = vadd.f32 0.0, %v3080
        %v3082 = vpop.f32.mrf.mxu0
        %3083 = vmatprep.mubr.f32.mxu0 0.0
        %3084 = vmatmul.mubr.f32.gmra.mxu0 %v2387
        %v3085 = vpop.f32.mrf.mxu0
        %v3086 = vadd.f32 0.0, %v3085
        %v3087 = vpop.f32.mrf.mxu0
        %3088 = vmatprep.mubr.f32.mxu0 0.0
        %3089 = vmatmul.mubr.f32.gmra.mxu0 %v2389
        %v3090 = vpop.f32.mrf.mxu0
        %v3091 = vadd.f32 0.0, %v3090
        %v3092 = vpop.f32.mrf.mxu0
        %3093 = vmatprep.mubr.f32.mxu0 0.0
        %3094 = vmatmul.mubr.f32.gmra.mxu0 %v2391
        %v3095 = vpop.f32.mrf.mxu0
        %v3096 = vadd.f32 0.0, %v3095
        %v3097 = vpop.f32.mrf.mxu0
        %3098 = vmatprep.mubr.f32.mxu0 0.0
        %3099 = vmatmul.mubr.f32.gmra.mxu0 %v2393
        %v3100 = vpop.f32.mrf.mxu0
        %v3101 = vadd.f32 0.0, %v3100
        %v3102 = vpop.f32.mrf.mxu0
        %3103 = vmatprep.mubr.f32.mxu0 0.0
        %3104 = vmatmul.mubr.f32.gmra.mxu0 %v2395
        %v3105 = vpop.f32.mrf.mxu0
        %v3106 = vadd.f32 0.0, %v3105
        %v3107 = vpop.f32.mrf.mxu0
        %3108 = vmatprep.mubr.f32.mxu0 0.0
        %3109 = vmatmul.mubr.f32.gmra.mxu0 %v2397
        %v3110 = vpop.f32.mrf.mxu0
        %v3111 = vadd.f32 0.0, %v3110
        %v3112 = vpop.f32.mrf.mxu0
        %3113 = vmatprep.mubr.f32.mxu0 0.0
        %3114 = vmatmul.mubr.f32.gmra.mxu0 %v2399
        %v3115 = vpop.f32.mrf.mxu0
        %v3116 = vadd.f32 0.0, %v3115
        %v3117 = vpop.f32.mrf.mxu0
        %3118 = vmatprep.mubr.f32.mxu0 0.0
        %3119 = vmatmul.mubr.f32.gmra.mxu0 %v2401
        %v3120 = vpop.f32.mrf.mxu0
        %v3121 = vadd.f32 0.0, %v3120
        %v3122 = vpop.f32.mrf.mxu0
        %3123 = vmatprep.mubr.f32.mxu0 0.0
        %3124 = vmatmul.mubr.f32.gmra.mxu0 %v2403
        %v3125 = vpop.f32.mrf.mxu0
        %v3126 = vadd.f32 0.0, %v3125
        %v3127 = vpop.f32.mrf.mxu0
        %3128 = vmatprep.mubr.f32.mxu0 0.0
        %3129 = vmatmul.mubr.f32.gmra.mxu0 %v2405
        %v3130 = vpop.f32.mrf.mxu0
        %v3131 = vadd.f32 0.0, %v3130
        %v3132 = vpop.f32.mrf.mxu0
        %3133 = vmatprep.mubr.f32.mxu0 0.0
        %3134 = vmatmul.mubr.f32.gmra.mxu0 %v2407
        %v3135 = vpop.f32.mrf.mxu0
        %v3136 = vadd.f32 0.0, %v3135
        %v3137 = vpop.f32.mrf.mxu0
        %3138 = vmatprep.mubr.f32.mxu0 0.0
        %3139 = vmatmul.mubr.f32.gmra.mxu0 %v2409
        %v3140 = vpop.f32.mrf.mxu0
        %v3141 = vadd.f32 0.0, %v3140
        %v3142 = vpop.f32.mrf.mxu0
        %3143 = vmatprep.mubr.f32.mxu0 0.0
        %3144 = vmatmul.mubr.f32.gmra.mxu0 %v2411
        %v3145 = vpop.f32.mrf.mxu0
        %v3146 = vadd.f32 0.0, %v3145
        %v3147 = vpop.f32.mrf.mxu0
        %3148 = vmatprep.mubr.f32.mxu0 0.0
        %3149 = vmatmul.mubr.f32.gmra.mxu0 %v2413
        %v3150 = vpop.f32.mrf.mxu0
        %v3151 = vadd.f32 0.0, %v3150
        %v3152 = vpop.f32.mrf.mxu0
        %3153 = vmatprep.mubr.f32.mxu0 0.0
        %3154 = vmatmul.mubr.f32.gmra.mxu0 %v2415
        %v3155 = vpop.f32.mrf.mxu0
        %v3156 = vadd.f32 0.0, %v3155
        %v3157 = vpop.f32.mrf.mxu0
        %3158 = vmatprep.mubr.f32.mxu0 0.0
        %3159 = vmatmul.mubr.f32.gmra.mxu0 %v2417
        %v3160 = vpop.f32.mrf.mxu0
        %v3161 = vadd.f32 0.0, %v3160
        %v3162 = vpop.f32.mrf.mxu0
        %3163 = vmatprep.mubr.f32.mxu0 0.0
        %3164 = vmatmul.mubr.f32.gmra.mxu0 %v2685
        %v3165 = vpop.f32.mrf.mxu0
        %v3166 = vadd.f32 0.0, %v3165
        %v3167 = vpop.f32.mrf.mxu0
        %3168 = vmatprep.mubr.f32.mxu0 0.0
        %3169 = vmatmul.mubr.f32.gmra.mxu0 %v2687
        %v3170 = vpop.f32.mrf.mxu0
        %v3171 = vadd.f32 0.0, %v3170
        %v3172 = vpop.f32.mrf.mxu0
        %3173 = vmatprep.mubr.f32.mxu0 0.0
        %3174 = vmatmul.mubr.f32.gmra.mxu0 %v2955
        %v3175 = vpop.f32.mrf.mxu0
        %v3176 = vadd.f32 0.0, %v3175
        %v3177 = vpop.f32.mrf.mxu0
        %3178 = vmatprep.mubr.f32.mxu0 0.0
        %3179 = vmatmul.mubr.f32.gmra.mxu0 %v2957
        %v3180 = vpop.f32.mrf.mxu0
        %v3181 = vadd.f32 0.0, %v3180
        %v3182 = vpop.f32.mrf.mxu0
        %3183 = vdwg.mxu0
        %v3184 = vadd.f32 %v2914, %v3026
        %v3185 = vadd.f32 %v2915, %v3031
        %v3186 = vadd.f32 %v2916, %v3036
        %v3187 = vadd.f32 %v2917, %v3041
        %v3188 = vadd.f32 %v2918, %v3046
        %v3189 = vadd.f32 %v2919, %v3051
        %v3190 = vadd.f32 %v2920, %v3056
        %v3191 = vadd.f32 %v2921, %v3061
        %v3192 = vadd.f32 %v2922, %v3066
        %v3193 = vadd.f32 %v2923, %v3071
        %v3194 = vadd.f32 %v2924, %v3076
        %v3195 = vadd.f32 %v2925, %v3081
        %v3196 = vadd.f32 %v2926, %v3086
        %v3197 = vadd.f32 %v2927, %v3091
        %v3198 = vadd.f32 %v2928, %v3096
        %v3199 = vadd.f32 %v2929, %v3101
        %v3200 = vadd.f32 %v2930, %v3106
        %v3201 = vadd.f32 %v2931, %v3111
        %v3202 = vadd.f32 %v2932, %v3116
        %v3203 = vadd.f32 %v2933, %v3121
        %v3204 = vadd.f32 %v2934, %v3126
        %v3205 = vadd.f32 %v2935, %v3131
        %v3206 = vadd.f32 %v2936, %v3136
        %v3207 = vadd.f32 %v2937, %v3141
        %v3208 = vadd.f32 %v2938, %v3146
        %v3209 = vadd.f32 %v2939, %v3151
        %v3210 = vadd.f32 %v2940, %v3156
        %v3211 = vadd.f32 %v2941, %v3161
        %v3212 = vadd.f32 %v2942, %v3166
        %v3213 = vadd.f32 %v2943, %v3171
        %v3214 = vadd.f32 %v2944, %v3176
        %v3215 = vadd.f32 %v2945, %v3181
        %v3216 = vld [vmem:[%s260] sm:$0x1]
        %v3218 = vlaneseq
        %v3219 = vshrl.u32 %v3218, 7
        %v3220 = vsub.s32 0, %v3219
        %v3221 = vrot.slane %v3216, %v3220
        %v3223 = vadd.f32 %v3184, %v3221
        %v3224 = vadd.f32 %v3185, %v3221
        %v3225 = vadd.f32 %v3186, %v3221
        %v3226 = vadd.f32 %v3187, %v3221
        %v3227 = vadd.f32 %v3188, %v3221
        %v3228 = vadd.f32 %v3189, %v3221
        %v3229 = vadd.f32 %v3190, %v3221
        %v3230 = vadd.f32 %v3191, %v3221
        %v3231 = vadd.f32 %v3192, %v3221
        %v3232 = vadd.f32 %v3193, %v3221
        %v3233 = vadd.f32 %v3194, %v3221
        %v3234 = vadd.f32 %v3195, %v3221
        %v3235 = vadd.f32 %v3196, %v3221
        %v3236 = vadd.f32 %v3197, %v3221
        %v3237 = vadd.f32 %v3198, %v3221
        %v3238 = vadd.f32 %v3199, %v3221
        %v3239 = vadd.f32 %v3200, %v3221
        %v3240 = vadd.f32 %v3201, %v3221
        %v3241 = vadd.f32 %v3202, %v3221
        %v3242 = vadd.f32 %v3203, %v3221
        %v3243 = vadd.f32 %v3204, %v3221
        %v3244 = vadd.f32 %v3205, %v3221
        %v3245 = vadd.f32 %v3206, %v3221
        %v3246 = vadd.f32 %v3207, %v3221
        %v3247 = vadd.f32 %v3208, %v3221
        %v3248 = vadd.f32 %v3209, %v3221
        %v3249 = vadd.f32 %v3210, %v3221
        %v3250 = vadd.f32 %v3211, %v3221
        %v3251 = vadd.f32 %v3212, %v3221
        %v3252 = vadd.f32 %v3213, %v3221
        %v3253 = vadd.f32 %v3214, %v3221
        %v3254 = vadd.f32 %v3215, %v3221
        %3255 = vst.msk [vmem:[%s257] sm:$0xff] %vm261, %v3223
        %3256 = vst.msk [vmem:[%s257 + $0x8] sm:$0xff] %vm261, %v3224
        %3257 = vst.msk [vmem:[%s257 + $0x10] sm:$0xff] %vm261, %v3225
        %3258 = vst.msk [vmem:[%s257 + $0x18] sm:$0xff] %vm261, %v3226
        %3259 = vst.msk [vmem:[%s257 + $0x20] sm:$0xff] %vm261, %v3227
        %3260 = vst.msk [vmem:[%s257 + $0x28] sm:$0xff] %vm261, %v3228
        %3261 = vst.msk [vmem:[%s257 + $0x30] sm:$0xff] %vm261, %v3229
        %3262 = vst.msk [vmem:[%s257 + $0x38] sm:$0xff] %vm261, %v3230
        %3263 = vst.msk [vmem:[%s257 + $0x40] sm:$0xff] %vm261, %v3231
        %3264 = vst.msk [vmem:[%s257 + $0x48] sm:$0xff] %vm261, %v3232
        %3265 = vst.msk [vmem:[%s257 + $0x50] sm:$0xff] %vm261, %v3233
        %3266 = vst.msk [vmem:[%s257 + $0x58] sm:$0xff] %vm261, %v3234
        %3267 = vst.msk [vmem:[%s257 + $0x60] sm:$0xff] %vm261, %v3235
        %3268 = vst.msk [vmem:[%s257 + $0x68] sm:$0xff] %vm261, %v3236
        %3269 = vst.msk [vmem:[%s257 + $0x70] sm:$0xff] %vm261, %v3237
        %3270 = vst.msk [vmem:[%s257 + $0x78] sm:$0xff] %vm261, %v3238
        %3271 = vst.msk [vmem:[%s257 + $0x80] sm:$0xff] %vm261, %v3239
        %3272 = vst.msk [vmem:[%s257 + $0x88] sm:$0xff] %vm261, %v3240
        %3273 = vst.msk [vmem:[%s257 + $0x90] sm:$0xff] %vm261, %v3241
        %3274 = vst.msk [vmem:[%s257 + $0x98] sm:$0xff] %vm261, %v3242
        %3275 = vst.msk [vmem:[%s257 + $0xa0] sm:$0xff] %vm261, %v3243
        %3276 = vst.msk [vmem:[%s257 + $0xa8] sm:$0xff] %vm261, %v3244
        %3277 = vst.msk [vmem:[%s257 + $0xb0] sm:$0xff] %vm261, %v3245
        %3278 = vst.msk [vmem:[%s257 + $0xb8] sm:$0xff] %vm261, %v3246
        %3279 = vst.msk [vmem:[%s257 + $0xc0] sm:$0xff] %vm261, %v3247
        %3280 = vst.msk [vmem:[%s257 + $0xc8] sm:$0xff] %vm261, %v3248
        %3281 = vst.msk [vmem:[%s257 + $0xd0] sm:$0xff] %vm261, %v3249
        %3282 = vst.msk [vmem:[%s257 + $0xd8] sm:$0xff] %vm261, %v3250
        %3283 = vst.msk [vmem:[%s257 + $0xe0] sm:$0xff] %vm261, %v3251
        %3284 = vst.msk [vmem:[%s257 + $0xe8] sm:$0xff] %vm261, %v3252
        %3285 = vst.msk [vmem:[%s257 + $0xf0] sm:$0xff] %vm261, %v3253
        %3286 = vst.msk [vmem:[%s257 + $0xf8] sm:$0xff] %vm261, %v3254
        %s3287 = sand.u32 %s125, 1
        %s3288 = scalar_lea.sflag [#allocation5], %s3287
        %s3289 = sand.u32 %s125, 1
        %s3290 = smul.addr %s3289, 256
        %s3291 = scalar_lea.vmem [#allocation8], %s3290
        // Predicated region
        $region41: #{tpu_custom_call.1} parent=31 // pred_check
          %p3292 = pneg %p135
        $region42: #{tpu_custom_call.1} parent=31 // pred_check_branch
          %3294 = sbr.rel (%p3292) target = $region44
        $region43: #{tpu_custom_call.1} parent=31 // pred_region
          %s3296 = ssub.s32 4096, 4096
          %3297 = vsyncadd %s3288, %s3296
          %s3298 = smul.addr %s28, 32
          %s3299 = smul.addr %s27, 64
          %s3300 = sadd.s32 %s3298, %s3299
          %s3301 = smul.addr %s3300, 128
          %s3302 = scalar_lea.hbm %s3, %s3301
          %s3303 = sshll.u32 %s3291, 4
          %s3304 = int_to_ptr.vmem [resolvable:$true] %s3303
          %3309 = dma.vmem_to_hbm [thread:$0]  %s3304, 4096, %s3302, %s3288, 128, 128, 8
        $region44: #{tpu_custom_call.1} parent=31 // pred_fallthru
          _
      $region32: #{tpu_custom_call.1} parent=5 // pred_fallthru
        _
      %p3310 = scmp.le.s32.totalorder 2, %s18
      // Predicated region
      $region45: #{tpu_custom_call.1} parent=5 // pred_check
        %p3311 = pneg %p3310
      $region46: #{tpu_custom_call.1} parent=5 // pred_check_branch
        %3313 = sbr.rel (%p3311) target = $region48
      $region47: #{tpu_custom_call.1} parent=5 // pred_region
        %s3314 = ssub.s32 %s18, 2
        // Predicated region
        $region49: #{tpu_custom_call.1} parent=47 // pred_check
          %p3315 = pneg %p141
        $region50: #{tpu_custom_call.1} parent=47 // pred_check_branch
          %3317 = sbr.rel (%p3315) target = $region52
        $region51: #{tpu_custom_call.1} parent=47 // pred_region
          %s3318 = sand.u32 %s126, 1
          %s3319 = scalar_lea.sflag [#allocation5], %s3318
          %s3320 = sand.u32 %s126, 1
          %s3321 = smul.addr %s3320, 256
          %s3322 = scalar_lea.vmem [#allocation8], %s3321
          %3323 = dma.done %s3319, 4096
        $region52: #{tpu_custom_call.1} parent=47 // pred_fallthru
          _
      $region48: #{tpu_custom_call.1} parent=5 // pred_fallthru
        _
    $region6: #{tpu_custom_call.1} parent=1 // loop_footer
      %s22 = sadd.s32 1, %s18
    $region7: #{tpu_custom_call.1} parent=1 // loop_footer_branch
      %17 = sbr.rel target = $region3
    $region8: #{tpu_custom_call.1} parent=1 // loop_exit
      _
    %3324 = vsyncpa [#allocation4], 1
    %s3325 = scalar_lea.sflag [#allocation4], 1
    %3326 = vsyncpa %s3325, 1
    %3327 = vsyncpa [#allocation7], 1
    %s3328 = scalar_lea.sflag [#allocation7], 1
    %3329 = vsyncpa %s3328, 1
    %3330 = vsyncpa [#allocation5], 1
    %s3331 = scalar_lea.sflag [#allocation5], 1
    %3332 = vsyncpa %s3331, 1

</llo_original>
